<compile_context>
chip_gen: v7x
topology: tpu7x:2x2x1
jax: 0.10.0
libtpu: 0.0.40
codegen_flags: <defaults>
</compile_context>

<pallas_src>
import functools
import math

import jax
import jax.numpy as jnp
from jax.experimental import pallas as pl
from jax.experimental.pallas import tpu as pltpu

NEG_INF = -1e30                # finite mask value: no NaN softmax for fully-padded rows
ACT_DTYPE = jnp.bfloat16       # inter-kernel activation dtype
WGT_DTYPE = jnp.bfloat16       # MXU operand dtype (weights / matmul inputs)
LN_EPS = 1e-5


def _pick_tile(dim, candidates=(1024, 512, 256, 128)):
    """Largest tile that divides `dim`; falls back to the full dim (toy shapes)."""
    for c in candidates:
        if dim % c == 0:
            return c
    return dim


def _layernorm(x, g, b, eps=LN_EPS):
    """LayerNorm over the last dim; x f32 (rows, E), g/b (1, E) f32."""
    mu = jnp.mean(x, axis=-1, keepdims=True)
    var = jnp.mean(jnp.square(x - mu), axis=-1, keepdims=True)
    return (x - mu) * jax.lax.rsqrt(var + eps) * g + b


# ----------------------------- Pallas kernels ------------------------------

def _mha_ln_kernel(*refs, n_head, has_bias):
    """Fused QKV proj + multi-head attention + out proj + residual add + LayerNorm.

    xq block (1, tq, E) is both the query rows AND the residual; xkv block (1, Sk, E)
    provides keys/values (== the same array for self-attention, memory for cross-attention).
    """
    if has_bias:
        (xq_ref, xkv_ref, bias_ref, wq_ref, bq_ref, wkv_ref, bkv_ref,
         wo_ref, bo_ref, g_ref, gb_ref, o_ref) = refs
    else:
        (xq_ref, xkv_ref, wq_ref, bq_ref, wkv_ref, bkv_ref,
         wo_ref, bo_ref, g_ref, gb_ref, o_ref) = refs
        bias_ref = None

    xq = xq_ref[0]                                        # (tq, E)  ACT_DTYPE
    xkv = xkv_ref[0]                                      # (Sk, E)
    E = xq.shape[-1]
    Dh = E // n_head

    # Projections: bf16 MXU operands, f32 accumulate. 1/sqrt(Dh) pre-folded into wq/bq.
    q = jnp.dot(xq.astype(WGT_DTYPE), wq_ref[...],
                preferred_element_type=jnp.float32) + bq_ref[...]        # (tq, E)
    kv = jnp.dot(xkv.astype(WGT_DTYPE), wkv_ref[...],
                 preferred_element_type=jnp.float32) + bkv_ref[...]      # (Sk, 2E)
    k, v = kv[:, :E], kv[:, E:]
    kT = k.T                                              # (E, Sk): ONE transpose for all heads

    q16 = q.astype(WGT_DTYPE)
    kT16 = kT.astype(WGT_DTYPE)
    v16 = v.astype(WGT_DTYPE)
    bias = bias_ref[0] if has_bias else None              # (1, Sk) additive key-padding bias

    heads = []
    for h in range(n_head):                               # static unroll; heads = lane slices
        sl = slice(h * Dh, (h + 1) * Dh)
        s = jnp.dot(q16[:, sl], kT16[sl, :],
                    preferred_element_type=jnp.float32)   # (tq, Sk)
        if bias is not None:
            s = s + bias
        m = jnp.max(s, axis=-1, keepdims=True)
        p = jnp.exp(s - m)
        p = p * pl.reciprocal(jnp.sum(p, axis=-1, keepdims=True), approx=True)
        heads.append(jnp.dot(p.astype(WGT_DTYPE), v16[:, sl],
                             preferred_element_type=jnp.float32))        # (tq, Dh)
    attn = jnp.concatenate(heads, axis=-1)                # (tq, E)

    # Single output projection (K = E) + fused residual add + LayerNorm epilogue (post-norm).
    out = jnp.dot(attn.astype(WGT_DTYPE), wo_ref[...],
                  preferred_element_type=jnp.float32) + bo_ref[...]
    y = _layernorm(xq.astype(jnp.float32) + out, g_ref[...], gb_ref[...])
    o_ref[0] = y.astype(o_ref.dtype)


def _ffn_ln_kernel(*refs, two_norms):
    """Fused lin1 + ReLU + lin2 + residual add + LayerNorm (+ optional second LayerNorm).

    The (tm, 4E) intermediate never touches HBM. two_norms=True additionally applies the
    final encoder/decoder LayerNorm (fuses the back-to-back LN that followed the last layer)."""
    if two_norms:
        (x_ref, w1_ref, b1_ref, w2_ref, b2_ref,
         g1_ref, gb1_ref, g2_ref, gb2_ref, o_ref) = refs
    else:
        (x_ref, w1_ref, b1_ref, w2_ref, b2_ref,
         g1_ref, gb1_ref, o_ref) = refs
    x = x_ref[...]                                        # (tm, E) ACT_DTYPE
    h = jnp.dot(x.astype(WGT_DTYPE), w1_ref[...],
                preferred_element_type=jnp.float32) + b1_ref[...]
    h = jnp.maximum(h, 0.0)
    y = jnp.dot(h.astype(WGT_DTYPE), w2_ref[...],
                preferred_element_type=jnp.float32) + b2_ref[...]
    y = _layernorm(x.astype(jnp.float32) + y, g1_ref[...], gb1_ref[...])
    if two_norms:
        y = _layernorm(y, g2_ref[...], gb2_ref[...])
    o_ref[...] = y.astype(o_ref.dtype)


def _head_kernel(y_ref, g_ref, b_ref, w_ref, o_ref):
    """ln_f fused into the prologue of the vocab-head matmul (bf16 MXU operands)."""
    y = _layernorm(y_ref[...].astype(jnp.float32), g_ref[...], b_ref[...])
    o_ref[...] = jnp.dot(y.astype(WGT_DTYPE), w_ref[...],
                         preferred_element_type=jnp.float32).astype(o_ref.dtype)


# ----------------------------- kernel wrappers ------------------------------

def pallas_mha_ln(x_q, x_kv, bias, p, norm_g, norm_b, n_head):
    """Fused MHA + residual + LN. x_q: (B, Sq, E) (queries AND residual), x_kv: (B, Sk, E),
    bias: (B, 1, Sk) additive key-padding bias or None (no-bias kernel variant)."""
    B, Sq, E = x_q.shape
    Sk = x_kv.shape[1]
    tq = _pick_tile(Sq, (256, 128))
    has_bias = bias is not None
    kern = functools.partial(_mha_ln_kernel, n_head=n_head, has_bias=has_bias)

    in_specs = [
        pl.BlockSpec((1, tq, E), lambda b, qi: (b, qi, 0)),   # query rows / residual
        pl.BlockSpec((1, Sk, E), lambda b, qi: (b, 0, 0)),    # full keys/values source
    ]
    args = [x_q, x_kv]
    if has_bias:
        in_specs.append(pl.BlockSpec((1, 1, Sk), lambda b, qi: (b, 0, 0)))
        args.append(bias)
    in_specs += [
        pl.BlockSpec((E, E), lambda b, qi: (0, 0)),           # wq_t (scale folded)
        pl.BlockSpec((1, E), lambda b, qi: (0, 0)),           # bq
        pl.BlockSpec((E, 2 * E), lambda b, qi: (0, 0)),       # wkv_t
        pl.BlockSpec((1, 2 * E), lambda b, qi: (0, 0)),       # bkv
        pl.BlockSpec((E, E), lambda b, qi: (0, 0)),           # wo_t
        pl.BlockSpec((1, E), lambda b, qi: (0, 0)),           # bo
        pl.BlockSpec((1, E), lambda b, qi: (0, 0)),           # LN gamma
        pl.BlockSpec((1, E), lambda b, qi: (0, 0)),           # LN beta
    ]
    args += [p["wq_t"], p["bq"], p["wkv_t"], p["bkv"], p["wo_t"], p["bo"], norm_g, norm_b]

    return pl.pallas_call(
        kern,
        out_shape=jax.ShapeDtypeStruct((B, Sq, E), ACT_DTYPE),
        grid=(B, Sq // tq),
        in_specs=in_specs,
        out_specs=pl.BlockSpec((1, tq, E), lambda b, qi: (b, qi, 0)),
        compiler_params=pltpu.CompilerParams(
            dimension_semantics=("parallel", "parallel")),
    )(*args)


def pallas_ffn_ln(x3, p, norm_g, norm_b, norm2_g=None, norm2_b=None):
    """Fused lin1+ReLU+lin2 + residual + LN (+ optional final encoder/decoder LN)."""
    B, S, E = x3.shape
    M = B * S
    F = p["w1_t"].shape[1]
    x = x3.reshape(M, E)
    tm = _pick_tile(M)
    two_norms = norm2_g is not None
    kern = functools.partial(_ffn_ln_kernel, two_norms=two_norms)
    row = pl.BlockSpec((tm, E), lambda i: (i, 0))
    par = pl.BlockSpec((1, E), lambda i: (0, 0))
    in_specs = [row,
                pl.BlockSpec((E, F), lambda i: (0, 0)),
                pl.BlockSpec((1, F), lambda i: (0, 0)),
                pl.BlockSpec((F, E), lambda i: (0, 0)),
                par, par, par]
    args = [x, p["w1_t"], p["b1"], p["w2_t"], p["b2"], norm_g, norm_b]
    if two_norms:
        in_specs += [par, par]
        args += [norm2_g, norm2_b]
    y = pl.pallas_call(
        kern,
        out_shape=jax.ShapeDtypeStruct((M, E), ACT_DTYPE),
        grid=(M // tm,),
        in_specs=in_specs,
        out_specs=row,
        compiler_params=pltpu.CompilerParams(dimension_semantics=("parallel",)),
    )(*args)
    return y.reshape(B, S, E)


def pallas_head(y2, g, b, w_t):
    """LN(y) @ w_t: (M, E) -> (M, V) logits, ln_f fused into the matmul prologue."""
    M, E = y2.shape
    V = w_t.shape[1]
    tm = _pick_tile(M)
    tn = _pick_tile(V)
    return pl.pallas_call(
        _head_kernel,
        out_shape=jax.ShapeDtypeStruct((M, V), jnp.float32),
        grid=(M // tm, V // tn),
        in_specs=[
            pl.BlockSpec((tm, E), lambda i, j: (i, 0)),
            pl.BlockSpec((1, E), lambda i, j: (0, 0)),
            pl.BlockSpec((1, E), lambda i, j: (0, 0)),
            pl.BlockSpec((E, tn), lambda i, j: (0, j)),
        ],
        out_specs=pl.BlockSpec((tm, tn), lambda i, j: (i, j)),
        compiler_params=pltpu.CompilerParams(
            dimension_semantics=("parallel", "parallel")),
    )(y2, g, b, w_t)


# ------------------------------- forward pass --------------------------------

def forward(params, input_ids, pad_token_id, n_head):
    B, S = input_ids.shape
    E = params["tok_emb"].shape[1]
    V = params["head_w_t"].shape[1]

    # TODO(synk): embedding gather stays at JAX level (no clean tiny-shape Pallas gather).
    tok = jnp.take(params["tok_emb"], input_ids, axis=0)            # (B, S, E)
    pos = params["pos_enc"][:S][None]                               # (1, S, E)
    x = (tok + pos).astype(ACT_DTYPE)                               # dropout: identity (eval)

    pad = input_ids == pad_token_id                                 # src_key_padding_mask
    src_bias = jnp.where(pad, NEG_INF, 0.0).astype(jnp.float32)[:, None, :]   # (B, 1, S)

    # ---- encoder (post-norm, relu FFN); enc_norm fused into last layer's FFN epilogue ----
    n_enc = len(params["enc_layers"])
    for li, lp in enumerate(params["enc_layers"]):
        x = pallas_mha_ln(x, x, src_bias, lp["self_attn"], lp["norm1_g"], lp["norm1_b"], n_head)
        last = li == n_enc - 1
        x = pallas_ffn_ln(x, lp, lp["norm2_g"], lp["norm2_b"],
                          norm2_g=params["enc_norm_g"] if last else None,
                          norm2_b=params["enc_norm_b"] if last else None)
    memory = x

    # ---- decoder (tgt = zeros_like(src embeddings); reference passes no tgt/memory masks) ----
    y = jnp.zeros_like(memory)
    n_dec = len(params["dec_layers"])
    for li, lp in enumerate(params["dec_layers"]):
        y = pallas_mha_ln(y, y, None, lp["self_attn"], lp["norm1_g"], lp["norm1_b"], n_head)
        y = pallas_mha_ln(y, memory, None, lp["cross_attn"], lp["norm2_g"], lp["norm2_b"], n_head)
        last = li == n_dec - 1
        y = pallas_ffn_ln(y, lp, lp["norm3_g"], lp["norm3_b"],
                          norm2_g=params["dec_norm_g"] if last else None,
                          norm2_b=params["dec_norm_b"] if last else None)

    # ---- ln_f fused into the vocab head matmul ----
    logits = pallas_head(y.reshape(B * S, E), params["ln_f_g"], params["ln_f_b"],
                         params["head_w_t"]).reshape(B, S, V)
    # predicted_token_ids = argmax(logits, -1) is computed but unused in the PyTorch forward.
    return logits


# ----------------------------- parameter init ------------------------------

def init_params(key, vocab_size, n_layer, n_head, n_emb, context_length):
    keys = iter(jax.random.split(key, 4096))

    def w(shape, scale=0.02):
        return scale * jax.random.normal(next(keys), shape, jnp.float32)

    def zeros(shape):
        return jnp.zeros(shape, jnp.float32)

    def ones(shape):
        return jnp.ones(shape, jnp.float32)

    q_scale = 1.0 / math.sqrt(n_emb // n_head)

    # All matmul weights PRE-TRANSPOSED (x @ W_t + b) and stored bf16 (MXU-native);
    # biases / LayerNorm params stay f32 (added to f32 accumulators).
    def attn_params():
        return {
            "wq_t": (w((n_emb, n_emb)) * q_scale).astype(WGT_DTYPE),   # 1/sqrt(Dh) folded
            "bq": zeros((1, n_emb)) * q_scale,
            "wkv_t": w((n_emb, 2 * n_emb)).astype(WGT_DTYPE),
            "bkv": zeros((1, 2 * n_emb)),
            "wo_t": w((n_emb, n_emb)).astype(WGT_DTYPE),
            "bo": zeros((1, n_emb)),
        }

    def ffn_norm(extra_norm=False):
        d = {"w1_t": w((n_emb, 4 * n_emb)).astype(WGT_DTYPE), "b1": zeros((1, 4 * n_emb)),
             "w2_t": w((4 * n_emb, n_emb)).astype(WGT_DTYPE), "b2": zeros((1, n_emb)),
             "norm1_g": ones((1, n_emb)), "norm1_b": zeros((1, n_emb)),
             "norm2_g": ones((1, n_emb)), "norm2_b": zeros((1, n_emb))}
        if extra_norm:
            d["norm3_g"] = ones((1, n_emb))
            d["norm3_b"] = zeros((1, n_emb))
        return d

    def enc_layer():
        d = {"self_attn": attn_params()}
        d.update(ffn_norm(extra_norm=False))
        return d

    def dec_layer():
        d = {"self_attn": attn_params(), "cross_attn": attn_params()}
        d.update(ffn_norm(extra_norm=True))
        return d

    return {
        "tok_emb": w((vocab_size, n_emb)),
        "pos_enc": w((context_length, n_emb)),
        "pos_dec": w((context_length, n_emb)),   # created by __init__ but unused in forward
        "enc_layers": [enc_layer() for _ in range(n_layer)],
        "dec_layers": [dec_layer() for _ in range(n_layer)],
        "enc_norm_g": ones((1, n_emb)), "enc_norm_b": zeros((1, n_emb)),
        "dec_norm_g": ones((1, n_emb)), "dec_norm_b": zeros((1, n_emb)),
        "ln_f_g": ones((1, n_emb)), "ln_f_b": zeros((1, n_emb)),
        "head_w_t": w((n_emb, vocab_size)).astype(WGT_DTYPE),   # Linear(E, V, bias=False), transposed
    }


# ---------------------------------- main ------------------------------------

if __name__ == "__main__":
    vocab_size, n_layer, n_head, n_emb = 64, 2, 4, 32
    context_length, pad_token_id = 16, 0
    B, S = 2, 8

    root = jax.random.PRNGKey(0)
    pkey, dkey = jax.random.split(root)
    params = init_params(pkey, vocab_size, n_layer, n_head, n_emb, context_length)

    input_ids = jax.random.randint(dkey, (B, S), 1, vocab_size, dtype=jnp.int32)
    input_ids = input_ids.at[:, -1].set(pad_token_id)   # exercise src_key_padding_mask

    fwd = jax.jit(functools.partial(forward, pad_token_id=pad_token_id, n_head=n_head))
    logits = fwd(params, input_ids)
    logits = jax.block_until_ready(logits)

    assert logits.shape == (B, S, vocab_size), logits.shape
    assert bool(jnp.all(jnp.isfinite(logits)))
    print("KERNEL_OK")
</pallas_src>

<mosaic_0001>
module attributes {stable_mosaic.version = 11 : i64} {
  func.func @_ffn_ln_kernel(%arg0: i32, %arg1: memref<16x32xbf16, #tpu.memory_space<vmem>>, %arg2: memref<32x128xbf16, #tpu.memory_space<vmem>>, %arg3: memref<1x128xf32, #tpu.memory_space<vmem>>, %arg4: memref<128x32xbf16, #tpu.memory_space<vmem>>, %arg5: memref<1x32xf32, #tpu.memory_space<vmem>>, %arg6: memref<1x32xf32, #tpu.memory_space<vmem>>, %arg7: memref<1x32xf32, #tpu.memory_space<vmem>>, %arg8: memref<16x32xbf16, #tpu.memory_space<vmem>>) attributes {dimension_semantics = [#tpu.dimension_semantics<parallel>], iteration_bounds = array<i64: 1>, scalar_prefetch = 0 : i64, scratch_operands = 0 : i64, tpu.core_type = #tpu.core_type<tc>, window_params = [{transform_indices = @transform_0, window_bounds = array<i64: 16, 32>}, {pipeline_mode = #tpu.pipeline_mode<synchronous>, transform_indices = @transform_1, window_bounds = array<i64: 32, 128>}, {pipeline_mode = #tpu.pipeline_mode<synchronous>, transform_indices = @transform_2, window_bounds = array<i64: 1, 128>}, {pipeline_mode = #tpu.pipeline_mode<synchronous>, transform_indices = @transform_3, window_bounds = array<i64: 128, 32>}, {pipeline_mode = #tpu.pipeline_mode<synchronous>, transform_indices = @transform_4, window_bounds = array<i64: 1, 32>}, {pipeline_mode = #tpu.pipeline_mode<synchronous>, transform_indices = @transform_5, window_bounds = array<i64: 1, 32>}, {pipeline_mode = #tpu.pipeline_mode<synchronous>, transform_indices = @transform_6, window_bounds = array<i64: 1, 32>}, {transform_indices = @transform_7, window_bounds = array<i64: 16, 32>}]} {
    %c0 = arith.constant 0 : index
    %c0_0 = arith.constant 0 : index
    %0 = vector.load %arg1[%c0, %c0_0] : memref<16x32xbf16, #tpu.memory_space<vmem>>, vector<16x32xbf16>
    %c0_1 = arith.constant 0 : index
    %c0_2 = arith.constant 0 : index
    %1 = vector.load %arg2[%c0_1, %c0_2] : memref<32x128xbf16, #tpu.memory_space<vmem>>, vector<32x128xbf16>
    %cst = arith.constant dense<0.000000e+00> : vector<16x128xf32>
    %2 = tpu.matmul %0, %1, %cst {dimension_numbers = #tpu.dot_dimension_numbers<[1], [0], [0], [1], [0, 0, 1, 1], [], []>} : vector<16x32xbf16>, vector<32x128xbf16>, vector<16x128xf32> -> vector<16x128xf32>
    %c0_3 = arith.constant 0 : index
    %c0_4 = arith.constant 0 : index
    %3 = vector.load %arg3[%c0_3, %c0_4] : memref<1x128xf32, #tpu.memory_space<vmem>>, vector<1x128xf32>
    %4 = vector.broadcast %3 : vector<1x128xf32> to vector<16x128xf32>
    %5 = arith.addf %2, %4 : vector<16x128xf32>
    %cst_5 = arith.constant 0.000000e+00 : f32
    %6 = vector.broadcast %cst_5 : f32 to vector<16x128xf32>
    %7 = arith.maximumf %5, %6 : vector<16x128xf32>
    %8 = arith.truncf %7 : vector<16x128xf32> to vector<16x128xbf16>
    %c0_6 = arith.constant 0 : index
    %c0_7 = arith.constant 0 : index
    %9 = vector.load %arg4[%c0_6, %c0_7] : memref<128x32xbf16, #tpu.memory_space<vmem>>, vector<128x32xbf16>
    %cst_8 = arith.constant dense<0.000000e+00> : vector<16x32xf32>
    %10 = tpu.matmul %8, %9, %cst_8 {dimension_numbers = #tpu.dot_dimension_numbers<[1], [0], [0], [1], [0, 0, 1, 1], [], []>} : vector<16x128xbf16>, vector<128x32xbf16>, vector<16x32xf32> -> vector<16x32xf32>
    %c0_9 = arith.constant 0 : index
    %c0_10 = arith.constant 0 : index
    %11 = vector.load %arg5[%c0_9, %c0_10] : memref<1x32xf32, #tpu.memory_space<vmem>>, vector<1x32xf32>
    %12 = vector.broadcast %11 : vector<1x32xf32> to vector<16x32xf32>
    %13 = arith.addf %10, %12 : vector<16x32xf32>
    %14 = arith.extf %0 : vector<16x32xbf16> to vector<16x32xf32>
    %15 = arith.addf %14, %13 : vector<16x32xf32>
    %c0_11 = arith.constant 0 : index
    %c0_12 = arith.constant 0 : index
    %16 = vector.load %arg6[%c0_11, %c0_12] : memref<1x32xf32, #tpu.memory_space<vmem>>, vector<1x32xf32>
    %c0_13 = arith.constant 0 : index
    %c0_14 = arith.constant 0 : index
    %17 = vector.load %arg7[%c0_13, %c0_14] : memref<1x32xf32, #tpu.memory_space<vmem>>, vector<1x32xf32>
    %cst_15 = arith.constant dense<0.000000e+00> : vector<16xf32>
    %18 = vector.multi_reduction <add>, %15, %cst_15 [1] : vector<16x32xf32> to vector<16xf32>
    %19 = vector.shape_cast %18 : vector<16xf32> to vector<16x1xf32>
    %cst_16 = arith.constant 3.200000e+01 : f32
    %20 = vector.broadcast %cst_16 : f32 to vector<16x1xf32>
    %21 = arith.divf %19, %20 : vector<16x1xf32>
    %22 = vector.broadcast %21 : vector<16x1xf32> to vector<16x32xf32>
    %23 = arith.subf %15, %22 : vector<16x32xf32>
    %24 = arith.mulf %23, %23 : vector<16x32xf32>
    %cst_17 = arith.constant dense<0.000000e+00> : vector<16xf32>
    %25 = vector.multi_reduction <add>, %24, %cst_17 [1] : vector<16x32xf32> to vector<16xf32>
    %26 = vector.shape_cast %25 : vector<16xf32> to vector<16x1xf32>
    %cst_18 = arith.constant 3.200000e+01 : f32
    %27 = vector.broadcast %cst_18 : f32 to vector<16x1xf32>
    %28 = arith.divf %26, %27 : vector<16x1xf32>
    %29 = vector.broadcast %21 : vector<16x1xf32> to vector<16x32xf32>
    %30 = arith.subf %15, %29 : vector<16x32xf32>
    %cst_19 = arith.constant 9.99999974E-6 : f32
    %31 = vector.broadcast %cst_19 : f32 to vector<16x1xf32>
    %32 = arith.addf %28, %31 : vector<16x1xf32>
    %33 = math.rsqrt %32 : vector<16x1xf32>
    %34 = vector.broadcast %33 : vector<16x1xf32> to vector<16x32xf32>
    %35 = arith.mulf %30, %34 : vector<16x32xf32>
    %36 = vector.broadcast %16 : vector<1x32xf32> to vector<16x32xf32>
    %37 = arith.mulf %35, %36 : vector<16x32xf32>
    %38 = vector.broadcast %17 : vector<1x32xf32> to vector<16x32xf32>
    %39 = arith.addf %37, %38 : vector<16x32xf32>
    %40 = arith.truncf %39 : vector<16x32xf32> to vector<16x32xbf16>
    %c0_20 = arith.constant 0 : index
    %c0_21 = arith.constant 0 : index
    %41 = vector.load %arg8[%c0_20, %c0_21] : memref<16x32xbf16, #tpu.memory_space<vmem>>, vector<16x32xbf16>
    tpu.vector_store %arg8[%c0_20, %c0_21], %40 {strides = array<i32>} : memref<16x32xbf16, #tpu.memory_space<vmem>>, vector<16x32xbf16>,
    return
  }
  func.func @transform_0(%arg0: i32) -> (i32, i32) {
    %c0_i32 = arith.constant 0 : i32
    %c0_i32_0 = arith.constant 0 : i32
    return %arg0, %c0_i32 : i32, i32
  }
  func.func @transform_1(%arg0: i32) -> (i32, i32) {
    %c0_i32 = arith.constant 0 : i32
    %c0_i32_0 = arith.constant 0 : i32
    %c0_i32_1 = arith.constant 0 : i32
    return %c0_i32, %c0_i32_0 : i32, i32
  }
  func.func @transform_2(%arg0: i32) -> (i32, i32) {
    %c0_i32 = arith.constant 0 : i32
    %c0_i32_0 = arith.constant 0 : i32
    %c0_i32_1 = arith.constant 0 : i32
    return %c0_i32, %c0_i32_0 : i32, i32
  }
  func.func @transform_3(%arg0: i32) -> (i32, i32) {
    %c0_i32 = arith.constant 0 : i32
    %c0_i32_0 = arith.constant 0 : i32
    %c0_i32_1 = arith.constant 0 : i32
    return %c0_i32, %c0_i32_0 : i32, i32
  }
  func.func @transform_4(%arg0: i32) -> (i32, i32) {
    %c0_i32 = arith.constant 0 : i32
    %c0_i32_0 = arith.constant 0 : i32
    %c0_i32_1 = arith.constant 0 : i32
    return %c0_i32, %c0_i32_0 : i32, i32
  }
  func.func @transform_5(%arg0: i32) -> (i32, i32) {
    %c0_i32 = arith.constant 0 : i32
    %c0_i32_0 = arith.constant 0 : i32
    %c0_i32_1 = arith.constant 0 : i32
    return %c0_i32, %c0_i32_0 : i32, i32
  }
  func.func @transform_6(%arg0: i32) -> (i32, i32) {
    %c0_i32 = arith.constant 0 : i32
    %c0_i32_0 = arith.constant 0 : i32
    %c0_i32_1 = arith.constant 0 : i32
    return %c0_i32, %c0_i32_0 : i32, i32
  }
  func.func @transform_7(%arg0: i32) -> (i32, i32) {
    %c0_i32 = arith.constant 0 : i32
    %c0_i32_0 = arith.constant 0 : i32
    return %arg0, %c0_i32 : i32, i32
  }
}

module attributes {stable_mosaic.version = 11 : i64} {
  func.func @_mha_ln_kernel(%arg0: i32, %arg1: i32, %arg2: memref<1x8x32xbf16, #tpu.memory_space<vmem>>, %arg3: memref<1x8x32xbf16, #tpu.memory_space<vmem>>, %arg4: memref<1x1x8xf32, #tpu.memory_space<vmem>>, %arg5: memref<32x32xbf16, #tpu.memory_space<vmem>>, %arg6: memref<1x32xf32, #tpu.memory_space<vmem>>, %arg7: memref<32x64xbf16, #tpu.memory_space<vmem>>, %arg8: memref<1x64xf32, #tpu.memory_space<vmem>>, %arg9: memref<32x32xbf16, #tpu.memory_space<vmem>>, %arg10: memref<1x32xf32, #tpu.memory_space<vmem>>, %arg11: memref<1x32xf32, #tpu.memory_space<vmem>>, %arg12: memref<1x32xf32, #tpu.memory_space<vmem>>, %arg13: memref<1x8x32xbf16, #tpu.memory_space<vmem>>) attributes {dimension_semantics = [#tpu.dimension_semantics<parallel>, #tpu.dimension_semantics<parallel>], iteration_bounds = array<i64: 2, 1>, scalar_prefetch = 0 : i64, scratch_operands = 0 : i64, tpu.core_type = #tpu.core_type<tc>, window_params = [{transform_indices = @transform_0, window_bounds = array<i64: 1, 8, 32>}, {transform_indices = @transform_1, window_bounds = array<i64: 1, 8, 32>}, {transform_indices = @transform_2, window_bounds = array<i64: 1, 1, 8>}, {pipeline_mode = #tpu.pipeline_mode<synchronous>, transform_indices = @transform_3, window_bounds = array<i64: 32, 32>}, {pipeline_mode = #tpu.pipeline_mode<synchronous>, transform_indices = @transform_4, window_bounds = array<i64: 1, 32>}, {pipeline_mode = #tpu.pipeline_mode<synchronous>, transform_indices = @transform_5, window_bounds = array<i64: 32, 64>}, {pipeline_mode = #tpu.pipeline_mode<synchronous>, transform_indices = @transform_6, window_bounds = array<i64: 1, 64>}, {pipeline_mode = #tpu.pipeline_mode<synchronous>, transform_indices = @transform_7, window_bounds = array<i64: 32, 32>}, {pipeline_mode = #tpu.pipeline_mode<synchronous>, transform_indices = @transform_8, window_bounds = array<i64: 1, 32>}, {pipeline_mode = #tpu.pipeline_mode<synchronous>, transform_indices = @transform_9, window_bounds = array<i64: 1, 32>}, {pipeline_mode = #tpu.pipeline_mode<synchronous>, transform_indices = @transform_10, window_bounds = array<i64: 1, 32>}, {transform_indices = @transform_11, window_bounds = array<i64: 1, 8, 32>}]} {
    %c0 = arith.constant 0 : index
    %c0_0 = arith.constant 0 : index
    %c0_1 = arith.constant 0 : index
    %0 = vector.load %arg2[%c0, %c0_0, %c0_1] : memref<1x8x32xbf16, #tpu.memory_space<vmem>>, vector<1x8x32xbf16>
    %1 = vector.shape_cast %0 : vector<1x8x32xbf16> to vector<8x32xbf16>
    %c0_2 = arith.constant 0 : index
    %c0_3 = arith.constant 0 : index
    %c0_4 = arith.constant 0 : index
    %2 = vector.load %arg3[%c0_2, %c0_3, %c0_4] : memref<1x8x32xbf16, #tpu.memory_space<vmem>>, vector<1x8x32xbf16>
    %3 = vector.shape_cast %2 : vector<1x8x32xbf16> to vector<8x32xbf16>
    %c0_5 = arith.constant 0 : index
    %c0_6 = arith.constant 0 : index
    %4 = vector.load %arg5[%c0_5, %c0_6] : memref<32x32xbf16, #tpu.memory_space<vmem>>, vector<32x32xbf16>
    %cst = arith.constant dense<0.000000e+00> : vector<8x32xf32>
    %5 = tpu.matmul %1, %4, %cst {dimension_numbers = #tpu.dot_dimension_numbers<[1], [0], [0], [1], [0, 0, 1, 1], [], []>} : vector<8x32xbf16>, vector<32x32xbf16>, vector<8x32xf32> -> vector<8x32xf32>
    %c0_7 = arith.constant 0 : index
    %c0_8 = arith.constant 0 : index
    %6 = vector.load %arg6[%c0_7, %c0_8] : memref<1x32xf32, #tpu.memory_space<vmem>>, vector<1x32xf32>
    %7 = vector.broadcast %6 : vector<1x32xf32> to vector<8x32xf32>
    %8 = arith.addf %5, %7 : vector<8x32xf32>
    %c0_9 = arith.constant 0 : index
    %c0_10 = arith.constant 0 : index
    %9 = vector.load %arg7[%c0_9, %c0_10] : memref<32x64xbf16, #tpu.memory_space<vmem>>, vector<32x64xbf16>
    %cst_11 = arith.constant dense<0.000000e+00> : vector<8x64xf32>
    %10 = tpu.matmul %3, %9, %cst_11 {dimension_numbers = #tpu.dot_dimension_numbers<[1], [0], [0], [1], [0, 0, 1, 1], [], []>} : vector<8x32xbf16>, vector<32x64xbf16>, vector<8x64xf32> -> vector<8x64xf32>
    %c0_12 = arith.constant 0 : index
    %c0_13 = arith.constant 0 : index
    %11 = vector.load %arg8[%c0_12, %c0_13] : memref<1x64xf32, #tpu.memory_space<vmem>>, vector<1x64xf32>
    %12 = vector.broadcast %11 : vector<1x64xf32> to vector<8x64xf32>
    %13 = arith.addf %10, %12 : vector<8x64xf32>
    %14 = vector.extract_strided_slice %13 {offsets = [0, 0], sizes = [8, 32], strides = [1, 1]} : vector<8x64xf32> to vector<8x32xf32>
    %15 = vector.extract_strided_slice %13 {offsets = [0, 32], sizes = [8, 32], strides = [1, 1]} : vector<8x64xf32> to vector<8x32xf32>
    %16 = tpu.transpose %14, [1, 0] : vector<8x32xf32> -> vector<32x8xf32>
    %17 = arith.truncf %8 : vector<8x32xf32> to vector<8x32xbf16>
    %18 = arith.truncf %16 : vector<32x8xf32> to vector<32x8xbf16>
    %19 = arith.truncf %15 : vector<8x32xf32> to vector<8x32xbf16>
    %c0_14 = arith.constant 0 : index
    %c0_15 = arith.constant 0 : index
    %c0_16 = arith.constant 0 : index
    %20 = vector.load %arg4[%c0_14, %c0_15, %c0_16] : memref<1x1x8xf32, #tpu.memory_space<vmem>>, vector<1x1x8xf32>
    %21 = vector.shape_cast %20 : vector<1x1x8xf32> to vector<1x8xf32>
    %22 = vector.extract_strided_slice %17 {offsets = [0, 0], sizes = [8, 8], strides = [1, 1]} : vector<8x32xbf16> to vector<8x8xbf16>
    %23 = vector.extract_strided_slice %18 {offsets = [0, 0], sizes = [8, 8], strides = [1, 1]} : vector<32x8xbf16> to vector<8x8xbf16>
    %cst_17 = arith.constant dense<0.000000e+00> : vector<8x8xf32>
    %24 = tpu.matmul %22, %23, %cst_17 {dimension_numbers = #tpu.dot_dimension_numbers<[1], [0], [0], [1], [0, 0, 1, 1], [], []>} : vector<8x8xbf16>, vector<8x8xbf16>, vector<8x8xf32> -> vector<8x8xf32>
    %25 = vector.broadcast %21 : vector<1x8xf32> to vector<8x8xf32>
    %26 = arith.addf %24, %25 : vector<8x8xf32>
    %cst_18 = arith.constant dense<0xFF800000> : vector<8xf32>
    %27 = vector.multi_reduction <maximumf>, %26, %cst_18 [1] : vector<8x8xf32> to vector<8xf32>
    %28 = vector.shape_cast %27 : vector<8xf32> to vector<8x1xf32>
    %29 = vector.broadcast %28 : vector<8x1xf32> to vector<8x8xf32>
    %30 = arith.subf %26, %29 : vector<8x8xf32>
    %31 = math.exp %30 : vector<8x8xf32>
    %cst_19 = arith.constant dense<0.000000e+00> : vector<8xf32>
    %32 = vector.multi_reduction <add>, %31, %cst_19 [1] : vector<8x8xf32> to vector<8xf32>
    %33 = vector.shape_cast %32 : vector<8xf32> to vector<8x1xf32>
    %34 = tpu.reciprocal %33 {approx = true} : vector<8x1xf32> -> vector<8x1xf32>
    %35 = vector.broadcast %34 : vector<8x1xf32> to vector<8x8xf32>
    %36 = arith.mulf %31, %35 : vector<8x8xf32>
    %37 = arith.truncf %36 : vector<8x8xf32> to vector<8x8xbf16>
    %38 = vector.extract_strided_slice %19 {offsets = [0, 0], sizes = [8, 8], strides = [1, 1]} : vector<8x32xbf16> to vector<8x8xbf16>
    %cst_20 = arith.constant dense<0.000000e+00> : vector<8x8xf32>
    %39 = tpu.matmul %37, %38, %cst_20 {dimension_numbers = #tpu.dot_dimension_numbers<[1], [0], [0], [1], [0, 0, 1, 1], [], []>} : vector<8x8xbf16>, vector<8x8xbf16>, vector<8x8xf32> -> vector<8x8xf32>
    %40 = vector.extract_strided_slice %17 {offsets = [0, 8], sizes = [8, 8], strides = [1, 1]} : vector<8x32xbf16> to vector<8x8xbf16>
    %41 = vector.extract_strided_slice %18 {offsets = [8, 0], sizes = [8, 8], strides = [1, 1]} : vector<32x8xbf16> to vector<8x8xbf16>
    %cst_21 = arith.constant dense<0.000000e+00> : vector<8x8xf32>
    %42 = tpu.matmul %40, %41, %cst_21 {dimension_numbers = #tpu.dot_dimension_numbers<[1], [0], [0], [1], [0, 0, 1, 1], [], []>} : vector<8x8xbf16>, vector<8x8xbf16>, vector<8x8xf32> -> vector<8x8xf32>
    %43 = vector.broadcast %21 : vector<1x8xf32> to vector<8x8xf32>
    %44 = arith.addf %42, %43 : vector<8x8xf32>
    %cst_22 = arith.constant dense<0xFF800000> : vector<8xf32>
    %45 = vector.multi_reduction <maximumf>, %44, %cst_22 [1] : vector<8x8xf32> to vector<8xf32>
    %46 = vector.shape_cast %45 : vector<8xf32> to vector<8x1xf32>
    %47 = vector.broadcast %46 : vector<8x1xf32> to vector<8x8xf32>
    %48 = arith.subf %44, %47 : vector<8x8xf32>
    %49 = math.exp %48 : vector<8x8xf32>
    %cst_23 = arith.constant dense<0.000000e+00> : vector<8xf32>
    %50 = vector.multi_reduction <add>, %49, %cst_23 [1] : vector<8x8xf32> to vector<8xf32>
    %51 = vector.shape_cast %50 : vector<8xf32> to vector<8x1xf32>
    %52 = tpu.reciprocal %51 {approx = true} : vector<8x1xf32> -> vector<8x1xf32>
    %53 = vector.broadcast %52 : vector<8x1xf32> to vector<8x8xf32>
    %54 = arith.mulf %49, %53 : vector<8x8xf32>
    %55 = arith.truncf %54 : vector<8x8xf32> to vector<8x8xbf16>
    %56 = vector.extract_strided_slice %19 {offsets = [0, 8], sizes = [8, 8], strides = [1, 1]} : vector<8x32xbf16> to vector<8x8xbf16>
    %cst_24 = arith.constant dense<0.000000e+00> : vector<8x8xf32>
    %57 = tpu.matmul %55, %56, %cst_24 {dimension_numbers = #tpu.dot_dimension_numbers<[1], [0], [0], [1], [0, 0, 1, 1], [], []>} : vector<8x8xbf16>, vector<8x8xbf16>, vector<8x8xf32> -> vector<8x8xf32>
    %58 = vector.extract_strided_slice %17 {offsets = [0, 16], sizes = [8, 8], strides = [1, 1]} : vector<8x32xbf16> to vector<8x8xbf16>
    %59 = vector.extract_strided_slice %18 {offsets = [16, 0], sizes = [8, 8], strides = [1, 1]} : vector<32x8xbf16> to vector<8x8xbf16>
    %cst_25 = arith.constant dense<0.000000e+00> : vector<8x8xf32>
    %60 = tpu.matmul %58, %59, %cst_25 {dimension_numbers = #tpu.dot_dimension_numbers<[1], [0], [0], [1], [0, 0, 1, 1], [], []>} : vector<8x8xbf16>, vector<8x8xbf16>, vector<8x8xf32> -> vector<8x8xf32>
    %61 = vector.broadcast %21 : vector<1x8xf32> to vector<8x8xf32>
    %62 = arith.addf %60, %61 : vector<8x8xf32>
    %cst_26 = arith.constant dense<0xFF800000> : vector<8xf32>
    %63 = vector.multi_reduction <maximumf>, %62, %cst_26 [1] : vector<8x8xf32> to vector<8xf32>
    %64 = vector.shape_cast %63 : vector<8xf32> to vector<8x1xf32>
    %65 = vector.broadcast %64 : vector<8x1xf32> to vector<8x8xf32>
    %66 = arith.subf %62, %65 : vector<8x8xf32>
    %67 = math.exp %66 : vector<8x8xf32>
    %cst_27 = arith.constant dense<0.000000e+00> : vector<8xf32>
    %68 = vector.multi_reduction <add>, %67, %cst_27 [1] : vector<8x8xf32> to vector<8xf32>
    %69 = vector.shape_cast %68 : vector<8xf32> to vector<8x1xf32>
    %70 = tpu.reciprocal %69 {approx = true} : vector<8x1xf32> -> vector<8x1xf32>
    %71 = vector.broadcast %70 : vector<8x1xf32> to vector<8x8xf32>
    %72 = arith.mulf %67, %71 : vector<8x8xf32>
    %73 = arith.truncf %72 : vector<8x8xf32> to vector<8x8xbf16>
    %74 = vector.extract_strided_slice %19 {offsets = [0, 16], sizes = [8, 8], strides = [1, 1]} : vector<8x32xbf16> to vector<8x8xbf16>
    %cst_28 = arith.constant dense<0.000000e+00> : vector<8x8xf32>
    %75 = tpu.matmul %73, %74, %cst_28 {dimension_numbers = #tpu.dot_dimension_numbers<[1], [0], [0], [1], [0, 0, 1, 1], [], []>} : vector<8x8xbf16>, vector<8x8xbf16>, vector<8x8xf32> -> vector<8x8xf32>
    %76 = vector.extract_strided_slice %17 {offsets = [0, 24], sizes = [8, 8], strides = [1, 1]} : vector<8x32xbf16> to vector<8x8xbf16>
    %77 = vector.extract_strided_slice %18 {offsets = [24, 0], sizes = [8, 8], strides = [1, 1]} : vector<32x8xbf16> to vector<8x8xbf16>
    %cst_29 = arith.constant dense<0.000000e+00> : vector<8x8xf32>
    %78 = tpu.matmul %76, %77, %cst_29 {dimension_numbers = #tpu.dot_dimension_numbers<[1], [0], [0], [1], [0, 0, 1, 1], [], []>} : vector<8x8xbf16>, vector<8x8xbf16>, vector<8x8xf32> -> vector<8x8xf32>
    %79 = vector.broadcast %21 : vector<1x8xf32> to vector<8x8xf32>
    %80 = arith.addf %78, %79 : vector<8x8xf32>
    %cst_30 = arith.constant dense<0xFF800000> : vector<8xf32>
    %81 = vector.multi_reduction <maximumf>, %80, %cst_30 [1] : vector<8x8xf32> to vector<8xf32>
    %82 = vector.shape_cast %81 : vector<8xf32> to vector<8x1xf32>
    %83 = vector.broadcast %82 : vector<8x1xf32> to vector<8x8xf32>
    %84 = arith.subf %80, %83 : vector<8x8xf32>
    %85 = math.exp %84 : vector<8x8xf32>
    %cst_31 = arith.constant dense<0.000000e+00> : vector<8xf32>
    %86 = vector.multi_reduction <add>, %85, %cst_31 [1] : vector<8x8xf32> to vector<8xf32>
    %87 = vector.shape_cast %86 : vector<8xf32> to vector<8x1xf32>
    %88 = tpu.reciprocal %87 {approx = true} : vector<8x1xf32> -> vector<8x1xf32>
    %89 = vector.broadcast %88 : vector<8x1xf32> to vector<8x8xf32>
    %90 = arith.mulf %85, %89 : vector<8x8xf32>
    %91 = arith.truncf %90 : vector<8x8xf32> to vector<8x8xbf16>
    %92 = vector.extract_strided_slice %19 {offsets = [0, 24], sizes = [8, 8], strides = [1, 1]} : vector<8x32xbf16> to vector<8x8xbf16>
    %cst_32 = arith.constant dense<0.000000e+00> : vector<8x8xf32>
    %93 = tpu.matmul %91, %92, %cst_32 {dimension_numbers = #tpu.dot_dimension_numbers<[1], [0], [0], [1], [0, 0, 1, 1], [], []>} : vector<8x8xbf16>, vector<8x8xbf16>, vector<8x8xf32> -> vector<8x8xf32>
    %94 = tpu.concatenate %39, %57, %75, %93 in 1 : vector<8x8xf32>, vector<8x8xf32>, vector<8x8xf32>, vector<8x8xf32> -> vector<8x32xf32>
    %95 = arith.truncf %94 : vector<8x32xf32> to vector<8x32xbf16>
    %c0_33 = arith.constant 0 : index
    %c0_34 = arith.constant 0 : index
    %96 = vector.load %arg9[%c0_33, %c0_34] : memref<32x32xbf16, #tpu.memory_space<vmem>>, vector<32x32xbf16>
    %cst_35 = arith.constant dense<0.000000e+00> : vector<8x32xf32>
    %97 = tpu.matmul %95, %96, %cst_35 {dimension_numbers = #tpu.dot_dimension_numbers<[1], [0], [0], [1], [0, 0, 1, 1], [], []>} : vector<8x32xbf16>, vector<32x32xbf16>, vector<8x32xf32> -> vector<8x32xf32>
    %c0_36 = arith.constant 0 : index
    %c0_37 = arith.constant 0 : index
    %98 = vector.load %arg10[%c0_36, %c0_37] : memref<1x32xf32, #tpu.memory_space<vmem>>, vector<1x32xf32>
    %99 = vector.broadcast %98 : vector<1x32xf32> to vector<8x32xf32>
    %100 = arith.addf %97, %99 : vector<8x32xf32>
    %101 = arith.extf %1 : vector<8x32xbf16> to vector<8x32xf32>
    %102 = arith.addf %101, %100 : vector<8x32xf32>
    %c0_38 = arith.constant 0 : index
    %c0_39 = arith.constant 0 : index
    %103 = vector.load %arg11[%c0_38, %c0_39] : memref<1x32xf32, #tpu.memory_space<vmem>>, vector<1x32xf32>
    %c0_40 = arith.constant 0 : index
    %c0_41 = arith.constant 0 : index
    %104 = vector.load %arg12[%c0_40, %c0_41] : memref<1x32xf32, #tpu.memory_space<vmem>>, vector<1x32xf32>
    %cst_42 = arith.constant dense<0.000000e+00> : vector<8xf32>
    %105 = vector.multi_reduction <add>, %102, %cst_42 [1] : vector<8x32xf32> to vector<8xf32>
    %106 = vector.shape_cast %105 : vector<8xf32> to vector<8x1xf32>
    %cst_43 = arith.constant 3.200000e+01 : f32
    %107 = vector.broadcast %cst_43 : f32 to vector<8x1xf32>
    %108 = arith.divf %106, %107 : vector<8x1xf32>
    %109 = vector.broadcast %108 : vector<8x1xf32> to vector<8x32xf32>
    %110 = arith.subf %102, %109 : vector<8x32xf32>
    %111 = arith.mulf %110, %110 : vector<8x32xf32>
    %cst_44 = arith.constant dense<0.000000e+00> : vector<8xf32>
    %112 = vector.multi_reduction <add>, %111, %cst_44 [1] : vector<8x32xf32> to vector<8xf32>
    %113 = vector.shape_cast %112 : vector<8xf32> to vector<8x1xf32>
    %cst_45 = arith.constant 3.200000e+01 : f32
    %114 = vector.broadcast %cst_45 : f32 to vector<8x1xf32>
    %115 = arith.divf %113, %114 : vector<8x1xf32>
    %116 = vector.broadcast %108 : vector<8x1xf32> to vector<8x32xf32>
    %117 = arith.subf %102, %116 : vector<8x32xf32>
    %cst_46 = arith.constant 9.99999974E-6 : f32
    %118 = vector.broadcast %cst_46 : f32 to vector<8x1xf32>
    %119 = arith.addf %115, %118 : vector<8x1xf32>
    %120 = math.rsqrt %119 : vector<8x1xf32>
    %121 = vector.broadcast %120 : vector<8x1xf32> to vector<8x32xf32>
    %122 = arith.mulf %117, %121 : vector<8x32xf32>
    %123 = vector.broadcast %103 : vector<1x32xf32> to vector<8x32xf32>
    %124 = arith.mulf %122, %123 : vector<8x32xf32>
    %125 = vector.broadcast %104 : vector<1x32xf32> to vector<8x32xf32>
    %126 = arith.addf %124, %125 : vector<8x32xf32>
    %127 = arith.truncf %126 : vector<8x32xf32> to vector<8x32xbf16>
    %c0_47 = arith.constant 0 : index
    %c0_48 = arith.constant 0 : index
    %c0_49 = arith.constant 0 : index
    %128 = vector.load %arg13[%c0_47, %c0_48, %c0_49] : memref<1x8x32xbf16, #tpu.memory_space<vmem>>, vector<1x8x32xbf16>
    %129 = vector.shape_cast %128 : vector<1x8x32xbf16> to vector<8x32xbf16>
    %130 = vector.shape_cast %127 : vector<8x32xbf16> to vector<1x8x32xbf16>
    tpu.vector_store %arg13[%c0_47, %c0_48, %c0_49], %130 {strides = array<i32>} : memref<1x8x32xbf16, #tpu.memory_space<vmem>>, vector<1x8x32xbf16>,
    return
  }
  func.func @transform_0(%arg0: i32, %arg1: i32) -> (i32, i32, i32) {
    %c0_i32 = arith.constant 0 : i32
    %c0_i32_0 = arith.constant 0 : i32
    return %arg0, %arg1, %c0_i32 : i32, i32, i32
  }
  func.func @transform_1(%arg0: i32, %arg1: i32) -> (i32, i32, i32) {
    %c0_i32 = arith.constant 0 : i32
    %c0_i32_0 = arith.constant 0 : i32
    %c0_i32_1 = arith.constant 0 : i32
    return %arg0, %c0_i32, %c0_i32_0 : i32, i32, i32
  }
  func.func @transform_2(%arg0: i32, %arg1: i32) -> (i32, i32, i32) {
    %c0_i32 = arith.constant 0 : i32
    %c0_i32_0 = arith.constant 0 : i32
    %c0_i32_1 = arith.constant 0 : i32
    return %arg0, %c0_i32, %c0_i32_0 : i32, i32, i32
  }
  func.func @transform_3(%arg0: i32, %arg1: i32) -> (i32, i32) {
    %c0_i32 = arith.constant 0 : i32
    %c0_i32_0 = arith.constant 0 : i32
    %c0_i32_1 = arith.constant 0 : i32
    return %c0_i32, %c0_i32_0 : i32, i32
  }
  func.func @transform_4(%arg0: i32, %arg1: i32) -> (i32, i32) {
    %c0_i32 = arith.constant 0 : i32
    %c0_i32_0 = arith.constant 0 : i32
    %c0_i32_1 = arith.constant 0 : i32
    return %c0_i32, %c0_i32_0 : i32, i32
  }
  func.func @transform_5(%arg0: i32, %arg1: i32) -> (i32, i32) {
    %c0_i32 = arith.constant 0 : i32
    %c0_i32_0 = arith.constant 0 : i32
    %c0_i32_1 = arith.constant 0 : i32
    return %c0_i32, %c0_i32_0 : i32, i32
  }
  func.func @transform_6(%arg0: i32, %arg1: i32) -> (i32, i32) {
    %c0_i32 = arith.constant 0 : i32
    %c0_i32_0 = arith.constant 0 : i32
    %c0_i32_1 = arith.constant 0 : i32
    return %c0_i32, %c0_i32_0 : i32, i32
  }
  func.func @transform_7(%arg0: i32, %arg1: i32) -> (i32, i32) {
    %c0_i32 = arith.constant 0 : i32
    %c0_i32_0 = arith.constant 0 : i32
    %c0_i32_1 = arith.constant 0 : i32
    return %c0_i32, %c0_i32_0 : i32, i32
  }
  func.func @transform_8(%arg0: i32, %arg1: i32) -> (i32, i32) {
    %c0_i32 = arith.constant 0 : i32
    %c0_i32_0 = arith.constant 0 : i32
    %c0_i32_1 = arith.constant 0 : i32
    return %c0_i32, %c0_i32_0 : i32, i32
  }
  func.func @transform_9(%arg0: i32, %arg1: i32) -> (i32, i32) {
    %c0_i32 = arith.constant 0 : i32
    %c0_i32_0 = arith.constant 0 : i32
    %c0_i32_1 = arith.constant 0 : i32
    return %c0_i32, %c0_i32_0 : i32, i32
  }
  func.func @transform_10(%arg0: i32, %arg1: i32) -> (i32, i32) {
    %c0_i32 = arith.constant 0 : i32
    %c0_i32_0 = arith.constant 0 : i32
    %c0_i32_1 = arith.constant 0 : i32
    return %c0_i32, %c0_i32_0 : i32, i32
  }
  func.func @transform_11(%arg0: i32, %arg1: i32) -> (i32, i32, i32) {
    %c0_i32 = arith.constant 0 : i32
    %c0_i32_0 = arith.constant 0 : i32
    return %arg0, %arg1, %c0_i32 : i32, i32, i32
  }
}

module attributes {stable_mosaic.version = 11 : i64} {
  func.func @_mha_ln_kernel(%arg0: i32, %arg1: i32, %arg2: memref<1x8x32xbf16, #tpu.memory_space<vmem>>, %arg3: memref<1x8x32xbf16, #tpu.memory_space<vmem>>, %arg4: memref<32x32xbf16, #tpu.memory_space<vmem>>, %arg5: memref<1x32xf32, #tpu.memory_space<vmem>>, %arg6: memref<32x64xbf16, #tpu.memory_space<vmem>>, %arg7: memref<1x64xf32, #tpu.memory_space<vmem>>, %arg8: memref<32x32xbf16, #tpu.memory_space<vmem>>, %arg9: memref<1x32xf32, #tpu.memory_space<vmem>>, %arg10: memref<1x32xf32, #tpu.memory_space<vmem>>, %arg11: memref<1x32xf32, #tpu.memory_space<vmem>>, %arg12: memref<1x8x32xbf16, #tpu.memory_space<vmem>>) attributes {dimension_semantics = [#tpu.dimension_semantics<parallel>, #tpu.dimension_semantics<parallel>], iteration_bounds = array<i64: 2, 1>, scalar_prefetch = 0 : i64, scratch_operands = 0 : i64, tpu.core_type = #tpu.core_type<tc>, window_params = [{transform_indices = @transform_0, window_bounds = array<i64: 1, 8, 32>}, {transform_indices = @transform_1, window_bounds = array<i64: 1, 8, 32>}, {pipeline_mode = #tpu.pipeline_mode<synchronous>, transform_indices = @transform_2, window_bounds = array<i64: 32, 32>}, {pipeline_mode = #tpu.pipeline_mode<synchronous>, transform_indices = @transform_3, window_bounds = array<i64: 1, 32>}, {pipeline_mode = #tpu.pipeline_mode<synchronous>, transform_indices = @transform_4, window_bounds = array<i64: 32, 64>}, {pipeline_mode = #tpu.pipeline_mode<synchronous>, transform_indices = @transform_5, window_bounds = array<i64: 1, 64>}, {pipeline_mode = #tpu.pipeline_mode<synchronous>, transform_indices = @transform_6, window_bounds = array<i64: 32, 32>}, {pipeline_mode = #tpu.pipeline_mode<synchronous>, transform_indices = @transform_7, window_bounds = array<i64: 1, 32>}, {pipeline_mode = #tpu.pipeline_mode<synchronous>, transform_indices = @transform_8, window_bounds = array<i64: 1, 32>}, {pipeline_mode = #tpu.pipeline_mode<synchronous>, transform_indices = @transform_9, window_bounds = array<i64: 1, 32>}, {transform_indices = @transform_10, window_bounds = array<i64: 1, 8, 32>}]} {
    %c0 = arith.constant 0 : index
    %c0_0 = arith.constant 0 : index
    %c0_1 = arith.constant 0 : index
    %0 = vector.load %arg2[%c0, %c0_0, %c0_1] : memref<1x8x32xbf16, #tpu.memory_space<vmem>>, vector<1x8x32xbf16>
    %1 = vector.shape_cast %0 : vector<1x8x32xbf16> to vector<8x32xbf16>
    %c0_2 = arith.constant 0 : index
    %c0_3 = arith.constant 0 : index
    %c0_4 = arith.constant 0 : index
    %2 = vector.load %arg3[%c0_2, %c0_3, %c0_4] : memref<1x8x32xbf16, #tpu.memory_space<vmem>>, vector<1x8x32xbf16>
    %3 = vector.shape_cast %2 : vector<1x8x32xbf16> to vector<8x32xbf16>
    %c0_5 = arith.constant 0 : index
    %c0_6 = arith.constant 0 : index
    %4 = vector.load %arg4[%c0_5, %c0_6] : memref<32x32xbf16, #tpu.memory_space<vmem>>, vector<32x32xbf16>
    %cst = arith.constant dense<0.000000e+00> : vector<8x32xf32>
    %5 = tpu.matmul %1, %4, %cst {dimension_numbers = #tpu.dot_dimension_numbers<[1], [0], [0], [1], [0, 0, 1, 1], [], []>} : vector<8x32xbf16>, vector<32x32xbf16>, vector<8x32xf32> -> vector<8x32xf32>
    %c0_7 = arith.constant 0 : index
    %c0_8 = arith.constant 0 : index
    %6 = vector.load %arg5[%c0_7, %c0_8] : memref<1x32xf32, #tpu.memory_space<vmem>>, vector<1x32xf32>
    %7 = vector.broadcast %6 : vector<1x32xf32> to vector<8x32xf32>
    %8 = arith.addf %5, %7 : vector<8x32xf32>
    %c0_9 = arith.constant 0 : index
    %c0_10 = arith.constant 0 : index
    %9 = vector.load %arg6[%c0_9, %c0_10] : memref<32x64xbf16, #tpu.memory_space<vmem>>, vector<32x64xbf16>
    %cst_11 = arith.constant dense<0.000000e+00> : vector<8x64xf32>
    %10 = tpu.matmul %3, %9, %cst_11 {dimension_numbers = #tpu.dot_dimension_numbers<[1], [0], [0], [1], [0, 0, 1, 1], [], []>} : vector<8x32xbf16>, vector<32x64xbf16>, vector<8x64xf32> -> vector<8x64xf32>
    %c0_12 = arith.constant 0 : index
    %c0_13 = arith.constant 0 : index
    %11 = vector.load %arg7[%c0_12, %c0_13] : memref<1x64xf32, #tpu.memory_space<vmem>>, vector<1x64xf32>
    %12 = vector.broadcast %11 : vector<1x64xf32> to vector<8x64xf32>
    %13 = arith.addf %10, %12 : vector<8x64xf32>
    %14 = vector.extract_strided_slice %13 {offsets = [0, 0], sizes = [8, 32], strides = [1, 1]} : vector<8x64xf32> to vector<8x32xf32>
    %15 = vector.extract_strided_slice %13 {offsets = [0, 32], sizes = [8, 32], strides = [1, 1]} : vector<8x64xf32> to vector<8x32xf32>
    %16 = tpu.transpose %14, [1, 0] : vector<8x32xf32> -> vector<32x8xf32>
    %17 = arith.truncf %8 : vector<8x32xf32> to vector<8x32xbf16>
    %18 = arith.truncf %16 : vector<32x8xf32> to vector<32x8xbf16>
    %19 = arith.truncf %15 : vector<8x32xf32> to vector<8x32xbf16>
    %20 = vector.extract_strided_slice %17 {offsets = [0, 0], sizes = [8, 8], strides = [1, 1]} : vector<8x32xbf16> to vector<8x8xbf16>
    %21 = vector.extract_strided_slice %18 {offsets = [0, 0], sizes = [8, 8], strides = [1, 1]} : vector<32x8xbf16> to vector<8x8xbf16>
    %cst_14 = arith.constant dense<0.000000e+00> : vector<8x8xf32>
    %22 = tpu.matmul %20, %21, %cst_14 {dimension_numbers = #tpu.dot_dimension_numbers<[1], [0], [0], [1], [0, 0, 1, 1], [], []>} : vector<8x8xbf16>, vector<8x8xbf16>, vector<8x8xf32> -> vector<8x8xf32>
    %cst_15 = arith.constant dense<0xFF800000> : vector<8xf32>
    %23 = vector.multi_reduction <maximumf>, %22, %cst_15 [1] : vector<8x8xf32> to vector<8xf32>
    %24 = vector.shape_cast %23 : vector<8xf32> to vector<8x1xf32>
    %25 = vector.broadcast %24 : vector<8x1xf32> to vector<8x8xf32>
    %26 = arith.subf %22, %25 : vector<8x8xf32>
    %27 = math.exp %26 : vector<8x8xf32>
    %cst_16 = arith.constant dense<0.000000e+00> : vector<8xf32>
    %28 = vector.multi_reduction <add>, %27, %cst_16 [1] : vector<8x8xf32> to vector<8xf32>
    %29 = vector.shape_cast %28 : vector<8xf32> to vector<8x1xf32>
    %30 = tpu.reciprocal %29 {approx = true} : vector<8x1xf32> -> vector<8x1xf32>
    %31 = vector.broadcast %30 : vector<8x1xf32> to vector<8x8xf32>
    %32 = arith.mulf %27, %31 : vector<8x8xf32>
    %33 = arith.truncf %32 : vector<8x8xf32> to vector<8x8xbf16>
    %34 = vector.extract_strided_slice %19 {offsets = [0, 0], sizes = [8, 8], strides = [1, 1]} : vector<8x32xbf16> to vector<8x8xbf16>
    %cst_17 = arith.constant dense<0.000000e+00> : vector<8x8xf32>
    %35 = tpu.matmul %33, %34, %cst_17 {dimension_numbers = #tpu.dot_dimension_numbers<[1], [0], [0], [1], [0, 0, 1, 1], [], []>} : vector<8x8xbf16>, vector<8x8xbf16>, vector<8x8xf32> -> vector<8x8xf32>
    %36 = vector.extract_strided_slice %17 {offsets = [0, 8], sizes = [8, 8], strides = [1, 1]} : vector<8x32xbf16> to vector<8x8xbf16>
    %37 = vector.extract_strided_slice %18 {offsets = [8, 0], sizes = [8, 8], strides = [1, 1]} : vector<32x8xbf16> to vector<8x8xbf16>
    %cst_18 = arith.constant dense<0.000000e+00> : vector<8x8xf32>
    %38 = tpu.matmul %36, %37, %cst_18 {dimension_numbers = #tpu.dot_dimension_numbers<[1], [0], [0], [1], [0, 0, 1, 1], [], []>} : vector<8x8xbf16>, vector<8x8xbf16>, vector<8x8xf32> -> vector<8x8xf32>
    %cst_19 = arith.constant dense<0xFF800000> : vector<8xf32>
    %39 = vector.multi_reduction <maximumf>, %38, %cst_19 [1] : vector<8x8xf32> to vector<8xf32>
    %40 = vector.shape_cast %39 : vector<8xf32> to vector<8x1xf32>
    %41 = vector.broadcast %40 : vector<8x1xf32> to vector<8x8xf32>
    %42 = arith.subf %38, %41 : vector<8x8xf32>
    %43 = math.exp %42 : vector<8x8xf32>
    %cst_20 = arith.constant dense<0.000000e+00> : vector<8xf32>
    %44 = vector.multi_reduction <add>, %43, %cst_20 [1] : vector<8x8xf32> to vector<8xf32>
    %45 = vector.shape_cast %44 : vector<8xf32> to vector<8x1xf32>
    %46 = tpu.reciprocal %45 {approx = true} : vector<8x1xf32> -> vector<8x1xf32>
    %47 = vector.broadcast %46 : vector<8x1xf32> to vector<8x8xf32>
    %48 = arith.mulf %43, %47 : vector<8x8xf32>
    %49 = arith.truncf %48 : vector<8x8xf32> to vector<8x8xbf16>
    %50 = vector.extract_strided_slice %19 {offsets = [0, 8], sizes = [8, 8], strides = [1, 1]} : vector<8x32xbf16> to vector<8x8xbf16>
    %cst_21 = arith.constant dense<0.000000e+00> : vector<8x8xf32>
    %51 = tpu.matmul %49, %50, %cst_21 {dimension_numbers = #tpu.dot_dimension_numbers<[1], [0], [0], [1], [0, 0, 1, 1], [], []>} : vector<8x8xbf16>, vector<8x8xbf16>, vector<8x8xf32> -> vector<8x8xf32>
    %52 = vector.extract_strided_slice %17 {offsets = [0, 16], sizes = [8, 8], strides = [1, 1]} : vector<8x32xbf16> to vector<8x8xbf16>
    %53 = vector.extract_strided_slice %18 {offsets = [16, 0], sizes = [8, 8], strides = [1, 1]} : vector<32x8xbf16> to vector<8x8xbf16>
    %cst_22 = arith.constant dense<0.000000e+00> : vector<8x8xf32>
    %54 = tpu.matmul %52, %53, %cst_22 {dimension_numbers = #tpu.dot_dimension_numbers<[1], [0], [0], [1], [0, 0, 1, 1], [], []>} : vector<8x8xbf16>, vector<8x8xbf16>, vector<8x8xf32> -> vector<8x8xf32>
    %cst_23 = arith.constant dense<0xFF800000> : vector<8xf32>
    %55 = vector.multi_reduction <maximumf>, %54, %cst_23 [1] : vector<8x8xf32> to vector<8xf32>
    %56 = vector.shape_cast %55 : vector<8xf32> to vector<8x1xf32>
    %57 = vector.broadcast %56 : vector<8x1xf32> to vector<8x8xf32>
    %58 = arith.subf %54, %57 : vector<8x8xf32>
    %59 = math.exp %58 : vector<8x8xf32>
    %cst_24 = arith.constant dense<0.000000e+00> : vector<8xf32>
    %60 = vector.multi_reduction <add>, %59, %cst_24 [1] : vector<8x8xf32> to vector<8xf32>
    %61 = vector.shape_cast %60 : vector<8xf32> to vector<8x1xf32>
    %62 = tpu.reciprocal %61 {approx = true} : vector<8x1xf32> -> vector<8x1xf32>
    %63 = vector.broadcast %62 : vector<8x1xf32> to vector<8x8xf32>
    %64 = arith.mulf %59, %63 : vector<8x8xf32>
    %65 = arith.truncf %64 : vector<8x8xf32> to vector<8x8xbf16>
    %66 = vector.extract_strided_slice %19 {offsets = [0, 16], sizes = [8, 8], strides = [1, 1]} : vector<8x32xbf16> to vector<8x8xbf16>
    %cst_25 = arith.constant dense<0.000000e+00> : vector<8x8xf32>
    %67 = tpu.matmul %65, %66, %cst_25 {dimension_numbers = #tpu.dot_dimension_numbers<[1], [0], [0], [1], [0, 0, 1, 1], [], []>} : vector<8x8xbf16>, vector<8x8xbf16>, vector<8x8xf32> -> vector<8x8xf32>
    %68 = vector.extract_strided_slice %17 {offsets = [0, 24], sizes = [8, 8], strides = [1, 1]} : vector<8x32xbf16> to vector<8x8xbf16>
    %69 = vector.extract_strided_slice %18 {offsets = [24, 0], sizes = [8, 8], strides = [1, 1]} : vector<32x8xbf16> to vector<8x8xbf16>
    %cst_26 = arith.constant dense<0.000000e+00> : vector<8x8xf32>
    %70 = tpu.matmul %68, %69, %cst_26 {dimension_numbers = #tpu.dot_dimension_numbers<[1], [0], [0], [1], [0, 0, 1, 1], [], []>} : vector<8x8xbf16>, vector<8x8xbf16>, vector<8x8xf32> -> vector<8x8xf32>
    %cst_27 = arith.constant dense<0xFF800000> : vector<8xf32>
    %71 = vector.multi_reduction <maximumf>, %70, %cst_27 [1] : vector<8x8xf32> to vector<8xf32>
    %72 = vector.shape_cast %71 : vector<8xf32> to vector<8x1xf32>
    %73 = vector.broadcast %72 : vector<8x1xf32> to vector<8x8xf32>
    %74 = arith.subf %70, %73 : vector<8x8xf32>
    %75 = math.exp %74 : vector<8x8xf32>
    %cst_28 = arith.constant dense<0.000000e+00> : vector<8xf32>
    %76 = vector.multi_reduction <add>, %75, %cst_28 [1] : vector<8x8xf32> to vector<8xf32>
    %77 = vector.shape_cast %76 : vector<8xf32> to vector<8x1xf32>
    %78 = tpu.reciprocal %77 {approx = true} : vector<8x1xf32> -> vector<8x1xf32>
    %79 = vector.broadcast %78 : vector<8x1xf32> to vector<8x8xf32>
    %80 = arith.mulf %75, %79 : vector<8x8xf32>
    %81 = arith.truncf %80 : vector<8x8xf32> to vector<8x8xbf16>
    %82 = vector.extract_strided_slice %19 {offsets = [0, 24], sizes = [8, 8], strides = [1, 1]} : vector<8x32xbf16> to vector<8x8xbf16>
    %cst_29 = arith.constant dense<0.000000e+00> : vector<8x8xf32>
    %83 = tpu.matmul %81, %82, %cst_29 {dimension_numbers = #tpu.dot_dimension_numbers<[1], [0], [0], [1], [0, 0, 1, 1], [], []>} : vector<8x8xbf16>, vector<8x8xbf16>, vector<8x8xf32> -> vector<8x8xf32>
    %84 = tpu.concatenate %35, %51, %67, %83 in 1 : vector<8x8xf32>, vector<8x8xf32>, vector<8x8xf32>, vector<8x8xf32> -> vector<8x32xf32>
    %85 = arith.truncf %84 : vector<8x32xf32> to vector<8x32xbf16>
    %c0_30 = arith.constant 0 : index
    %c0_31 = arith.constant 0 : index
    %86 = vector.load %arg8[%c0_30, %c0_31] : memref<32x32xbf16, #tpu.memory_space<vmem>>, vector<32x32xbf16>
    %cst_32 = arith.constant dense<0.000000e+00> : vector<8x32xf32>
    %87 = tpu.matmul %85, %86, %cst_32 {dimension_numbers = #tpu.dot_dimension_numbers<[1], [0], [0], [1], [0, 0, 1, 1], [], []>} : vector<8x32xbf16>, vector<32x32xbf16>, vector<8x32xf32> -> vector<8x32xf32>
    %c0_33 = arith.constant 0 : index
    %c0_34 = arith.constant 0 : index
    %88 = vector.load %arg9[%c0_33, %c0_34] : memref<1x32xf32, #tpu.memory_space<vmem>>, vector<1x32xf32>
    %89 = vector.broadcast %88 : vector<1x32xf32> to vector<8x32xf32>
    %90 = arith.addf %87, %89 : vector<8x32xf32>
    %91 = arith.extf %1 : vector<8x32xbf16> to vector<8x32xf32>
    %92 = arith.addf %91, %90 : vector<8x32xf32>
    %c0_35 = arith.constant 0 : index
    %c0_36 = arith.constant 0 : index
    %93 = vector.load %arg10[%c0_35, %c0_36] : memref<1x32xf32, #tpu.memory_space<vmem>>, vector<1x32xf32>
    %c0_37 = arith.constant 0 : index
    %c0_38 = arith.constant 0 : index
    %94 = vector.load %arg11[%c0_37, %c0_38] : memref<1x32xf32, #tpu.memory_space<vmem>>, vector<1x32xf32>
    %cst_39 = arith.constant dense<0.000000e+00> : vector<8xf32>
    %95 = vector.multi_reduction <add>, %92, %cst_39 [1] : vector<8x32xf32> to vector<8xf32>
    %96 = vector.shape_cast %95 : vector<8xf32> to vector<8x1xf32>
    %cst_40 = arith.constant 3.200000e+01 : f32
    %97 = vector.broadcast %cst_40 : f32 to vector<8x1xf32>
    %98 = arith.divf %96, %97 : vector<8x1xf32>
    %99 = vector.broadcast %98 : vector<8x1xf32> to vector<8x32xf32>
    %100 = arith.subf %92, %99 : vector<8x32xf32>
    %101 = arith.mulf %100, %100 : vector<8x32xf32>
    %cst_41 = arith.constant dense<0.000000e+00> : vector<8xf32>
    %102 = vector.multi_reduction <add>, %101, %cst_41 [1] : vector<8x32xf32> to vector<8xf32>
    %103 = vector.shape_cast %102 : vector<8xf32> to vector<8x1xf32>
    %cst_42 = arith.constant 3.200000e+01 : f32
    %104 = vector.broadcast %cst_42 : f32 to vector<8x1xf32>
    %105 = arith.divf %103, %104 : vector<8x1xf32>
    %106 = vector.broadcast %98 : vector<8x1xf32> to vector<8x32xf32>
    %107 = arith.subf %92, %106 : vector<8x32xf32>
    %cst_43 = arith.constant 9.99999974E-6 : f32
    %108 = vector.broadcast %cst_43 : f32 to vector<8x1xf32>
    %109 = arith.addf %105, %108 : vector<8x1xf32>
    %110 = math.rsqrt %109 : vector<8x1xf32>
    %111 = vector.broadcast %110 : vector<8x1xf32> to vector<8x32xf32>
    %112 = arith.mulf %107, %111 : vector<8x32xf32>
    %113 = vector.broadcast %93 : vector<1x32xf32> to vector<8x32xf32>
    %114 = arith.mulf %112, %113 : vector<8x32xf32>
    %115 = vector.broadcast %94 : vector<1x32xf32> to vector<8x32xf32>
    %116 = arith.addf %114, %115 : vector<8x32xf32>
    %117 = arith.truncf %116 : vector<8x32xf32> to vector<8x32xbf16>
    %c0_44 = arith.constant 0 : index
    %c0_45 = arith.constant 0 : index
    %c0_46 = arith.constant 0 : index
    %118 = vector.load %arg12[%c0_44, %c0_45, %c0_46] : memref<1x8x32xbf16, #tpu.memory_space<vmem>>, vector<1x8x32xbf16>
    %119 = vector.shape_cast %118 : vector<1x8x32xbf16> to vector<8x32xbf16>
    %120 = vector.shape_cast %117 : vector<8x32xbf16> to vector<1x8x32xbf16>
    tpu.vector_store %arg12[%c0_44, %c0_45, %c0_46], %120 {strides = array<i32>} : memref<1x8x32xbf16, #tpu.memory_space<vmem>>, vector<1x8x32xbf16>,
    return
  }
  func.func @transform_0(%arg0: i32, %arg1: i32) -> (i32, i32, i32) {
    %c0_i32 = arith.constant 0 : i32
    %c0_i32_0 = arith.constant 0 : i32
    return %arg0, %arg1, %c0_i32 : i32, i32, i32
  }
  func.func @transform_1(%arg0: i32, %arg1: i32) -> (i32, i32, i32) {
    %c0_i32 = arith.constant 0 : i32
    %c0_i32_0 = arith.constant 0 : i32
    %c0_i32_1 = arith.constant 0 : i32
    return %arg0, %c0_i32, %c0_i32_0 : i32, i32, i32
  }
  func.func @transform_2(%arg0: i32, %arg1: i32) -> (i32, i32) {
    %c0_i32 = arith.constant 0 : i32
    %c0_i32_0 = arith.constant 0 : i32
    %c0_i32_1 = arith.constant 0 : i32
    return %c0_i32, %c0_i32_0 : i32, i32
  }
  func.func @transform_3(%arg0: i32, %arg1: i32) -> (i32, i32) {
    %c0_i32 = arith.constant 0 : i32
    %c0_i32_0 = arith.constant 0 : i32
    %c0_i32_1 = arith.constant 0 : i32
    return %c0_i32, %c0_i32_0 : i32, i32
  }
  func.func @transform_4(%arg0: i32, %arg1: i32) -> (i32, i32) {
    %c0_i32 = arith.constant 0 : i32
    %c0_i32_0 = arith.constant 0 : i32
    %c0_i32_1 = arith.constant 0 : i32
    return %c0_i32, %c0_i32_0 : i32, i32
  }
  func.func @transform_5(%arg0: i32, %arg1: i32) -> (i32, i32) {
    %c0_i32 = arith.constant 0 : i32
    %c0_i32_0 = arith.constant 0 : i32
    %c0_i32_1 = arith.constant 0 : i32
    return %c0_i32, %c0_i32_0 : i32, i32
  }
  func.func @transform_6(%arg0: i32, %arg1: i32) -> (i32, i32) {
    %c0_i32 = arith.constant 0 : i32
    %c0_i32_0 = arith.constant 0 : i32
    %c0_i32_1 = arith.constant 0 : i32
    return %c0_i32, %c0_i32_0 : i32, i32
  }
  func.func @transform_7(%arg0: i32, %arg1: i32) -> (i32, i32) {
    %c0_i32 = arith.constant 0 : i32
    %c0_i32_0 = arith.constant 0 : i32
    %c0_i32_1 = arith.constant 0 : i32
    return %c0_i32, %c0_i32_0 : i32, i32
  }
  func.func @transform_8(%arg0: i32, %arg1: i32) -> (i32, i32) {
    %c0_i32 = arith.constant 0 : i32
    %c0_i32_0 = arith.constant 0 : i32
    %c0_i32_1 = arith.constant 0 : i32
    return %c0_i32, %c0_i32_0 : i32, i32
  }
  func.func @transform_9(%arg0: i32, %arg1: i32) -> (i32, i32) {
    %c0_i32 = arith.constant 0 : i32
    %c0_i32_0 = arith.constant 0 : i32
    %c0_i32_1 = arith.constant 0 : i32
    return %c0_i32, %c0_i32_0 : i32, i32
  }
  func.func @transform_10(%arg0: i32, %arg1: i32) -> (i32, i32, i32) {
    %c0_i32 = arith.constant 0 : i32
    %c0_i32_0 = arith.constant 0 : i32
    return %arg0, %arg1, %c0_i32 : i32, i32, i32
  }
}

module attributes {stable_mosaic.version = 11 : i64} {
  func.func @_ffn_ln_kernel(%arg0: i32, %arg1: memref<16x32xbf16, #tpu.memory_space<vmem>>, %arg2: memref<32x128xbf16, #tpu.memory_space<vmem>>, %arg3: memref<1x128xf32, #tpu.memory_space<vmem>>, %arg4: memref<128x32xbf16, #tpu.memory_space<vmem>>, %arg5: memref<1x32xf32, #tpu.memory_space<vmem>>, %arg6: memref<1x32xf32, #tpu.memory_space<vmem>>, %arg7: memref<1x32xf32, #tpu.memory_space<vmem>>, %arg8: memref<1x32xf32, #tpu.memory_space<vmem>>, %arg9: memref<1x32xf32, #tpu.memory_space<vmem>>, %arg10: memref<16x32xbf16, #tpu.memory_space<vmem>>) attributes {dimension_semantics = [#tpu.dimension_semantics<parallel>], iteration_bounds = array<i64: 1>, scalar_prefetch = 0 : i64, scratch_operands = 0 : i64, tpu.core_type = #tpu.core_type<tc>, window_params = [{transform_indices = @transform_0, window_bounds = array<i64: 16, 32>}, {pipeline_mode = #tpu.pipeline_mode<synchronous>, transform_indices = @transform_1, window_bounds = array<i64: 32, 128>}, {pipeline_mode = #tpu.pipeline_mode<synchronous>, transform_indices = @transform_2, window_bounds = array<i64: 1, 128>}, {pipeline_mode = #tpu.pipeline_mode<synchronous>, transform_indices = @transform_3, window_bounds = array<i64: 128, 32>}, {pipeline_mode = #tpu.pipeline_mode<synchronous>, transform_indices = @transform_4, window_bounds = array<i64: 1, 32>}, {pipeline_mode = #tpu.pipeline_mode<synchronous>, transform_indices = @transform_5, window_bounds = array<i64: 1, 32>}, {pipeline_mode = #tpu.pipeline_mode<synchronous>, transform_indices = @transform_6, window_bounds = array<i64: 1, 32>}, {pipeline_mode = #tpu.pipeline_mode<synchronous>, transform_indices = @transform_7, window_bounds = array<i64: 1, 32>}, {pipeline_mode = #tpu.pipeline_mode<synchronous>, transform_indices = @transform_8, window_bounds = array<i64: 1, 32>}, {transform_indices = @transform_9, window_bounds = array<i64: 16, 32>}]} {
    %c0 = arith.constant 0 : index
    %c0_0 = arith.constant 0 : index
    %0 = vector.load %arg1[%c0, %c0_0] : memref<16x32xbf16, #tpu.memory_space<vmem>>, vector<16x32xbf16>
    %c0_1 = arith.constant 0 : index
    %c0_2 = arith.constant 0 : index
    %1 = vector.load %arg2[%c0_1, %c0_2] : memref<32x128xbf16, #tpu.memory_space<vmem>>, vector<32x128xbf16>
    %cst = arith.constant dense<0.000000e+00> : vector<16x128xf32>
    %2 = tpu.matmul %0, %1, %cst {dimension_numbers = #tpu.dot_dimension_numbers<[1], [0], [0], [1], [0, 0, 1, 1], [], []>} : vector<16x32xbf16>, vector<32x128xbf16>, vector<16x128xf32> -> vector<16x128xf32>
    %c0_3 = arith.constant 0 : index
    %c0_4 = arith.constant 0 : index
    %3 = vector.load %arg3[%c0_3, %c0_4] : memref<1x128xf32, #tpu.memory_space<vmem>>, vector<1x128xf32>
    %4 = vector.broadcast %3 : vector<1x128xf32> to vector<16x128xf32>
    %5 = arith.addf %2, %4 : vector<16x128xf32>
    %cst_5 = arith.constant 0.000000e+00 : f32
    %6 = vector.broadcast %cst_5 : f32 to vector<16x128xf32>
    %7 = arith.maximumf %5, %6 : vector<16x128xf32>
    %8 = arith.truncf %7 : vector<16x128xf32> to vector<16x128xbf16>
    %c0_6 = arith.constant 0 : index
    %c0_7 = arith.constant 0 : index
    %9 = vector.load %arg4[%c0_6, %c0_7] : memref<128x32xbf16, #tpu.memory_space<vmem>>, vector<128x32xbf16>
    %cst_8 = arith.constant dense<0.000000e+00> : vector<16x32xf32>
    %10 = tpu.matmul %8, %9, %cst_8 {dimension_numbers = #tpu.dot_dimension_numbers<[1], [0], [0], [1], [0, 0, 1, 1], [], []>} : vector<16x128xbf16>, vector<128x32xbf16>, vector<16x32xf32> -> vector<16x32xf32>
    %c0_9 = arith.constant 0 : index
    %c0_10 = arith.constant 0 : index
    %11 = vector.load %arg5[%c0_9, %c0_10] : memref<1x32xf32, #tpu.memory_space<vmem>>, vector<1x32xf32>
    %12 = vector.broadcast %11 : vector<1x32xf32> to vector<16x32xf32>
    %13 = arith.addf %10, %12 : vector<16x32xf32>
    %14 = arith.extf %0 : vector<16x32xbf16> to vector<16x32xf32>
    %15 = arith.addf %14, %13 : vector<16x32xf32>
    %c0_11 = arith.constant 0 : index
    %c0_12 = arith.constant 0 : index
    %16 = vector.load %arg6[%c0_11, %c0_12] : memref<1x32xf32, #tpu.memory_space<vmem>>, vector<1x32xf32>
    %c0_13 = arith.constant 0 : index
    %c0_14 = arith.constant 0 : index
    %17 = vector.load %arg7[%c0_13, %c0_14] : memref<1x32xf32, #tpu.memory_space<vmem>>, vector<1x32xf32>
    %cst_15 = arith.constant dense<0.000000e+00> : vector<16xf32>
    %18 = vector.multi_reduction <add>, %15, %cst_15 [1] : vector<16x32xf32> to vector<16xf32>
    %19 = vector.shape_cast %18 : vector<16xf32> to vector<16x1xf32>
    %cst_16 = arith.constant 3.200000e+01 : f32
    %20 = vector.broadcast %cst_16 : f32 to vector<16x1xf32>
    %21 = arith.divf %19, %20 : vector<16x1xf32>
    %22 = vector.broadcast %21 : vector<16x1xf32> to vector<16x32xf32>
    %23 = arith.subf %15, %22 : vector<16x32xf32>
    %24 = arith.mulf %23, %23 : vector<16x32xf32>
    %cst_17 = arith.constant dense<0.000000e+00> : vector<16xf32>
    %25 = vector.multi_reduction <add>, %24, %cst_17 [1] : vector<16x32xf32> to vector<16xf32>
    %26 = vector.shape_cast %25 : vector<16xf32> to vector<16x1xf32>
    %cst_18 = arith.constant 3.200000e+01 : f32
    %27 = vector.broadcast %cst_18 : f32 to vector<16x1xf32>
    %28 = arith.divf %26, %27 : vector<16x1xf32>
    %29 = vector.broadcast %21 : vector<16x1xf32> to vector<16x32xf32>
    %30 = arith.subf %15, %29 : vector<16x32xf32>
    %cst_19 = arith.constant 9.99999974E-6 : f32
    %31 = vector.broadcast %cst_19 : f32 to vector<16x1xf32>
    %32 = arith.addf %28, %31 : vector<16x1xf32>
    %33 = math.rsqrt %32 : vector<16x1xf32>
    %34 = vector.broadcast %33 : vector<16x1xf32> to vector<16x32xf32>
    %35 = arith.mulf %30, %34 : vector<16x32xf32>
    %36 = vector.broadcast %16 : vector<1x32xf32> to vector<16x32xf32>
    %37 = arith.mulf %35, %36 : vector<16x32xf32>
    %38 = vector.broadcast %17 : vector<1x32xf32> to vector<16x32xf32>
    %39 = arith.addf %37, %38 : vector<16x32xf32>
    %c0_20 = arith.constant 0 : index
    %c0_21 = arith.constant 0 : index
    %40 = vector.load %arg8[%c0_20, %c0_21] : memref<1x32xf32, #tpu.memory_space<vmem>>, vector<1x32xf32>
    %c0_22 = arith.constant 0 : index
    %c0_23 = arith.constant 0 : index
    %41 = vector.load %arg9[%c0_22, %c0_23] : memref<1x32xf32, #tpu.memory_space<vmem>>, vector<1x32xf32>
    %cst_24 = arith.constant dense<0.000000e+00> : vector<16xf32>
    %42 = vector.multi_reduction <add>, %39, %cst_24 [1] : vector<16x32xf32> to vector<16xf32>
    %43 = vector.shape_cast %42 : vector<16xf32> to vector<16x1xf32>
    %cst_25 = arith.constant 3.200000e+01 : f32
    %44 = vector.broadcast %cst_25 : f32 to vector<16x1xf32>
    %45 = arith.divf %43, %44 : vector<16x1xf32>
    %46 = vector.broadcast %45 : vector<16x1xf32> to vector<16x32xf32>
    %47 = arith.subf %39, %46 : vector<16x32xf32>
    %48 = arith.mulf %47, %47 : vector<16x32xf32>
    %cst_26 = arith.constant dense<0.000000e+00> : vector<16xf32>
    %49 = vector.multi_reduction <add>, %48, %cst_26 [1] : vector<16x32xf32> to vector<16xf32>
    %50 = vector.shape_cast %49 : vector<16xf32> to vector<16x1xf32>
    %cst_27 = arith.constant 3.200000e+01 : f32
    %51 = vector.broadcast %cst_27 : f32 to vector<16x1xf32>
    %52 = arith.divf %50, %51 : vector<16x1xf32>
    %53 = vector.broadcast %45 : vector<16x1xf32> to vector<16x32xf32>
    %54 = arith.subf %39, %53 : vector<16x32xf32>
    %cst_28 = arith.constant 9.99999974E-6 : f32
    %55 = vector.broadcast %cst_28 : f32 to vector<16x1xf32>
    %56 = arith.addf %52, %55 : vector<16x1xf32>
    %57 = math.rsqrt %56 : vector<16x1xf32>
    %58 = vector.broadcast %57 : vector<16x1xf32> to vector<16x32xf32>
    %59 = arith.mulf %54, %58 : vector<16x32xf32>
    %60 = vector.broadcast %40 : vector<1x32xf32> to vector<16x32xf32>
    %61 = arith.mulf %59, %60 : vector<16x32xf32>
    %62 = vector.broadcast %41 : vector<1x32xf32> to vector<16x32xf32>
    %63 = arith.addf %61, %62 : vector<16x32xf32>
    %64 = arith.truncf %63 : vector<16x32xf32> to vector<16x32xbf16>
    %c0_29 = arith.constant 0 : index
    %c0_30 = arith.constant 0 : index
    %65 = vector.load %arg10[%c0_29, %c0_30] : memref<16x32xbf16, #tpu.memory_space<vmem>>, vector<16x32xbf16>
    tpu.vector_store %arg10[%c0_29, %c0_30], %64 {strides = array<i32>} : memref<16x32xbf16, #tpu.memory_space<vmem>>, vector<16x32xbf16>,
    return
  }
  func.func @transform_0(%arg0: i32) -> (i32, i32) {
    %c0_i32 = arith.constant 0 : i32
    %c0_i32_0 = arith.constant 0 : i32
    return %arg0, %c0_i32 : i32, i32
  }
  func.func @transform_1(%arg0: i32) -> (i32, i32) {
    %c0_i32 = arith.constant 0 : i32
    %c0_i32_0 = arith.constant 0 : i32
    %c0_i32_1 = arith.constant 0 : i32
    return %c0_i32, %c0_i32_0 : i32, i32
  }
  func.func @transform_2(%arg0: i32) -> (i32, i32) {
    %c0_i32 = arith.constant 0 : i32
    %c0_i32_0 = arith.constant 0 : i32
    %c0_i32_1 = arith.constant 0 : i32
    return %c0_i32, %c0_i32_0 : i32, i32
  }
  func.func @transform_3(%arg0: i32) -> (i32, i32) {
    %c0_i32 = arith.constant 0 : i32
    %c0_i32_0 = arith.constant 0 : i32
    %c0_i32_1 = arith.constant 0 : i32
    return %c0_i32, %c0_i32_0 : i32, i32
  }
  func.func @transform_4(%arg0: i32) -> (i32, i32) {
    %c0_i32 = arith.constant 0 : i32
    %c0_i32_0 = arith.constant 0 : i32
    %c0_i32_1 = arith.constant 0 : i32
    return %c0_i32, %c0_i32_0 : i32, i32
  }
  func.func @transform_5(%arg0: i32) -> (i32, i32) {
    %c0_i32 = arith.constant 0 : i32
    %c0_i32_0 = arith.constant 0 : i32
    %c0_i32_1 = arith.constant 0 : i32
    return %c0_i32, %c0_i32_0 : i32, i32
  }
  func.func @transform_6(%arg0: i32) -> (i32, i32) {
    %c0_i32 = arith.constant 0 : i32
    %c0_i32_0 = arith.constant 0 : i32
    %c0_i32_1 = arith.constant 0 : i32
    return %c0_i32, %c0_i32_0 : i32, i32
  }
  func.func @transform_7(%arg0: i32) -> (i32, i32) {
    %c0_i32 = arith.constant 0 : i32
    %c0_i32_0 = arith.constant 0 : i32
    %c0_i32_1 = arith.constant 0 : i32
    return %c0_i32, %c0_i32_0 : i32, i32
  }
  func.func @transform_8(%arg0: i32) -> (i32, i32) {
    %c0_i32 = arith.constant 0 : i32
    %c0_i32_0 = arith.constant 0 : i32
    %c0_i32_1 = arith.constant 0 : i32
    return %c0_i32, %c0_i32_0 : i32, i32
  }
  func.func @transform_9(%arg0: i32) -> (i32, i32) {
    %c0_i32 = arith.constant 0 : i32
    %c0_i32_0 = arith.constant 0 : i32
    return %arg0, %c0_i32 : i32, i32
  }
}

module attributes {stable_mosaic.version = 11 : i64} {
  func.func @_head_kernel(%arg0: i32, %arg1: i32, %arg2: memref<16x32xbf16, #tpu.memory_space<vmem>>, %arg3: memref<1x32xf32, #tpu.memory_space<vmem>>, %arg4: memref<1x32xf32, #tpu.memory_space<vmem>>, %arg5: memref<32x64xbf16, #tpu.memory_space<vmem>>, %arg6: memref<16x64xf32, #tpu.memory_space<vmem>>) attributes {dimension_semantics = [#tpu.dimension_semantics<parallel>, #tpu.dimension_semantics<parallel>], iteration_bounds = array<i64: 1, 1>, scalar_prefetch = 0 : i64, scratch_operands = 0 : i64, tpu.core_type = #tpu.core_type<tc>, window_params = [{transform_indices = @transform_0, window_bounds = array<i64: 16, 32>}, {pipeline_mode = #tpu.pipeline_mode<synchronous>, transform_indices = @transform_1, window_bounds = array<i64: 1, 32>}, {pipeline_mode = #tpu.pipeline_mode<synchronous>, transform_indices = @transform_2, window_bounds = array<i64: 1, 32>}, {transform_indices = @transform_3, window_bounds = array<i64: 32, 64>}, {transform_indices = @transform_4, window_bounds = array<i64: 16, 64>}]} {
    %c0 = arith.constant 0 : index
    %c0_0 = arith.constant 0 : index
    %0 = vector.load %arg2[%c0, %c0_0] : memref<16x32xbf16, #tpu.memory_space<vmem>>, vector<16x32xbf16>
    %1 = arith.extf %0 : vector<16x32xbf16> to vector<16x32xf32>
    %c0_1 = arith.constant 0 : index
    %c0_2 = arith.constant 0 : index
    %2 = vector.load %arg3[%c0_1, %c0_2] : memref<1x32xf32, #tpu.memory_space<vmem>>, vector<1x32xf32>
    %c0_3 = arith.constant 0 : index
    %c0_4 = arith.constant 0 : index
    %3 = vector.load %arg4[%c0_3, %c0_4] : memref<1x32xf32, #tpu.memory_space<vmem>>, vector<1x32xf32>
    %cst = arith.constant dense<0.000000e+00> : vector<16xf32>
    %4 = vector.multi_reduction <add>, %1, %cst [1] : vector<16x32xf32> to vector<16xf32>
    %5 = vector.shape_cast %4 : vector<16xf32> to vector<16x1xf32>
    %cst_5 = arith.constant 3.200000e+01 : f32
    %6 = vector.broadcast %cst_5 : f32 to vector<16x1xf32>
    %7 = arith.divf %5, %6 : vector<16x1xf32>
    %8 = vector.broadcast %7 : vector<16x1xf32> to vector<16x32xf32>
    %9 = arith.subf %1, %8 : vector<16x32xf32>
    %10 = arith.mulf %9, %9 : vector<16x32xf32>
    %cst_6 = arith.constant dense<0.000000e+00> : vector<16xf32>
    %11 = vector.multi_reduction <add>, %10, %cst_6 [1] : vector<16x32xf32> to vector<16xf32>
    %12 = vector.shape_cast %11 : vector<16xf32> to vector<16x1xf32>
    %cst_7 = arith.constant 3.200000e+01 : f32
    %13 = vector.broadcast %cst_7 : f32 to vector<16x1xf32>
    %14 = arith.divf %12, %13 : vector<16x1xf32>
    %15 = vector.broadcast %7 : vector<16x1xf32> to vector<16x32xf32>
    %16 = arith.subf %1, %15 : vector<16x32xf32>
    %cst_8 = arith.constant 9.99999974E-6 : f32
    %17 = vector.broadcast %cst_8 : f32 to vector<16x1xf32>
    %18 = arith.addf %14, %17 : vector<16x1xf32>
    %19 = math.rsqrt %18 : vector<16x1xf32>
    %20 = vector.broadcast %19 : vector<16x1xf32> to vector<16x32xf32>
    %21 = arith.mulf %16, %20 : vector<16x32xf32>
    %22 = vector.broadcast %2 : vector<1x32xf32> to vector<16x32xf32>
    %23 = arith.mulf %21, %22 : vector<16x32xf32>
    %24 = vector.broadcast %3 : vector<1x32xf32> to vector<16x32xf32>
    %25 = arith.addf %23, %24 : vector<16x32xf32>
    %26 = arith.truncf %25 : vector<16x32xf32> to vector<16x32xbf16>
    %c0_9 = arith.constant 0 : index
    %c0_10 = arith.constant 0 : index
    %27 = vector.load %arg5[%c0_9, %c0_10] : memref<32x64xbf16, #tpu.memory_space<vmem>>, vector<32x64xbf16>
    %cst_11 = arith.constant dense<0.000000e+00> : vector<16x64xf32>
    %28 = tpu.matmul %26, %27, %cst_11 {dimension_numbers = #tpu.dot_dimension_numbers<[1], [0], [0], [1], [0, 0, 1, 1], [], []>} : vector<16x32xbf16>, vector<32x64xbf16>, vector<16x64xf32> -> vector<16x64xf32>
    %c0_12 = arith.constant 0 : index
    %c0_13 = arith.constant 0 : index
    %29 = vector.load %arg6[%c0_12, %c0_13] : memref<16x64xf32, #tpu.memory_space<vmem>>, vector<16x64xf32>
    tpu.vector_store %arg6[%c0_12, %c0_13], %28 {strides = array<i32>} : memref<16x64xf32, #tpu.memory_space<vmem>>, vector<16x64xf32>,
    return
  }
  func.func @transform_0(%arg0: i32, %arg1: i32) -> (i32, i32) {
    %c0_i32 = arith.constant 0 : i32
    %c0_i32_0 = arith.constant 0 : i32
    return %arg0, %c0_i32 : i32, i32
  }
  func.func @transform_1(%arg0: i32, %arg1: i32) -> (i32, i32) {
    %c0_i32 = arith.constant 0 : i32
    %c0_i32_0 = arith.constant 0 : i32
    %c0_i32_1 = arith.constant 0 : i32
    return %c0_i32, %c0_i32_0 : i32, i32
  }
  func.func @transform_2(%arg0: i32, %arg1: i32) -> (i32, i32) {
    %c0_i32 = arith.constant 0 : i32
    %c0_i32_0 = arith.constant 0 : i32
    %c0_i32_1 = arith.constant 0 : i32
    return %c0_i32, %c0_i32_0 : i32, i32
  }
  func.func @transform_3(%arg0: i32, %arg1: i32) -> (i32, i32) {
    %c0_i32 = arith.constant 0 : i32
    %c0_i32_0 = arith.constant 0 : i32
    return %c0_i32, %arg1 : i32, i32
  }
  func.func @transform_4(%arg0: i32, %arg1: i32) -> (i32, i32) {
    %c0_i32 = arith.constant 0 : i32
    return %arg0, %arg1 : i32, i32
  }
}

</mosaic_0001>

<llo_original>
// kernel: forward.14
$region0: #{forward.14}
  #allocation0 [shape = 'u32[]', space=smem, size = 0x4, offset = 0x4, fixed_abs, tag = 'smem constant byte address 0x4 - core index']
  #allocation1 [shape = 'u32[144,128]{1,0:T(1,128)}', space=vmem, size = 0x12000, scoped, tag = 'internal scratch']
  %s0 = inlined_call_operand.vmem [shape: bf16[16,32], index: 0, kind: input, shape index: {}]
  %s1 = inlined_call_operand.vmem [shape: bf16[32,128], index: 1, kind: input, shape index: {}]
  %s2 = inlined_call_operand.vmem [shape: f32[1,128], index: 2, kind: input, shape index: {}]
  %s3 = inlined_call_operand.vmem [shape: bf16[128,32], index: 3, kind: input, shape index: {}]
  %s4 = inlined_call_operand.vmem [shape: f32[1,32], index: 4, kind: input, shape index: {}]
  %s5 = inlined_call_operand.vmem [shape: f32[1,32], index: 5, kind: input, shape index: {}]
  %s6 = inlined_call_operand.vmem [shape: f32[1,32], index: 6, kind: input, shape index: {}]
  %s7 = inlined_call_operand.vmem [shape: f32[1,32], index: 7, kind: input, shape index: {}]
  %s8 = inlined_call_operand.vmem [shape: f32[1,32], index: 8, kind: input, shape index: {}]
  %s9 = inlined_call_operand.vmem [shape: bf16[16,32], index: 9, kind: output, shape index: {}]
  %s10 = sld [smem:[#allocation0]]
  $region46: #{forward.14} parent=0
    _
  %s12 = ssub.s32 1, %s10
  %s13 = scalar_select 0, %s12, %s10
  // Predicated region
  $region2: #{forward.14} parent=0 // pred_check
    _
  $region3: #{forward.14} parent=0 // pred_check_branch
    %15 = sbr.rel (0) target = $region5
  $region4: #{forward.14} parent=0 // pred_region
    _
  $region5: #{forward.14} parent=0 // pred_fallthru
    _
  // Predicated region
  $region6: #{forward.14} parent=0 // pred_check
    _
  $region7: #{forward.14} parent=0 // pred_check_branch
    %17 = sbr.rel (0) target = $region9
  $region8: #{forward.14} parent=0 // pred_region
    _
  $region9: #{forward.14} parent=0 // pred_fallthru
    _
  // Predicated region
  $region10: #{forward.14} parent=0 // pred_check
    _
  $region11: #{forward.14} parent=0 // pred_check_branch
    %19 = sbr.rel (0) target = $region13
  $region12: #{forward.14} parent=0 // pred_region
    _
  $region13: #{forward.14} parent=0 // pred_fallthru
    _
  // Predicated region
  $region14: #{forward.14} parent=0 // pred_check
    _
  $region15: #{forward.14} parent=0 // pred_check_branch
    %21 = sbr.rel (0) target = $region17
  $region16: #{forward.14} parent=0 // pred_region
    _
  $region17: #{forward.14} parent=0 // pred_fallthru
    _
  // Predicated region
  $region18: #{forward.14} parent=0 // pred_check
    _
  $region19: #{forward.14} parent=0 // pred_check_branch
    %23 = sbr.rel (0) target = $region21
  $region20: #{forward.14} parent=0 // pred_region
    _
  $region21: #{forward.14} parent=0 // pred_fallthru
    _
  // Predicated region
  $region22: #{forward.14} parent=0 // pred_check
    _
  $region23: #{forward.14} parent=0 // pred_check_branch
    %25 = sbr.rel (0) target = $region25
  $region24: #{forward.14} parent=0 // pred_region
    _
  $region25: #{forward.14} parent=0 // pred_fallthru
    _
  // Predicated region
  $region26: #{forward.14} parent=0 // pred_check
    _
  $region27: #{forward.14} parent=0 // pred_check_branch
    %27 = sbr.rel (0) target = $region29
  $region28: #{forward.14} parent=0 // pred_region
    _
  $region29: #{forward.14} parent=0 // pred_fallthru
    _
  // Predicated region
  $region30: #{forward.14} parent=0 // pred_check
    _
  $region31: #{forward.14} parent=0 // pred_check_branch
    %29 = sbr.rel (0) target = $region33
  $region32: #{forward.14} parent=0 // pred_region
    _
  $region33: #{forward.14} parent=0 // pred_fallthru
    _
  // Predicated region
  $region34: #{forward.14} parent=0 // pred_check
    _
  $region35: #{forward.14} parent=0 // pred_check_branch
    %31 = sbr.rel (0) target = $region37
  $region36: #{forward.14} parent=0 // pred_region
    _
  $region37: #{forward.14} parent=0 // pred_fallthru
    _
  %v33 = vld [vmem:[%s0] sm:$0xf]
  %v34 = vld [vmem:[%s0 + $0x4] sm:$0xf]
  %v35 = vld [vmem:[%s1] sm:$0xf]
  %v36 = vld [vmem:[%s1 + $0x4] sm:$0xf]
  %v37 = vld [vmem:[%s1 + $0x8] sm:$0xf]
  %v38 = vld [vmem:[%s1 + $0xc] sm:$0xf]
  %v39 = vld [vmem:[%s2] sm:$0x1]
  %v41 = vlaneseq
  %v42 = vshrl.u32 %v41, 7
  %v43 = vsub.s32 0, %v42
  %v44 = vrot.slane %v39, %v43
  %v48 = vunpack.c.l.b16 %v33
  %v49 = vunpack.c.l.b16 %v34
  %v50 = vpack.c.b16 %v49, %v48
  %v55 = vunpack.c.l.b16 %v35
  %v56 = vunpack.c.l.b16 %v36
  %v57 = vunpack.c.l.b16 %v37
  %v58 = vunpack.c.l.b16 %v38
  %v59 = vpack.c.b16 %v56, %v55
  %v60 = vpack.c.b16 %v58, %v57
  %vm63 = vcmask 261120
  %v65 = vsel %vm63, %v50, 0
  %67 = vmatprep.subr.bf16.mxu0 0
  %68 = vmatpush1.bf16.msra.mxu0 %v59
  %69 = vmatprep.subr.bf16.mxu0 0
  %70 = vmatpush1.bf16.msra.mxu0 %v60
  %71 = vmatprep.subr.bf16.mxu0 0
  %72 = vmatpush1.bf16.msra.mxu0 0
  %73 = vmatprep.subr.bf16.mxu0 0
  %74 = vmatpush1.bf16.msra.mxu0 0
  %75 = vmatprep.subr.bf16.mxu0 0
  %76 = vmatpush1.bf16.msra.mxu0 0
  %77 = vmatprep.subr.bf16.mxu0 0
  %78 = vmatpush1.bf16.msra.mxu0 0
  %79 = vmatprep.subr.bf16.mxu0 0
  %80 = vmatpush1.bf16.msra.mxu0 0
  %81 = vmatprep.subr.bf16.mxu0 0
  %82 = vmatpush1.bf16.msra.mxu0 0
  %83 = vmatprep.subr.bf16.mxu0 0
  %84 = vmatpush1.bf16.msra.mxu0 0
  %85 = vmatprep.subr.bf16.mxu0 0
  %86 = vmatpush1.bf16.msra.mxu0 0
  %87 = vmatprep.subr.bf16.mxu0 0
  %88 = vmatpush1.bf16.msra.mxu0 0
  %89 = vmatprep.subr.bf16.mxu0 0
  %90 = vmatpush1.bf16.msra.mxu0 0
  %91 = vmatprep.subr.bf16.mxu0 0
  %92 = vmatpush1.bf16.msra.mxu0 0
  %93 = vmatprep.subr.bf16.mxu0 0
  %94 = vmatpush1.bf16.msra.mxu0 0
  %95 = vmatprep.subr.bf16.mxu0 0
  %96 = vmatpush1.bf16.msra.mxu0 0
  %97 = vmatprep.subr.bf16.mxu0 0
  %98 = vmatpush1.bf16.msra.mxu0 0
  %99 = vmatprep.mubr.bf16.mxu0 0
  %100 = vmatmul.mubr.bf16.gmra.mrb[0].mxu0 %v65
  %v101 = vpop.f32.mrb[0].mxu0
  %v102 = vadd.f32 %v44, %v101
  %v103 = vpop.f32.mrb[0].mxu0
  %v104 = vpop.f32.mrb[0].mxu0
  %v105 = vadd.f32 %v44, %v104
  %v106 = vpop.f32.mrb[0].mxu0
  %107 = vdwg.mxu0
  %v108 = vmax.f32 %v102, 0.0
  %v109 = vmax.f32 %v105, 0.0
  %v110 = vpack.c.bf16 %v109, %v108
  %v111 = vld [vmem:[%s3] sm:$0xf]
  %v112 = vld [vmem:[%s3 + $0x4] sm:$0xf]
  %v113 = vld [vmem:[%s3 + $0x8] sm:$0xf]
  %v114 = vld [vmem:[%s3 + $0xc] sm:$0xf]
  %v115 = vld [vmem:[%s3 + $0x10] sm:$0xf]
  %v116 = vld [vmem:[%s3 + $0x14] sm:$0xf]
  %v117 = vld [vmem:[%s3 + $0x18] sm:$0xf]
  %v118 = vld [vmem:[%s3 + $0x1c] sm:$0xf]
  %v119 = vld [vmem:[%s3 + $0x20] sm:$0xf]
  %v120 = vld [vmem:[%s3 + $0x24] sm:$0xf]
  %v121 = vld [vmem:[%s3 + $0x28] sm:$0xf]
  %v122 = vld [vmem:[%s3 + $0x2c] sm:$0xf]
  %v123 = vld [vmem:[%s3 + $0x30] sm:$0xf]
  %v124 = vld [vmem:[%s3 + $0x34] sm:$0xf]
  %v125 = vld [vmem:[%s3 + $0x38] sm:$0xf]
  %v126 = vld [vmem:[%s3 + $0x3c] sm:$0xf]
  %v127 = vld [vmem:[%s4] sm:$0x1]
  %v129 = vlaneseq
  %v130 = vshrl.u32 %v129, 7
  %v131 = vsub.s32 0, %v130
  %v132 = vrot.slane %v127, %v131
  %v150 = vunpack.c.l.b16 %v111
  %v151 = vunpack.c.l.b16 %v112
  %v152 = vunpack.c.l.b16 %v113
  %v153 = vunpack.c.l.b16 %v114
  %v154 = vunpack.c.l.b16 %v115
  %v155 = vunpack.c.l.b16 %v116
  %v156 = vunpack.c.l.b16 %v117
  %v157 = vunpack.c.l.b16 %v118
  %v158 = vunpack.c.l.b16 %v119
  %v159 = vunpack.c.l.b16 %v120
  %v160 = vunpack.c.l.b16 %v121
  %v161 = vunpack.c.l.b16 %v122
  %v162 = vunpack.c.l.b16 %v123
  %v163 = vunpack.c.l.b16 %v124
  %v164 = vunpack.c.l.b16 %v125
  %v165 = vunpack.c.l.b16 %v126
  %v166 = vpack.c.b16 %v151, %v150
  %v167 = vpack.c.b16 %v153, %v152
  %v168 = vpack.c.b16 %v155, %v154
  %v169 = vpack.c.b16 %v157, %v156
  %v170 = vpack.c.b16 %v159, %v158
  %v171 = vpack.c.b16 %v161, %v160
  %v172 = vpack.c.b16 %v163, %v162
  %v173 = vpack.c.b16 %v165, %v164
  %182 = vmatprep.subr.bf16.mxu0 0
  %183 = vmatpush1.bf16.msra.mxu0 %v166
  %184 = vmatprep.subr.bf16.mxu0 0
  %185 = vmatpush1.bf16.msra.mxu0 %v167
  %186 = vmatprep.subr.bf16.mxu0 0
  %187 = vmatpush1.bf16.msra.mxu0 %v168
  %188 = vmatprep.subr.bf16.mxu0 0
  %189 = vmatpush1.bf16.msra.mxu0 %v169
  %190 = vmatprep.subr.bf16.mxu0 0
  %191 = vmatpush1.bf16.msra.mxu0 %v170
  %192 = vmatprep.subr.bf16.mxu0 0
  %193 = vmatpush1.bf16.msra.mxu0 %v171
  %194 = vmatprep.subr.bf16.mxu0 0
  %195 = vmatpush1.bf16.msra.mxu0 %v172
  %196 = vmatprep.subr.bf16.mxu0 0
  %197 = vmatpush1.bf16.msra.mxu0 %v173
  %198 = vmatprep.subr.bf16.mxu0 0
  %199 = vmatpush1.bf16.msra.mxu0 0
  %200 = vmatprep.subr.bf16.mxu0 0
  %201 = vmatpush1.bf16.msra.mxu0 0
  %202 = vmatprep.subr.bf16.mxu0 0
  %203 = vmatpush1.bf16.msra.mxu0 0
  %204 = vmatprep.subr.bf16.mxu0 0
  %205 = vmatpush1.bf16.msra.mxu0 0
  %206 = vmatprep.subr.bf16.mxu0 0
  %207 = vmatpush1.bf16.msra.mxu0 0
  %208 = vmatprep.subr.bf16.mxu0 0
  %209 = vmatpush1.bf16.msra.mxu0 0
  %210 = vmatprep.subr.bf16.mxu0 0
  %211 = vmatpush1.bf16.msra.mxu0 0
  %212 = vmatprep.subr.bf16.mxu0 0
  %213 = vmatpush1.bf16.msra.mxu0 0
  %214 = vmatprep.mubr.bf16.mxu0 0
  %215 = vmatmul.mubr.bf16.gmra.mrb[0].mxu0 %v110
  %v216 = vpop.f32.mrb[0].mxu0
  %v217 = vadd.f32 %v132, %v216
  %v218 = vpop.f32.mrb[0].mxu0
  %v219 = vpop.f32.mrb[0].mxu0
  %v220 = vadd.f32 %v132, %v219
  %v221 = vpop.f32.mrb[0].mxu0
  %222 = vdwg.mxu0
  %v223 = vunpack.c.l.bf16 %v33
  %v224 = vunpack.c.l.bf16 %v34
  %v225 = vadd.f32 %v223, %v217
  %v226 = vadd.f32 %v224, %v220
  %v227 = vld [vmem:[%s5] sm:$0x1]
  %v228 = vld [vmem:[%s6] sm:$0x1]
  %v229 = vsel %vm63, %v225, 0.0
  %230 = vadd.xlane.f32.xlu0 %v229
  %v231 = vpop.xlane.xlu0 %230
  %v232 = vsel %vm63, %v226, 0.0
  %233 = vadd.xlane.f32.xlu0 %v232
  %v234 = vpop.xlane.xlu0 %233
  %v235 = vrcp.pop 32.0
  %v236 = vmul.f32 %v231, %v235
  %v237 = vmul.f32 %v234, %v235
  %v238 = vsub.f32 %v225, %v236
  %v239 = vsub.f32 %v226, %v237
  %v240 = vmul.f32 %v238, %v238
  %v241 = vmul.f32 %v239, %v239
  %v242 = vsel %vm63, %v240, 0.0
  %243 = vadd.xlane.f32.xlu0 %v242
  %v244 = vpop.xlane.xlu0 %243
  %v245 = vsel %vm63, %v241, 0.0
  %246 = vadd.xlane.f32.xlu0 %v245
  %v247 = vpop.xlane.xlu0 %246
  %v248 = vmul.f32 %v244, %v235
  %v249 = vmul.f32 %v247, %v235
  %v250 = vadd.f32 %v248, 1e-05
  %v251 = vadd.f32 %v249, 1e-05
  %v252 = vrsqrt.pop %v250
  %v253 = vrsqrt.pop %v251
  %v254 = vmul.f32 %v238, %v252
  %v255 = vmul.f32 %v239, %v253
  %v257 = vlaneseq
  %v258 = vshrl.u32 %v257, 7
  %v259 = vsub.s32 0, %v258
  %v260 = vrot.slane %v227, %v259
  %v262 = vmul.f32 %v254, %v260
  %v263 = vmul.f32 %v255, %v260
  %v265 = vlaneseq
  %v266 = vshrl.u32 %v265, 7
  %v267 = vsub.s32 0, %v266
  %v268 = vrot.slane %v228, %v267
  %v270 = vadd.f32 %v262, %v268
  %v271 = vadd.f32 %v263, %v268
  %v272 = vld [vmem:[%s7] sm:$0x1]
  %v273 = vld [vmem:[%s8] sm:$0x1]
  %v274 = vsel %vm63, %v270, 0.0
  %275 = vadd.xlane.f32.xlu0 %v274
  %v276 = vpop.xlane.xlu0 %275
  %v277 = vsel %vm63, %v271, 0.0
  %278 = vadd.xlane.f32.xlu0 %v277
  %v279 = vpop.xlane.xlu0 %278
  %v280 = vmul.f32 %v276, %v235
  %v281 = vmul.f32 %v279, %v235
  %v282 = vsub.f32 %v270, %v280
  %v283 = vsub.f32 %v271, %v281
  %v284 = vmul.f32 %v282, %v282
  %v285 = vmul.f32 %v283, %v283
  %v286 = vsel %vm63, %v284, 0.0
  %287 = vadd.xlane.f32.xlu0 %v286
  %v288 = vpop.xlane.xlu0 %287
  %v289 = vsel %vm63, %v285, 0.0
  %290 = vadd.xlane.f32.xlu0 %v289
  %v291 = vpop.xlane.xlu0 %290
  %v292 = vmul.f32 %v288, %v235
  %v293 = vmul.f32 %v291, %v235
  %v294 = vadd.f32 %v292, 1e-05
  %v295 = vadd.f32 %v293, 1e-05
  %v296 = vrsqrt.pop %v294
  %v297 = vrsqrt.pop %v295
  %v298 = vmul.f32 %v282, %v296
  %v299 = vmul.f32 %v283, %v297
  %v301 = vlaneseq
  %v302 = vshrl.u32 %v301, 7
  %v303 = vsub.s32 0, %v302
  %v304 = vrot.slane %v272, %v303
  %v306 = vmul.f32 %v298, %v304
  %v307 = vmul.f32 %v299, %v304
  %v309 = vlaneseq
  %v310 = vshrl.u32 %v309, 7
  %v311 = vsub.s32 0, %v310
  %v312 = vrot.slane %v273, %v311
  %v314 = vadd.f32 %v306, %v312
  %v315 = vadd.f32 %v307, %v312
  %v316 = vpack.c.bf16 %v315, %v314
  %v318 = vunpack.c.l.b16 %v316
  %v319 = vunpack.c.h.b16 %v316
  %v320 = vpack.c.b16 %v318, %v318
  %v321 = vpack.c.b16 %v319, %v319
  %vm324 = vcmask 257024
  %325 = vst.msk [vmem:[%s9] sm:$0xf] %vm324, %v320
  %326 = vst.msk [vmem:[%s9 + $0x4] sm:$0xf] %vm324, %v321
  // Predicated region
  $region38: #{forward.14} parent=0 // pred_check
    _
  $region39: #{forward.14} parent=0 // pred_check_branch
    %328 = sbr.rel (0) target = $region41
  $region40: #{forward.14} parent=0 // pred_region
    _
  $region41: #{forward.14} parent=0 // pred_fallthru
    _
  // Predicated region
  $region42: #{forward.14} parent=0 // pred_check
    _
  $region43: #{forward.14} parent=0 // pred_check_branch
    %330 = sbr.rel (0) target = $region45
  $region44: #{forward.14} parent=0 // pred_region
    _
  $region45: #{forward.14} parent=0 // pred_fallthru
    _

// kernel: forward.12
$region0: #{forward.12}
  #allocation0 [shape = 'u32[]', space=smem, size = 0x4, offset = 0x4, fixed_abs, tag = 'smem constant byte address 0x4 - core index']
  #allocation1 [shape = 'u32[144,128]{1,0:T(1,128)}', space=vmem, size = 0x12000, scoped, tag = 'internal scratch']
  %s0 = inlined_call_operand.vmem [shape: bf16[16,32], index: 0, kind: input, shape index: {}]
  %s1 = inlined_call_operand.vmem [shape: bf16[32,128], index: 1, kind: input, shape index: {}]
  %s2 = inlined_call_operand.vmem [shape: f32[1,128], index: 2, kind: input, shape index: {}]
  %s3 = inlined_call_operand.vmem [shape: bf16[128,32], index: 3, kind: input, shape index: {}]
  %s4 = inlined_call_operand.vmem [shape: f32[1,32], index: 4, kind: input, shape index: {}]
  %s5 = inlined_call_operand.vmem [shape: f32[1,32], index: 5, kind: input, shape index: {}]
  %s6 = inlined_call_operand.vmem [shape: f32[1,32], index: 6, kind: input, shape index: {}]
  %s7 = inlined_call_operand.vmem [shape: bf16[16,32], index: 7, kind: output, shape index: {}]
  %s8 = sld [smem:[#allocation0]]
  $region38: #{forward.12} parent=0
    _
  %s10 = ssub.s32 1, %s8
  %s11 = scalar_select 0, %s10, %s8
  // Predicated region
  $region2: #{forward.12} parent=0 // pred_check
    _
  $region3: #{forward.12} parent=0 // pred_check_branch
    %13 = sbr.rel (0) target = $region5
  $region4: #{forward.12} parent=0 // pred_region
    _
  $region5: #{forward.12} parent=0 // pred_fallthru
    _
  // Predicated region
  $region6: #{forward.12} parent=0 // pred_check
    _
  $region7: #{forward.12} parent=0 // pred_check_branch
    %15 = sbr.rel (0) target = $region9
  $region8: #{forward.12} parent=0 // pred_region
    _
  $region9: #{forward.12} parent=0 // pred_fallthru
    _
  // Predicated region
  $region10: #{forward.12} parent=0 // pred_check
    _
  $region11: #{forward.12} parent=0 // pred_check_branch
    %17 = sbr.rel (0) target = $region13
  $region12: #{forward.12} parent=0 // pred_region
    _
  $region13: #{forward.12} parent=0 // pred_fallthru
    _
  // Predicated region
  $region14: #{forward.12} parent=0 // pred_check
    _
  $region15: #{forward.12} parent=0 // pred_check_branch
    %19 = sbr.rel (0) target = $region17
  $region16: #{forward.12} parent=0 // pred_region
    _
  $region17: #{forward.12} parent=0 // pred_fallthru
    _
  // Predicated region
  $region18: #{forward.12} parent=0 // pred_check
    _
  $region19: #{forward.12} parent=0 // pred_check_branch
    %21 = sbr.rel (0) target = $region21
  $region20: #{forward.12} parent=0 // pred_region
    _
  $region21: #{forward.12} parent=0 // pred_fallthru
    _
  // Predicated region
  $region22: #{forward.12} parent=0 // pred_check
    _
  $region23: #{forward.12} parent=0 // pred_check_branch
    %23 = sbr.rel (0) target = $region25
  $region24: #{forward.12} parent=0 // pred_region
    _
  $region25: #{forward.12} parent=0 // pred_fallthru
    _
  // Predicated region
  $region26: #{forward.12} parent=0 // pred_check
    _
  $region27: #{forward.12} parent=0 // pred_check_branch
    %25 = sbr.rel (0) target = $region29
  $region28: #{forward.12} parent=0 // pred_region
    _
  $region29: #{forward.12} parent=0 // pred_fallthru
    _
  %v27 = vld [vmem:[%s0] sm:$0xf]
  %v28 = vld [vmem:[%s0 + $0x4] sm:$0xf]
  %v29 = vld [vmem:[%s1] sm:$0xf]
  %v30 = vld [vmem:[%s1 + $0x4] sm:$0xf]
  %v31 = vld [vmem:[%s1 + $0x8] sm:$0xf]
  %v32 = vld [vmem:[%s1 + $0xc] sm:$0xf]
  %v33 = vld [vmem:[%s2] sm:$0x1]
  %v35 = vlaneseq
  %v36 = vshrl.u32 %v35, 7
  %v37 = vsub.s32 0, %v36
  %v38 = vrot.slane %v33, %v37
  %v42 = vunpack.c.l.b16 %v27
  %v43 = vunpack.c.l.b16 %v28
  %v44 = vpack.c.b16 %v43, %v42
  %v49 = vunpack.c.l.b16 %v29
  %v50 = vunpack.c.l.b16 %v30
  %v51 = vunpack.c.l.b16 %v31
  %v52 = vunpack.c.l.b16 %v32
  %v53 = vpack.c.b16 %v50, %v49
  %v54 = vpack.c.b16 %v52, %v51
  %vm57 = vcmask 261120
  %v59 = vsel %vm57, %v44, 0
  %61 = vmatprep.subr.bf16.mxu0 0
  %62 = vmatpush1.bf16.msra.mxu0 %v53
  %63 = vmatprep.subr.bf16.mxu0 0
  %64 = vmatpush1.bf16.msra.mxu0 %v54
  %65 = vmatprep.subr.bf16.mxu0 0
  %66 = vmatpush1.bf16.msra.mxu0 0
  %67 = vmatprep.subr.bf16.mxu0 0
  %68 = vmatpush1.bf16.msra.mxu0 0
  %69 = vmatprep.subr.bf16.mxu0 0
  %70 = vmatpush1.bf16.msra.mxu0 0
  %71 = vmatprep.subr.bf16.mxu0 0
  %72 = vmatpush1.bf16.msra.mxu0 0
  %73 = vmatprep.subr.bf16.mxu0 0
  %74 = vmatpush1.bf16.msra.mxu0 0
  %75 = vmatprep.subr.bf16.mxu0 0
  %76 = vmatpush1.bf16.msra.mxu0 0
  %77 = vmatprep.subr.bf16.mxu0 0
  %78 = vmatpush1.bf16.msra.mxu0 0
  %79 = vmatprep.subr.bf16.mxu0 0
  %80 = vmatpush1.bf16.msra.mxu0 0
  %81 = vmatprep.subr.bf16.mxu0 0
  %82 = vmatpush1.bf16.msra.mxu0 0
  %83 = vmatprep.subr.bf16.mxu0 0
  %84 = vmatpush1.bf16.msra.mxu0 0
  %85 = vmatprep.subr.bf16.mxu0 0
  %86 = vmatpush1.bf16.msra.mxu0 0
  %87 = vmatprep.subr.bf16.mxu0 0
  %88 = vmatpush1.bf16.msra.mxu0 0
  %89 = vmatprep.subr.bf16.mxu0 0
  %90 = vmatpush1.bf16.msra.mxu0 0
  %91 = vmatprep.subr.bf16.mxu0 0
  %92 = vmatpush1.bf16.msra.mxu0 0
  %93 = vmatprep.mubr.bf16.mxu0 0
  %94 = vmatmul.mubr.bf16.gmra.mrb[0].mxu0 %v59
  %v95 = vpop.f32.mrb[0].mxu0
  %v96 = vadd.f32 %v38, %v95
  %v97 = vpop.f32.mrb[0].mxu0
  %v98 = vpop.f32.mrb[0].mxu0
  %v99 = vadd.f32 %v38, %v98
  %v100 = vpop.f32.mrb[0].mxu0
  %101 = vdwg.mxu0
  %v102 = vmax.f32 %v96, 0.0
  %v103 = vmax.f32 %v99, 0.0
  %v104 = vpack.c.bf16 %v103, %v102
  %v105 = vld [vmem:[%s3] sm:$0xf]
  %v106 = vld [vmem:[%s3 + $0x4] sm:$0xf]
  %v107 = vld [vmem:[%s3 + $0x8] sm:$0xf]
  %v108 = vld [vmem:[%s3 + $0xc] sm:$0xf]
  %v109 = vld [vmem:[%s3 + $0x10] sm:$0xf]
  %v110 = vld [vmem:[%s3 + $0x14] sm:$0xf]
  %v111 = vld [vmem:[%s3 + $0x18] sm:$0xf]
  %v112 = vld [vmem:[%s3 + $0x1c] sm:$0xf]
  %v113 = vld [vmem:[%s3 + $0x20] sm:$0xf]
  %v114 = vld [vmem:[%s3 + $0x24] sm:$0xf]
  %v115 = vld [vmem:[%s3 + $0x28] sm:$0xf]
  %v116 = vld [vmem:[%s3 + $0x2c] sm:$0xf]
  %v117 = vld [vmem:[%s3 + $0x30] sm:$0xf]
  %v118 = vld [vmem:[%s3 + $0x34] sm:$0xf]
  %v119 = vld [vmem:[%s3 + $0x38] sm:$0xf]
  %v120 = vld [vmem:[%s3 + $0x3c] sm:$0xf]
  %v121 = vld [vmem:[%s4] sm:$0x1]
  %v123 = vlaneseq
  %v124 = vshrl.u32 %v123, 7
  %v125 = vsub.s32 0, %v124
  %v126 = vrot.slane %v121, %v125
  %v144 = vunpack.c.l.b16 %v105
  %v145 = vunpack.c.l.b16 %v106
  %v146 = vunpack.c.l.b16 %v107
  %v147 = vunpack.c.l.b16 %v108
  %v148 = vunpack.c.l.b16 %v109
  %v149 = vunpack.c.l.b16 %v110
  %v150 = vunpack.c.l.b16 %v111
  %v151 = vunpack.c.l.b16 %v112
  %v152 = vunpack.c.l.b16 %v113
  %v153 = vunpack.c.l.b16 %v114
  %v154 = vunpack.c.l.b16 %v115
  %v155 = vunpack.c.l.b16 %v116
  %v156 = vunpack.c.l.b16 %v117
  %v157 = vunpack.c.l.b16 %v118
  %v158 = vunpack.c.l.b16 %v119
  %v159 = vunpack.c.l.b16 %v120
  %v160 = vpack.c.b16 %v145, %v144
  %v161 = vpack.c.b16 %v147, %v146
  %v162 = vpack.c.b16 %v149, %v148
  %v163 = vpack.c.b16 %v151, %v150
  %v164 = vpack.c.b16 %v153, %v152
  %v165 = vpack.c.b16 %v155, %v154
  %v166 = vpack.c.b16 %v157, %v156
  %v167 = vpack.c.b16 %v159, %v158
  %176 = vmatprep.subr.bf16.mxu0 0
  %177 = vmatpush1.bf16.msra.mxu0 %v160
  %178 = vmatprep.subr.bf16.mxu0 0
  %179 = vmatpush1.bf16.msra.mxu0 %v161
  %180 = vmatprep.subr.bf16.mxu0 0
  %181 = vmatpush1.bf16.msra.mxu0 %v162
  %182 = vmatprep.subr.bf16.mxu0 0
  %183 = vmatpush1.bf16.msra.mxu0 %v163
  %184 = vmatprep.subr.bf16.mxu0 0
  %185 = vmatpush1.bf16.msra.mxu0 %v164
  %186 = vmatprep.subr.bf16.mxu0 0
  %187 = vmatpush1.bf16.msra.mxu0 %v165
  %188 = vmatprep.subr.bf16.mxu0 0
  %189 = vmatpush1.bf16.msra.mxu0 %v166
  %190 = vmatprep.subr.bf16.mxu0 0
  %191 = vmatpush1.bf16.msra.mxu0 %v167
  %192 = vmatprep.subr.bf16.mxu0 0
  %193 = vmatpush1.bf16.msra.mxu0 0
  %194 = vmatprep.subr.bf16.mxu0 0
  %195 = vmatpush1.bf16.msra.mxu0 0
  %196 = vmatprep.subr.bf16.mxu0 0
  %197 = vmatpush1.bf16.msra.mxu0 0
  %198 = vmatprep.subr.bf16.mxu0 0
  %199 = vmatpush1.bf16.msra.mxu0 0
  %200 = vmatprep.subr.bf16.mxu0 0
  %201 = vmatpush1.bf16.msra.mxu0 0
  %202 = vmatprep.subr.bf16.mxu0 0
  %203 = vmatpush1.bf16.msra.mxu0 0
  %204 = vmatprep.subr.bf16.mxu0 0
  %205 = vmatpush1.bf16.msra.mxu0 0
  %206 = vmatprep.subr.bf16.mxu0 0
  %207 = vmatpush1.bf16.msra.mxu0 0
  %208 = vmatprep.mubr.bf16.mxu0 0
  %209 = vmatmul.mubr.bf16.gmra.mrb[0].mxu0 %v104
  %v210 = vpop.f32.mrb[0].mxu0
  %v211 = vadd.f32 %v126, %v210
  %v212 = vpop.f32.mrb[0].mxu0
  %v213 = vpop.f32.mrb[0].mxu0
  %v214 = vadd.f32 %v126, %v213
  %v215 = vpop.f32.mrb[0].mxu0
  %216 = vdwg.mxu0
  %v217 = vunpack.c.l.bf16 %v27
  %v218 = vunpack.c.l.bf16 %v28
  %v219 = vadd.f32 %v217, %v211
  %v220 = vadd.f32 %v218, %v214
  %v221 = vld [vmem:[%s5] sm:$0x1]
  %v222 = vld [vmem:[%s6] sm:$0x1]
  %v223 = vsel %vm57, %v219, 0.0
  %224 = vadd.xlane.f32.xlu0 %v223
  %v225 = vpop.xlane.xlu0 %224
  %v226 = vsel %vm57, %v220, 0.0
  %227 = vadd.xlane.f32.xlu0 %v226
  %v228 = vpop.xlane.xlu0 %227
  %v229 = vrcp.pop 32.0
  %v230 = vmul.f32 %v225, %v229
  %v231 = vmul.f32 %v228, %v229
  %v232 = vsub.f32 %v219, %v230
  %v233 = vsub.f32 %v220, %v231
  %v234 = vmul.f32 %v232, %v232
  %v235 = vmul.f32 %v233, %v233
  %v236 = vsel %vm57, %v234, 0.0
  %237 = vadd.xlane.f32.xlu0 %v236
  %v238 = vpop.xlane.xlu0 %237
  %v239 = vsel %vm57, %v235, 0.0
  %240 = vadd.xlane.f32.xlu0 %v239
  %v241 = vpop.xlane.xlu0 %240
  %v242 = vmul.f32 %v238, %v229
  %v243 = vmul.f32 %v241, %v229
  %v244 = vadd.f32 %v242, 1e-05
  %v245 = vadd.f32 %v243, 1e-05
  %v246 = vrsqrt.pop %v244
  %v247 = vrsqrt.pop %v245
  %v248 = vmul.f32 %v232, %v246
  %v249 = vmul.f32 %v233, %v247
  %v251 = vlaneseq
  %v252 = vshrl.u32 %v251, 7
  %v253 = vsub.s32 0, %v252
  %v254 = vrot.slane %v221, %v253
  %v256 = vmul.f32 %v248, %v254
  %v257 = vmul.f32 %v249, %v254
  %v259 = vlaneseq
  %v260 = vshrl.u32 %v259, 7
  %v261 = vsub.s32 0, %v260
  %v262 = vrot.slane %v222, %v261
  %v264 = vadd.f32 %v256, %v262
  %v265 = vadd.f32 %v257, %v262
  %v266 = vpack.c.bf16 %v265, %v264
  %v268 = vunpack.c.l.b16 %v266
  %v269 = vunpack.c.h.b16 %v266
  %v270 = vpack.c.b16 %v268, %v268
  %v271 = vpack.c.b16 %v269, %v269
  %vm274 = vcmask 257024
  %275 = vst.msk [vmem:[%s7] sm:$0xf] %vm274, %v270
  %276 = vst.msk [vmem:[%s7 + $0x4] sm:$0xf] %vm274, %v271
  // Predicated region
  $region30: #{forward.12} parent=0 // pred_check
    _
  $region31: #{forward.12} parent=0 // pred_check_branch
    %278 = sbr.rel (0) target = $region33
  $region32: #{forward.12} parent=0 // pred_region
    _
  $region33: #{forward.12} parent=0 // pred_fallthru
    _
  // Predicated region
  $region34: #{forward.12} parent=0 // pred_check
    _
  $region35: #{forward.12} parent=0 // pred_check_branch
    %280 = sbr.rel (0) target = $region37
  $region36: #{forward.12} parent=0 // pred_region
    _
  $region37: #{forward.12} parent=0 // pred_fallthru
    _

// kernel: forward.15
$region0: #{forward.15}
  #allocation0 [shape = 'u32[]', space=smem, size = 0x4, offset = 0x4, fixed_abs, tag = 'smem constant byte address 0x4 - core index']
  #allocation1 [shape = 'u32[144,128]{1,0:T(1,128)}', space=vmem, size = 0x12000, scoped, tag = 'internal scratch']
  %s0 = inlined_call_operand.vmem [shape: bf16[2,8,32], index: 0, kind: input, shape index: {}, may-alias: {0,1}]
  %s1 = inlined_call_operand.vmem [shape: bf16[2,8,32], index: 1, kind: input, shape index: {}, may-alias: {0,1}]
  %s2 = inlined_call_operand.vmem [shape: bf16[32,32], index: 2, kind: input, shape index: {}]
  %s3 = inlined_call_operand.vmem [shape: f32[1,32], index: 3, kind: input, shape index: {}]
  %s4 = inlined_call_operand.vmem [shape: bf16[32,64], index: 4, kind: input, shape index: {}]
  %s5 = inlined_call_operand.vmem [shape: f32[1,64], index: 5, kind: input, shape index: {}]
  %s6 = inlined_call_operand.vmem [shape: bf16[32,32], index: 6, kind: input, shape index: {}]
  %s7 = inlined_call_operand.vmem [shape: f32[1,32], index: 7, kind: input, shape index: {}]
  %s8 = inlined_call_operand.vmem [shape: f32[1,32], index: 8, kind: input, shape index: {}]
  %s9 = inlined_call_operand.vmem [shape: f32[1,32], index: 9, kind: input, shape index: {}]
  %s10 = inlined_call_operand.vmem [shape: bf16[2,8,32], index: 10, kind: output, shape index: {}]
  %s11 = sld [smem:[#allocation0]]
  $region73: #{forward.15} parent=0
    _
  %s13 = ssub.s32 1, %s11
  %s14 = scalar_select 0, %s13, %s11
  loop: start=0, step=1, limit=4
  $region2: #{forward.15} parent=0 // loop_pre_header
    _
  $region3: #{forward.15} parent=0 // loop_header
    %s16 = sphi 0, %s20
    %p17 = scmp.ge.s32.totalorder %s16, 4
    %s23 = sphi 0, %s35
    %s24 = sphi 0, %s31
    %s25 = sphi 0, %s23
    %s26 = sphi 0, %s24
    %s27 = sphi 0, %s25
    %s28 = sphi 0, %s26
    %s40 = sphi 0, %s42
    %s43 = sphi 0, %s40
    %s44 = sphi 0, %s43
    %s60 = sphi 0, %s44
    %s66 = sphi 0, %s68
    %s69 = sphi 0, %s66
    %s70 = sphi 0, %s69
    %s86 = sphi 0, %s70
    %s90 = sphi 0, %s90
    %s92 = sphi 0, %s90
    %s93 = sphi 0, %s92
    %s107 = sphi 0, %s93
    %s111 = sphi 0, %s111
    %s113 = sphi 0, %s111
    %s114 = sphi 0, %s113
    %s128 = sphi 0, %s114
    %s132 = sphi 0, %s132
    %s134 = sphi 0, %s132
    %s135 = sphi 0, %s134
    %s149 = sphi 0, %s135
    %s153 = sphi 0, %s153
    %s155 = sphi 0, %s153
    %s156 = sphi 0, %s155
    %s170 = sphi 0, %s156
    %s174 = sphi 0, %s174
    %s176 = sphi 0, %s174
    %s177 = sphi 0, %s176
    %s191 = sphi 0, %s177
    %s195 = sphi 0, %s195
    %s197 = sphi 0, %s195
    %s198 = sphi 0, %s197
    %s212 = sphi 0, %s198
    %s216 = sphi 0, %s216
    %s218 = sphi 0, %s216
    %s219 = sphi 0, %s218
    %s233 = sphi 0, %s219
    %s237 = sphi 0, %s237
    %s239 = sphi 0, %s237
    %s240 = sphi 0, %s239
    %s254 = sphi 0, %s240
    %s262 = sphi 0, %s264
    %s265 = sphi 0, %s262
    %s266 = sphi 0, %s265
    %s282 = sphi 0, %s266
  $region4: #{forward.15} parent=0 // loop_header_branch
    %19 = sbr.rel (%p17) target = $region8
  $region5: #{forward.15} parent=0 // loop_body
    %s21 = ssub.s32 %s16, 1
    %s22 = ssub.s32 %s16, 2
    %s29 = sadd.s32 1, %s24
    %p30 = scmp.ge.s32.totalorder %s29, 1
    %s31 = scalar_select %p30, 0, %s29
    %s32 = sadd.s32 1, %s23
    %s33 = scalar_select %p30, %s32, %s23
    %p34 = scmp.ge.s32.totalorder %s33, 2
    %s35 = scalar_select %p34, 0, %s33
    %s36 = ssub.s32 %s23, %s35
    %s37 = ssub.s32 %s24, %s31
    %s38 = sor.u32 %s36, %s37
    %p39 = scmp.eq.s32.totalorder %s38, 0
    %s41 = sadd.s32 %s40, 1
    %s42 = scalar_select %p39, %s40, %s41
    %p45 = pneg %p39
    %p46 = scmp.eq.s32.totalorder %s16, 1
    %p47 = por %p45, %p46
    %p48 = scmp.ne.s32.totalorder %s40, %s43
    %p49 = scmp.eq.s32.totalorder %s16, 0
    %p50 = por %p48, %p49
    %p51 = scmp.ne.s32.totalorder %s40, %s43
    %p52 = scmp.eq.s32.totalorder %s21, 1
    %p53 = por %p51, %p52
    %p54 = scmp.ne.s32.totalorder %s43, %s44
    %p55 = scmp.eq.s32.totalorder %s21, 0
    %p56 = por %p54, %p55
    %p57 = scmp.ne.s32.totalorder %s43, %s44
    %p58 = scmp.eq.s32.totalorder %s22, 1
    %p59 = por %p57, %p58
    %p61 = scmp.ne.s32.totalorder %s44, %s60
    %p62 = scmp.eq.s32.totalorder %s22, 0
    %p63 = por %p61, %p62
    %s64 = ssub.s32 %s23, %s35
    %p65 = scmp.eq.s32.totalorder %s64, 0
    %s67 = sadd.s32 %s66, 1
    %s68 = scalar_select %p65, %s66, %s67
    %p71 = pneg %p65
    %p72 = scmp.eq.s32.totalorder %s16, 1
    %p73 = por %p71, %p72
    %p74 = scmp.ne.s32.totalorder %s66, %s69
    %p75 = scmp.eq.s32.totalorder %s16, 0
    %p76 = por %p74, %p75
    %p77 = scmp.ne.s32.totalorder %s66, %s69
    %p78 = scmp.eq.s32.totalorder %s21, 1
    %p79 = por %p77, %p78
    %p80 = scmp.ne.s32.totalorder %s69, %s70
    %p81 = scmp.eq.s32.totalorder %s21, 0
    %p82 = por %p80, %p81
    %p83 = scmp.ne.s32.totalorder %s69, %s70
    %p84 = scmp.eq.s32.totalorder %s22, 1
    %p85 = por %p83, %p84
    %p87 = scmp.ne.s32.totalorder %s70, %s86
    %p88 = scmp.eq.s32.totalorder %s22, 0
    %p89 = por %p87, %p88
    %s91 = sadd.s32 %s90, 1
    %p94 = scmp.eq.s32.totalorder %s16, 1
    %p95 = scmp.ne.s32.totalorder %s90, %s92
    %p96 = scmp.eq.s32.totalorder %s16, 0
    %p97 = por %p95, %p96
    %p98 = scmp.ne.s32.totalorder %s90, %s92
    %p99 = scmp.eq.s32.totalorder %s21, 1
    %p100 = por %p98, %p99
    %p101 = scmp.ne.s32.totalorder %s92, %s93
    %p102 = scmp.eq.s32.totalorder %s21, 0
    %p103 = por %p101, %p102
    %p104 = scmp.ne.s32.totalorder %s92, %s93
    %p105 = scmp.eq.s32.totalorder %s22, 1
    %p106 = por %p104, %p105
    %p108 = scmp.ne.s32.totalorder %s93, %s107
    %p109 = scmp.eq.s32.totalorder %s22, 0
    %p110 = por %p108, %p109
    %s112 = sadd.s32 %s111, 1
    %p115 = scmp.eq.s32.totalorder %s16, 1
    %p116 = scmp.ne.s32.totalorder %s111, %s113
    %p117 = scmp.eq.s32.totalorder %s16, 0
    %p118 = por %p116, %p117
    %p119 = scmp.ne.s32.totalorder %s111, %s113
    %p120 = scmp.eq.s32.totalorder %s21, 1
    %p121 = por %p119, %p120
    %p122 = scmp.ne.s32.totalorder %s113, %s114
    %p123 = scmp.eq.s32.totalorder %s21, 0
    %p124 = por %p122, %p123
    %p125 = scmp.ne.s32.totalorder %s113, %s114
    %p126 = scmp.eq.s32.totalorder %s22, 1
    %p127 = por %p125, %p126
    %p129 = scmp.ne.s32.totalorder %s114, %s128
    %p130 = scmp.eq.s32.totalorder %s22, 0
    %p131 = por %p129, %p130
    %s133 = sadd.s32 %s132, 1
    %p136 = scmp.eq.s32.totalorder %s16, 1
    %p137 = scmp.ne.s32.totalorder %s132, %s134
    %p138 = scmp.eq.s32.totalorder %s16, 0
    %p139 = por %p137, %p138
    %p140 = scmp.ne.s32.totalorder %s132, %s134
    %p141 = scmp.eq.s32.totalorder %s21, 1
    %p142 = por %p140, %p141
    %p143 = scmp.ne.s32.totalorder %s134, %s135
    %p144 = scmp.eq.s32.totalorder %s21, 0
    %p145 = por %p143, %p144
    %p146 = scmp.ne.s32.totalorder %s134, %s135
    %p147 = scmp.eq.s32.totalorder %s22, 1
    %p148 = por %p146, %p147
    %p150 = scmp.ne.s32.totalorder %s135, %s149
    %p151 = scmp.eq.s32.totalorder %s22, 0
    %p152 = por %p150, %p151
    %s154 = sadd.s32 %s153, 1
    %p157 = scmp.eq.s32.totalorder %s16, 1
    %p158 = scmp.ne.s32.totalorder %s153, %s155
    %p159 = scmp.eq.s32.totalorder %s16, 0
    %p160 = por %p158, %p159
    %p161 = scmp.ne.s32.totalorder %s153, %s155
    %p162 = scmp.eq.s32.totalorder %s21, 1
    %p163 = por %p161, %p162
    %p164 = scmp.ne.s32.totalorder %s155, %s156
    %p165 = scmp.eq.s32.totalorder %s21, 0
    %p166 = por %p164, %p165
    %p167 = scmp.ne.s32.totalorder %s155, %s156
    %p168 = scmp.eq.s32.totalorder %s22, 1
    %p169 = por %p167, %p168
    %p171 = scmp.ne.s32.totalorder %s156, %s170
    %p172 = scmp.eq.s32.totalorder %s22, 0
    %p173 = por %p171, %p172
    %s175 = sadd.s32 %s174, 1
    %p178 = scmp.eq.s32.totalorder %s16, 1
    %p179 = scmp.ne.s32.totalorder %s174, %s176
    %p180 = scmp.eq.s32.totalorder %s16, 0
    %p181 = por %p179, %p180
    %p182 = scmp.ne.s32.totalorder %s174, %s176
    %p183 = scmp.eq.s32.totalorder %s21, 1
    %p184 = por %p182, %p183
    %p185 = scmp.ne.s32.totalorder %s176, %s177
    %p186 = scmp.eq.s32.totalorder %s21, 0
    %p187 = por %p185, %p186
    %p188 = scmp.ne.s32.totalorder %s176, %s177
    %p189 = scmp.eq.s32.totalorder %s22, 1
    %p190 = por %p188, %p189
    %p192 = scmp.ne.s32.totalorder %s177, %s191
    %p193 = scmp.eq.s32.totalorder %s22, 0
    %p194 = por %p192, %p193
    %s196 = sadd.s32 %s195, 1
    %p199 = scmp.eq.s32.totalorder %s16, 1
    %p200 = scmp.ne.s32.totalorder %s195, %s197
    %p201 = scmp.eq.s32.totalorder %s16, 0
    %p202 = por %p200, %p201
    %p203 = scmp.ne.s32.totalorder %s195, %s197
    %p204 = scmp.eq.s32.totalorder %s21, 1
    %p205 = por %p203, %p204
    %p206 = scmp.ne.s32.totalorder %s197, %s198
    %p207 = scmp.eq.s32.totalorder %s21, 0
    %p208 = por %p206, %p207
    %p209 = scmp.ne.s32.totalorder %s197, %s198
    %p210 = scmp.eq.s32.totalorder %s22, 1
    %p211 = por %p209, %p210
    %p213 = scmp.ne.s32.totalorder %s198, %s212
    %p214 = scmp.eq.s32.totalorder %s22, 0
    %p215 = por %p213, %p214
    %s217 = sadd.s32 %s216, 1
    %p220 = scmp.eq.s32.totalorder %s16, 1
    %p221 = scmp.ne.s32.totalorder %s216, %s218
    %p222 = scmp.eq.s32.totalorder %s16, 0
    %p223 = por %p221, %p222
    %p224 = scmp.ne.s32.totalorder %s216, %s218
    %p225 = scmp.eq.s32.totalorder %s21, 1
    %p226 = por %p224, %p225
    %p227 = scmp.ne.s32.totalorder %s218, %s219
    %p228 = scmp.eq.s32.totalorder %s21, 0
    %p229 = por %p227, %p228
    %p230 = scmp.ne.s32.totalorder %s218, %s219
    %p231 = scmp.eq.s32.totalorder %s22, 1
    %p232 = por %p230, %p231
    %p234 = scmp.ne.s32.totalorder %s219, %s233
    %p235 = scmp.eq.s32.totalorder %s22, 0
    %p236 = por %p234, %p235
    %s238 = sadd.s32 %s237, 1
    %p241 = scmp.eq.s32.totalorder %s16, 1
    %p242 = scmp.ne.s32.totalorder %s237, %s239
    %p243 = scmp.eq.s32.totalorder %s16, 0
    %p244 = por %p242, %p243
    %p245 = scmp.ne.s32.totalorder %s237, %s239
    %p246 = scmp.eq.s32.totalorder %s21, 1
    %p247 = por %p245, %p246
    %p248 = scmp.ne.s32.totalorder %s239, %s240
    %p249 = scmp.eq.s32.totalorder %s21, 0
    %p250 = por %p248, %p249
    %p251 = scmp.ne.s32.totalorder %s239, %s240
    %p252 = scmp.eq.s32.totalorder %s22, 1
    %p253 = por %p251, %p252
    %p255 = scmp.ne.s32.totalorder %s240, %s254
    %p256 = scmp.eq.s32.totalorder %s22, 0
    %p257 = por %p255, %p256
    %s258 = ssub.s32 %s23, %s35
    %s259 = ssub.s32 %s24, %s31
    %s260 = sor.u32 %s258, %s259
    %p261 = scmp.eq.s32.totalorder %s260, 0
    %s263 = sadd.s32 %s262, 1
    %s264 = scalar_select %p261, %s262, %s263
    %p267 = pneg %p261
    %p268 = scmp.eq.s32.totalorder %s16, 1
    %p269 = por %p267, %p268
    %p270 = scmp.ne.s32.totalorder %s262, %s265
    %p271 = scmp.eq.s32.totalorder %s16, 0
    %p272 = por %p270, %p271
    %p273 = scmp.ne.s32.totalorder %s262, %s265
    %p274 = scmp.eq.s32.totalorder %s21, 1
    %p275 = por %p273, %p274
    %p276 = scmp.ne.s32.totalorder %s265, %s266
    %p277 = scmp.eq.s32.totalorder %s21, 0
    %p278 = por %p276, %p277
    %p279 = scmp.ne.s32.totalorder %s265, %s266
    %p280 = scmp.eq.s32.totalorder %s22, 1
    %p281 = por %p279, %p280
    %p283 = scmp.ne.s32.totalorder %s266, %s282
    %p284 = scmp.eq.s32.totalorder %s22, 0
    %p285 = por %p283, %p284
    %p286 = scmp.le.s32.totalorder 1, %s16
    %p287 = scmp.lt.s32.totalorder %s16, 3
    %p288 = pnand %p286, %p287
    %p289 = pneg %p288
    // Predicated region
    $region9: #{forward.15} parent=5 // pred_check
      _
    $region10: #{forward.15} parent=5 // pred_check_branch
      %291 = sbr.rel (%p288) target = $region12
    $region11: #{forward.15} parent=5 // pred_region
      %s292 = ssub.s32 %s16, 1
      // Predicated region
      $region13: #{forward.15} parent=11 // pred_check
        %p293 = pneg %p103
      $region14: #{forward.15} parent=11 // pred_check_branch
        %295 = sbr.rel (%p293) target = $region16
      $region15: #{forward.15} parent=11 // pred_region
        _
      $region16: #{forward.15} parent=11 // pred_fallthru
        _
      // Predicated region
      $region17: #{forward.15} parent=11 // pred_check
        %p296 = pneg %p124
      $region18: #{forward.15} parent=11 // pred_check_branch
        %298 = sbr.rel (%p296) target = $region20
      $region19: #{forward.15} parent=11 // pred_region
        _
      $region20: #{forward.15} parent=11 // pred_fallthru
        _
      // Predicated region
      $region21: #{forward.15} parent=11 // pred_check
        %p299 = pneg %p145
      $region22: #{forward.15} parent=11 // pred_check_branch
        %301 = sbr.rel (%p299) target = $region24
      $region23: #{forward.15} parent=11 // pred_region
        _
      $region24: #{forward.15} parent=11 // pred_fallthru
        _
      // Predicated region
      $region25: #{forward.15} parent=11 // pred_check
        %p302 = pneg %p166
      $region26: #{forward.15} parent=11 // pred_check_branch
        %304 = sbr.rel (%p302) target = $region28
      $region27: #{forward.15} parent=11 // pred_region
        _
      $region28: #{forward.15} parent=11 // pred_fallthru
        _
      // Predicated region
      $region29: #{forward.15} parent=11 // pred_check
        %p305 = pneg %p187
      $region30: #{forward.15} parent=11 // pred_check_branch
        %307 = sbr.rel (%p305) target = $region32
      $region31: #{forward.15} parent=11 // pred_region
        _
      $region32: #{forward.15} parent=11 // pred_fallthru
        _
      // Predicated region
      $region33: #{forward.15} parent=11 // pred_check
        %p308 = pneg %p208
      $region34: #{forward.15} parent=11 // pred_check_branch
        %310 = sbr.rel (%p308) target = $region36
      $region35: #{forward.15} parent=11 // pred_region
        _
      $region36: #{forward.15} parent=11 // pred_fallthru
        _
      // Predicated region
      $region37: #{forward.15} parent=11 // pred_check
        %p311 = pneg %p229
      $region38: #{forward.15} parent=11 // pred_check_branch
        %313 = sbr.rel (%p311) target = $region40
      $region39: #{forward.15} parent=11 // pred_region
        _
      $region40: #{forward.15} parent=11 // pred_fallthru
        _
      // Predicated region
      $region41: #{forward.15} parent=11 // pred_check
        %p314 = pneg %p250
      $region42: #{forward.15} parent=11 // pred_check_branch
        %316 = sbr.rel (%p314) target = $region44
      $region43: #{forward.15} parent=11 // pred_region
        _
      $region44: #{forward.15} parent=11 // pred_fallthru
        _
    $region12: #{forward.15} parent=5 // pred_fallthru
      _
    %p317 = scmp.lt.s32.totalorder %s16, 2
    // Predicated region
    $region45: #{forward.15} parent=5 // pred_check
      %p318 = pneg %p317
    $region46: #{forward.15} parent=5 // pred_check_branch
      %320 = sbr.rel (%p318) target = $region48
    $region47: #{forward.15} parent=5 // pred_region
      // Predicated region
      $region49: #{forward.15} parent=47 // pred_check
        %p321 = pneg %p50
      $region50: #{forward.15} parent=47 // pred_check_branch
        %323 = sbr.rel (%p321) target = $region52
      $region51: #{forward.15} parent=47 // pred_region
        %p324 = scmp.lt.s32.totalorder %s23, 1
        %s325 = scalar_select %p324, %s23, 1
        %p326 = scmp.lt.s32.totalorder %s24, 0
        %s327 = scalar_select %p326, %s24, 0
        %s328 = sadd.s32 %s327, %s325
        %s329 = smul.addr %s328, 4
        %s330 = scalar_lea.vmem %s0, %s329
      $region52: #{forward.15} parent=47 // pred_fallthru
        _
      // Predicated region
      $region53: #{forward.15} parent=47 // pred_check
        %p331 = pneg %p76
      $region54: #{forward.15} parent=47 // pred_check_branch
        %333 = sbr.rel (%p331) target = $region56
      $region55: #{forward.15} parent=47 // pred_region
        %p334 = scmp.lt.s32.totalorder %s23, 1
        %s335 = scalar_select %p334, %s23, 1
        %s336 = smul.addr %s335, 4
        %s337 = scalar_lea.vmem %s1, %s336
      $region56: #{forward.15} parent=47 // pred_fallthru
        _
    $region48: #{forward.15} parent=5 // pred_fallthru
      _
    %p338 = scmp.le.s32.totalorder 1, %s16
    %p339 = scmp.lt.s32.totalorder %s16, 3
    %p340 = pnand %p338, %p339
    %p341 = pneg %p340
    // Predicated region
    $region57: #{forward.15} parent=5 // pred_check
      _
    $region58: #{forward.15} parent=5 // pred_check_branch
      %343 = sbr.rel (%p340) target = $region60
    $region59: #{forward.15} parent=5 // pred_region
      %s344 = ssub.s32 %s16, 1
      %p345 = scmp.lt.s32.totalorder %s25, 1
      %s346 = scalar_select %p345, %s25, 1
      %p347 = scmp.lt.s32.totalorder %s26, 0
      %s348 = scalar_select %p347, %s26, 0
      %s349 = sadd.s32 %s348, %s346
      %s350 = smul.addr %s349, 4
      %s351 = scalar_lea.vmem %s0, %s350
      %p352 = pneg %p56
      %p353 = pneg %p53
      %p354 = scmp.lt.s32.totalorder %s25, 1
      %s355 = scalar_select %p354, %s25, 1
      %s356 = smul.addr %s355, 4
      %s357 = scalar_lea.vmem %s1, %s356
      %p358 = pneg %p82
      %p359 = pneg %p79
      %p360 = pneg %p103
      %p361 = pneg %p100
      %p362 = pneg %p124
      %p363 = pneg %p121
      %p364 = pneg %p145
      %p365 = pneg %p142
      %p366 = pneg %p166
      %p367 = pneg %p163
      %p368 = pneg %p187
      %p369 = pneg %p184
      %p370 = pneg %p208
      %p371 = pneg %p205
      %p372 = pneg %p229
      %p373 = pneg %p226
      %p374 = pneg %p250
      %p375 = pneg %p247
      %p376 = pneg %p278
      %p377 = pneg %p275
      %p378 = scmp.lt.s32.totalorder %s25, 1
      %s379 = scalar_select %p378, %s25, 1
      %p380 = scmp.lt.s32.totalorder %s26, 0
      %s381 = scalar_select %p380, %s26, 0
      %s382 = sadd.s32 %s381, %s379
      %s383 = smul.addr %s382, 4
      %s384 = scalar_lea.vmem %s10, %s383
      %p385 = scmp.lt.s32.totalorder %s25, 1
      %s386 = scalar_select %p385, %s25, 1
      %p387 = scmp.lt.s32.totalorder %s26, 0
      %s388 = scalar_select %p387, %s26, 0
      %s389 = sadd.s32 %s388, %s386
      %s390 = smul.addr %s389, 4
      %s391 = scalar_lea.vmem %s0, %s390
      %p392 = scmp.lt.s32.totalorder %s25, 1
      %s393 = scalar_select %p392, %s25, 1
      %s394 = smul.addr %s393, 4
      %s395 = scalar_lea.vmem %s1, %s394
      %p396 = scmp.lt.s32.totalorder %s25, 1
      %s397 = scalar_select %p396, %s25, 1
      %p398 = scmp.lt.s32.totalorder %s26, 0
      %s399 = scalar_select %p398, %s26, 0
      %s400 = sadd.s32 %s399, %s397
      %s401 = smul.addr %s400, 4
      %s402 = scalar_lea.vmem %s10, %s401
      %v404 = vld [vmem:[%s391] sm:$0xf]
      %v405 = vld [vmem:[%s395] sm:$0xf]
      %v406 = vld [vmem:[%s2] sm:$0xf]
      %v407 = vld [vmem:[%s2 + $0x4] sm:$0xf]
      %v408 = vld [vmem:[%s2 + $0x8] sm:$0xf]
      %v409 = vld [vmem:[%s2 + $0xc] sm:$0xf]
      %v410 = vld [vmem:[%s3] sm:$0x1]
      %v412 = vlaneseq
      %v413 = vshrl.u32 %v412, 7
      %v414 = vsub.s32 0, %v413
      %v415 = vrot.slane %v410, %v414
      %v421 = vunpack.c.l.b16 %v406
      %v422 = vunpack.c.l.b16 %v407
      %v423 = vunpack.c.l.b16 %v408
      %v424 = vunpack.c.l.b16 %v409
      %v425 = vpack.c.b16 %v422, %v421
      %v426 = vpack.c.b16 %v424, %v423
      %vm429 = vcmask 261120
      %v431 = vsel %vm429, %v404, 0
      %433 = vmatprep.subr.bf16.mxu0 0
      %434 = vmatpush1.bf16.msra.mxu0 %v425
      %435 = vmatprep.subr.bf16.mxu0 0
      %436 = vmatpush1.bf16.msra.mxu0 %v426
      %437 = vmatprep.subr.bf16.mxu0 0
      %438 = vmatpush1.bf16.msra.mxu0 0
      %439 = vmatprep.subr.bf16.mxu0 0
      %440 = vmatpush1.bf16.msra.mxu0 0
      %441 = vmatprep.subr.bf16.mxu0 0
      %442 = vmatpush1.bf16.msra.mxu0 0
      %443 = vmatprep.subr.bf16.mxu0 0
      %444 = vmatpush1.bf16.msra.mxu0 0
      %445 = vmatprep.subr.bf16.mxu0 0
      %446 = vmatpush1.bf16.msra.mxu0 0
      %447 = vmatprep.subr.bf16.mxu0 0
      %448 = vmatpush1.bf16.msra.mxu0 0
      %449 = vmatprep.subr.bf16.mxu0 0
      %450 = vmatpush1.bf16.msra.mxu0 0
      %451 = vmatprep.subr.bf16.mxu0 0
      %452 = vmatpush1.bf16.msra.mxu0 0
      %453 = vmatprep.subr.bf16.mxu0 0
      %454 = vmatpush1.bf16.msra.mxu0 0
      %455 = vmatprep.subr.bf16.mxu0 0
      %456 = vmatpush1.bf16.msra.mxu0 0
      %457 = vmatprep.subr.bf16.mxu0 0
      %458 = vmatpush1.bf16.msra.mxu0 0
      %459 = vmatprep.subr.bf16.mxu0 0
      %460 = vmatpush1.bf16.msra.mxu0 0
      %461 = vmatprep.subr.bf16.mxu0 0
      %462 = vmatpush1.bf16.msra.mxu0 0
      %463 = vmatprep.subr.bf16.mxu0 0
      %464 = vmatpush1.bf16.msra.mxu0 0
      %465 = vmatprep.mubr.bf16.mxu0 0
      %466 = vmatmul.mubr.bf16.gmra.mrb[0].mxu0 %v431
      %v467 = vpop.f32.mrb[0].mxu0
      %v468 = vadd.f32 %v415, %v467
      %v469 = vpop.f32.mrb[0].mxu0
      %v470 = vpop.f32.mrb[0].mxu0
      %v471 = vpop.f32.mrb[0].mxu0
      %472 = vdwg.mxu0
      %v473 = vld [vmem:[%s4] sm:$0xf]
      %v474 = vld [vmem:[%s4 + $0x4] sm:$0xf]
      %v475 = vld [vmem:[%s4 + $0x8] sm:$0xf]
      %v476 = vld [vmem:[%s4 + $0xc] sm:$0xf]
      %v477 = vld [vmem:[%s5] sm:$0x1]
      %v479 = vlaneseq
      %v480 = vshrl.u32 %v479, 7
      %v481 = vsub.s32 0, %v480
      %v482 = vrot.slane %v477, %v481
      %v488 = vunpack.c.l.b16 %v473
      %v489 = vunpack.c.l.b16 %v474
      %v490 = vunpack.c.l.b16 %v475
      %v491 = vunpack.c.l.b16 %v476
      %v492 = vpack.c.b16 %v489, %v488
      %v493 = vpack.c.b16 %v491, %v490
      %v497 = vsel %vm429, %v405, 0
      %499 = vmatprep.subr.bf16.mxu0 0
      %500 = vmatpush1.bf16.msra.mxu0 %v492
      %501 = vmatprep.subr.bf16.mxu0 0
      %502 = vmatpush1.bf16.msra.mxu0 %v493
      %503 = vmatprep.subr.bf16.mxu0 0
      %504 = vmatpush1.bf16.msra.mxu0 0
      %505 = vmatprep.subr.bf16.mxu0 0
      %506 = vmatpush1.bf16.msra.mxu0 0
      %507 = vmatprep.subr.bf16.mxu0 0
      %508 = vmatpush1.bf16.msra.mxu0 0
      %509 = vmatprep.subr.bf16.mxu0 0
      %510 = vmatpush1.bf16.msra.mxu0 0
      %511 = vmatprep.subr.bf16.mxu0 0
      %512 = vmatpush1.bf16.msra.mxu0 0
      %513 = vmatprep.subr.bf16.mxu0 0
      %514 = vmatpush1.bf16.msra.mxu0 0
      %515 = vmatprep.subr.bf16.mxu0 0
      %516 = vmatpush1.bf16.msra.mxu0 0
      %517 = vmatprep.subr.bf16.mxu0 0
      %518 = vmatpush1.bf16.msra.mxu0 0
      %519 = vmatprep.subr.bf16.mxu0 0
      %520 = vmatpush1.bf16.msra.mxu0 0
      %521 = vmatprep.subr.bf16.mxu0 0
      %522 = vmatpush1.bf16.msra.mxu0 0
      %523 = vmatprep.subr.bf16.mxu0 0
      %524 = vmatpush1.bf16.msra.mxu0 0
      %525 = vmatprep.subr.bf16.mxu0 0
      %526 = vmatpush1.bf16.msra.mxu0 0
      %527 = vmatprep.subr.bf16.mxu0 0
      %528 = vmatpush1.bf16.msra.mxu0 0
      %529 = vmatprep.subr.bf16.mxu0 0
      %530 = vmatpush1.bf16.msra.mxu0 0
      %531 = vmatprep.mubr.bf16.mxu0 0
      %532 = vmatmul.mubr.bf16.gmra.mrb[0].mxu0 %v497
      %v533 = vpop.f32.mrb[0].mxu0
      %v534 = vadd.f32 %v482, %v533
      %v535 = vpop.f32.mrb[0].mxu0
      %v536 = vpop.f32.mrb[0].mxu0
      %v537 = vpop.f32.mrb[0].mxu0
      %538 = vdwg.mxu0
      %539 = vxpose.xlu0.b32.start [1/16] %v534, 128
      %540 = vxpose.xlu0.b32.cont [2/16] 0.0, 128
      %541 = vxpose.xlu0.b32.cont [3/16] 0.0, 128
      %542 = vxpose.xlu0.b32.cont [4/16] 0.0, 128
      %543 = vxpose.xlu0.b32.cont [5/16] 0.0, 128
      %544 = vxpose.xlu0.b32.cont [6/16] 0.0, 128
      %545 = vxpose.xlu0.b32.cont [7/16] 0.0, 128
      %546 = vxpose.xlu0.b32.cont [8/16] 0.0, 128
      %547 = vxpose.xlu0.b32.cont [9/16] 0.0, 128
      %548 = vxpose.xlu0.b32.cont [10/16] 0.0, 128
      %549 = vxpose.xlu0.b32.cont [11/16] 0.0, 128
      %550 = vxpose.xlu0.b32.cont [12/16] 0.0, 128
      %551 = vxpose.xlu0.b32.cont [13/16] 0.0, 128
      %552 = vxpose.xlu0.b32.cont [14/16] 0.0, 128
      %553 = vxpose.xlu0.b32.cont [15/16] 0.0, 128
      %554 = vxpose.xlu0.b32.end [16/16] 0.0, 128
      %v555 = vpop.trf.xlu0
      %v556 = vpop.trf.xlu0
      %v557 = vpop.trf.xlu0
      %v558 = vpop.trf.xlu0
      %v559 = vpop.trf.xlu0
      %v560 = vpop.trf.xlu0
      %v561 = vpop.trf.xlu0
      %v562 = vpop.trf.xlu0
      %v563 = vpop.trf.xlu0
      %v564 = vpop.trf.xlu0
      %v565 = vpop.trf.xlu0
      %v566 = vpop.trf.xlu0
      %v567 = vpop.trf.xlu0
      %v568 = vpop.trf.xlu0
      %v569 = vpop.trf.xlu0
      %v570 = vpop.trf.xlu0
      %v571 = vpack.c.bf16 %v468, %v468
      %v572 = vpack.c.bf16 %v556, %v555
      %v573 = vpack.c.bf16 %v558, %v557
      %v574 = vpack.c.bf16 %v534, %v534
      %vm575 = vcmask 64512
      %v577 = vsel %vm575, %v571, 0
      %vm579 = vcmask 1043456
      %v581 = vsel %vm579, %v572, 0
      %583 = vmatprep.subr.bf16.mxu0 0
      %584 = vmatpush1.bf16.msra.mxu0 %v581
      %585 = vmatprep.subr.bf16.mxu0 0
      %586 = vmatpush1.bf16.msra.mxu0 0
      %587 = vmatprep.subr.bf16.mxu0 0
      %588 = vmatpush1.bf16.msra.mxu0 0
      %589 = vmatprep.subr.bf16.mxu0 0
      %590 = vmatpush1.bf16.msra.mxu0 0
      %591 = vmatprep.subr.bf16.mxu0 0
      %592 = vmatpush1.bf16.msra.mxu0 0
      %593 = vmatprep.subr.bf16.mxu0 0
      %594 = vmatpush1.bf16.msra.mxu0 0
      %595 = vmatprep.subr.bf16.mxu0 0
      %596 = vmatpush1.bf16.msra.mxu0 0
      %597 = vmatprep.subr.bf16.mxu0 0
      %598 = vmatpush1.bf16.msra.mxu0 0
      %599 = vmatprep.subr.bf16.mxu0 0
      %600 = vmatpush1.bf16.msra.mxu0 0
      %601 = vmatprep.subr.bf16.mxu0 0
      %602 = vmatpush1.bf16.msra.mxu0 0
      %603 = vmatprep.subr.bf16.mxu0 0
      %604 = vmatpush1.bf16.msra.mxu0 0
      %605 = vmatprep.subr.bf16.mxu0 0
      %606 = vmatpush1.bf16.msra.mxu0 0
      %607 = vmatprep.subr.bf16.mxu0 0
      %608 = vmatpush1.bf16.msra.mxu0 0
      %609 = vmatprep.subr.bf16.mxu0 0
      %610 = vmatpush1.bf16.msra.mxu0 0
      %611 = vmatprep.subr.bf16.mxu0 0
      %612 = vmatpush1.bf16.msra.mxu0 0
      %613 = vmatprep.subr.bf16.mxu0 0
      %614 = vmatpush1.bf16.msra.mxu0 0
      %615 = vmatprep.mubr.bf16.mxu0 0
      %616 = vmatmul.mubr.bf16.gmra.mrb[0].mxu0 %v577
      %v617 = vpop.f32.mrb[0].mxu0
      %v618 = vadd.f32 0.0, %v617
      %v619 = vpop.f32.mrb[0].mxu0
      %v620 = vpop.f32.mrb[0].mxu0
      %v621 = vpop.f32.mrb[0].mxu0
      %622 = vdwg.mxu0
      %v623 = vsel %vm575, %v618, -inf
      %624 = vmax.xlane.f32.xlu0 %v623
      %v625 = vpop.xlane.xlu0 %624
      %v626 = vsub.f32 %v618, %v625
      %v627 = vmul.f32 %v626, 1.442695
      %v628 = vpow.pop %v627
      %v629 = vsel %vm575, %v628, 0.0
      %630 = vadd.xlane.f32.xlu0 %v629
      %v631 = vpop.xlane.xlu0 %630
      %v632 = vrcp.pop %v631
      %v633 = vmul.f32 %v628, %v632
      %v634 = vpack.c.bf16 %v633, %v633
      %636 = vrot.lane.b32.xlu0 %v574, 96
      %v637 = vpop.permute.xlu0 %636
      %v639 = vsel %vm575, %v634, 0
      %v642 = vsel %vm579, %v637, 0
      %644 = vmatprep.subr.bf16.mxu0 0
      %645 = vmatpush1.bf16.msra.mxu0 %v642
      %646 = vmatprep.subr.bf16.mxu0 0
      %647 = vmatpush1.bf16.msra.mxu0 0
      %648 = vmatprep.subr.bf16.mxu0 0
      %649 = vmatpush1.bf16.msra.mxu0 0
      %650 = vmatprep.subr.bf16.mxu0 0
      %651 = vmatpush1.bf16.msra.mxu0 0
      %652 = vmatprep.subr.bf16.mxu0 0
      %653 = vmatpush1.bf16.msra.mxu0 0
      %654 = vmatprep.subr.bf16.mxu0 0
      %655 = vmatpush1.bf16.msra.mxu0 0
      %656 = vmatprep.subr.bf16.mxu0 0
      %657 = vmatpush1.bf16.msra.mxu0 0
      %658 = vmatprep.subr.bf16.mxu0 0
      %659 = vmatpush1.bf16.msra.mxu0 0
      %660 = vmatprep.subr.bf16.mxu0 0
      %661 = vmatpush1.bf16.msra.mxu0 0
      %662 = vmatprep.subr.bf16.mxu0 0
      %663 = vmatpush1.bf16.msra.mxu0 0
      %664 = vmatprep.subr.bf16.mxu0 0
      %665 = vmatpush1.bf16.msra.mxu0 0
      %666 = vmatprep.subr.bf16.mxu0 0
      %667 = vmatpush1.bf16.msra.mxu0 0
      %668 = vmatprep.subr.bf16.mxu0 0
      %669 = vmatpush1.bf16.msra.mxu0 0
      %670 = vmatprep.subr.bf16.mxu0 0
      %671 = vmatpush1.bf16.msra.mxu0 0
      %672 = vmatprep.subr.bf16.mxu0 0
      %673 = vmatpush1.bf16.msra.mxu0 0
      %674 = vmatprep.subr.bf16.mxu0 0
      %675 = vmatpush1.bf16.msra.mxu0 0
      %676 = vmatprep.mubr.bf16.mxu0 0
      %677 = vmatmul.mubr.bf16.gmra.mrb[0].mxu0 %v639
      %v678 = vpop.f32.mrb[0].mxu0
      %v679 = vadd.f32 0.0, %v678
      %v680 = vpop.f32.mrb[0].mxu0
      %v681 = vpop.f32.mrb[0].mxu0
      %v682 = vpop.f32.mrb[0].mxu0
      %683 = vdwg.mxu0
      %685 = vrot.lane.b32.xlu0 %v571, 120
      %v686 = vpop.permute.xlu0 %685
      %v688 = vrot.slane %v572, 4
      %v690 = vsel %vm575, %v686, 0
      %v693 = vsel %vm579, %v688, 0
      %695 = vmatprep.subr.bf16.mxu0 0
      %696 = vmatpush1.bf16.msra.mxu0 %v693
      %697 = vmatprep.subr.bf16.mxu0 0
      %698 = vmatpush1.bf16.msra.mxu0 0
      %699 = vmatprep.subr.bf16.mxu0 0
      %700 = vmatpush1.bf16.msra.mxu0 0
      %701 = vmatprep.subr.bf16.mxu0 0
      %702 = vmatpush1.bf16.msra.mxu0 0
      %703 = vmatprep.subr.bf16.mxu0 0
      %704 = vmatpush1.bf16.msra.mxu0 0
      %705 = vmatprep.subr.bf16.mxu0 0
      %706 = vmatpush1.bf16.msra.mxu0 0
      %707 = vmatprep.subr.bf16.mxu0 0
      %708 = vmatpush1.bf16.msra.mxu0 0
      %709 = vmatprep.subr.bf16.mxu0 0
      %710 = vmatpush1.bf16.msra.mxu0 0
      %711 = vmatprep.subr.bf16.mxu0 0
      %712 = vmatpush1.bf16.msra.mxu0 0
      %713 = vmatprep.subr.bf16.mxu0 0
      %714 = vmatpush1.bf16.msra.mxu0 0
      %715 = vmatprep.subr.bf16.mxu0 0
      %716 = vmatpush1.bf16.msra.mxu0 0
      %717 = vmatprep.subr.bf16.mxu0 0
      %718 = vmatpush1.bf16.msra.mxu0 0
      %719 = vmatprep.subr.bf16.mxu0 0
      %720 = vmatpush1.bf16.msra.mxu0 0
      %721 = vmatprep.subr.bf16.mxu0 0
      %722 = vmatpush1.bf16.msra.mxu0 0
      %723 = vmatprep.subr.bf16.mxu0 0
      %724 = vmatpush1.bf16.msra.mxu0 0
      %725 = vmatprep.subr.bf16.mxu0 0
      %726 = vmatpush1.bf16.msra.mxu0 0
      %727 = vmatprep.mubr.bf16.mxu0 0
      %728 = vmatmul.mubr.bf16.gmra.mrb[0].mxu0 %v690
      %v729 = vpop.f32.mrb[0].mxu0
      %v730 = vadd.f32 0.0, %v729
      %v731 = vpop.f32.mrb[0].mxu0
      %v732 = vpop.f32.mrb[0].mxu0
      %v733 = vpop.f32.mrb[0].mxu0
      %734 = vdwg.mxu0
      %v735 = vsel %vm575, %v730, -inf
      %736 = vmax.xlane.f32.xlu0 %v735
      %v737 = vpop.xlane.xlu0 %736
      %v738 = vsub.f32 %v730, %v737
      %v739 = vmul.f32 %v738, 1.442695
      %v740 = vpow.pop %v739
      %v741 = vsel %vm575, %v740, 0.0
      %742 = vadd.xlane.f32.xlu0 %v741
      %v743 = vpop.xlane.xlu0 %742
      %v744 = vrcp.pop %v743
      %v745 = vmul.f32 %v740, %v744
      %v746 = vpack.c.bf16 %v745, %v745
      %747 = vrot.lane.b32.xlu0 %v574, 88
      %v748 = vpop.permute.xlu0 %747
      %v750 = vsel %vm575, %v746, 0
      %v753 = vsel %vm579, %v748, 0
      %755 = vmatprep.subr.bf16.mxu0 0
      %756 = vmatpush1.bf16.msra.mxu0 %v753
      %757 = vmatprep.subr.bf16.mxu0 0
      %758 = vmatpush1.bf16.msra.mxu0 0
      %759 = vmatprep.subr.bf16.mxu0 0
      %760 = vmatpush1.bf16.msra.mxu0 0
      %761 = vmatprep.subr.bf16.mxu0 0
      %762 = vmatpush1.bf16.msra.mxu0 0
      %763 = vmatprep.subr.bf16.mxu0 0
      %764 = vmatpush1.bf16.msra.mxu0 0
      %765 = vmatprep.subr.bf16.mxu0 0
      %766 = vmatpush1.bf16.msra.mxu0 0
      %767 = vmatprep.subr.bf16.mxu0 0
      %768 = vmatpush1.bf16.msra.mxu0 0
      %769 = vmatprep.subr.bf16.mxu0 0
      %770 = vmatpush1.bf16.msra.mxu0 0
      %771 = vmatprep.subr.bf16.mxu0 0
      %772 = vmatpush1.bf16.msra.mxu0 0
      %773 = vmatprep.subr.bf16.mxu0 0
      %774 = vmatpush1.bf16.msra.mxu0 0
      %775 = vmatprep.subr.bf16.mxu0 0
      %776 = vmatpush1.bf16.msra.mxu0 0
      %777 = vmatprep.subr.bf16.mxu0 0
      %778 = vmatpush1.bf16.msra.mxu0 0
      %779 = vmatprep.subr.bf16.mxu0 0
      %780 = vmatpush1.bf16.msra.mxu0 0
      %781 = vmatprep.subr.bf16.mxu0 0
      %782 = vmatpush1.bf16.msra.mxu0 0
      %783 = vmatprep.subr.bf16.mxu0 0
      %784 = vmatpush1.bf16.msra.mxu0 0
      %785 = vmatprep.subr.bf16.mxu0 0
      %786 = vmatpush1.bf16.msra.mxu0 0
      %787 = vmatprep.mubr.bf16.mxu0 0
      %788 = vmatmul.mubr.bf16.gmra.mrb[0].mxu0 %v750
      %v789 = vpop.f32.mrb[0].mxu0
      %v790 = vadd.f32 0.0, %v789
      %v791 = vpop.f32.mrb[0].mxu0
      %v792 = vpop.f32.mrb[0].mxu0
      %v793 = vpop.f32.mrb[0].mxu0
      %794 = vdwg.mxu0
      %795 = vrot.lane.b32.xlu0 %v571, 112
      %v796 = vpop.permute.xlu0 %795
      %v798 = vsel %vm575, %v796, 0
      %v801 = vsel %vm579, %v573, 0
      %803 = vmatprep.subr.bf16.mxu0 0
      %804 = vmatpush1.bf16.msra.mxu0 %v801
      %805 = vmatprep.subr.bf16.mxu0 0
      %806 = vmatpush1.bf16.msra.mxu0 0
      %807 = vmatprep.subr.bf16.mxu0 0
      %808 = vmatpush1.bf16.msra.mxu0 0
      %809 = vmatprep.subr.bf16.mxu0 0
      %810 = vmatpush1.bf16.msra.mxu0 0
      %811 = vmatprep.subr.bf16.mxu0 0
      %812 = vmatpush1.bf16.msra.mxu0 0
      %813 = vmatprep.subr.bf16.mxu0 0
      %814 = vmatpush1.bf16.msra.mxu0 0
      %815 = vmatprep.subr.bf16.mxu0 0
      %816 = vmatpush1.bf16.msra.mxu0 0
      %817 = vmatprep.subr.bf16.mxu0 0
      %818 = vmatpush1.bf16.msra.mxu0 0
      %819 = vmatprep.subr.bf16.mxu0 0
      %820 = vmatpush1.bf16.msra.mxu0 0
      %821 = vmatprep.subr.bf16.mxu0 0
      %822 = vmatpush1.bf16.msra.mxu0 0
      %823 = vmatprep.subr.bf16.mxu0 0
      %824 = vmatpush1.bf16.msra.mxu0 0
      %825 = vmatprep.subr.bf16.mxu0 0
      %826 = vmatpush1.bf16.msra.mxu0 0
      %827 = vmatprep.subr.bf16.mxu0 0
      %828 = vmatpush1.bf16.msra.mxu0 0
      %829 = vmatprep.subr.bf16.mxu0 0
      %830 = vmatpush1.bf16.msra.mxu0 0
      %831 = vmatprep.subr.bf16.mxu0 0
      %832 = vmatpush1.bf16.msra.mxu0 0
      %833 = vmatprep.subr.bf16.mxu0 0
      %834 = vmatpush1.bf16.msra.mxu0 0
      %835 = vmatprep.mubr.bf16.mxu0 0
      %836 = vmatmul.mubr.bf16.gmra.mrb[0].mxu0 %v798
      %v837 = vpop.f32.mrb[0].mxu0
      %v838 = vadd.f32 0.0, %v837
      %v839 = vpop.f32.mrb[0].mxu0
      %v840 = vpop.f32.mrb[0].mxu0
      %v841 = vpop.f32.mrb[0].mxu0
      %842 = vdwg.mxu0
      %v843 = vsel %vm575, %v838, -inf
      %844 = vmax.xlane.f32.xlu0 %v843
      %v845 = vpop.xlane.xlu0 %844
      %v846 = vsub.f32 %v838, %v845
      %v847 = vmul.f32 %v846, 1.442695
      %v848 = vpow.pop %v847
      %v849 = vsel %vm575, %v848, 0.0
      %850 = vadd.xlane.f32.xlu0 %v849
      %v851 = vpop.xlane.xlu0 %850
      %v852 = vrcp.pop %v851
      %v853 = vmul.f32 %v848, %v852
      %v854 = vpack.c.bf16 %v853, %v853
      %855 = vrot.lane.b32.xlu0 %v574, 80
      %v856 = vpop.permute.xlu0 %855
      %v858 = vsel %vm575, %v854, 0
      %v861 = vsel %vm579, %v856, 0
      %863 = vmatprep.subr.bf16.mxu0 0
      %864 = vmatpush1.bf16.msra.mxu0 %v861
      %865 = vmatprep.subr.bf16.mxu0 0
      %866 = vmatpush1.bf16.msra.mxu0 0
      %867 = vmatprep.subr.bf16.mxu0 0
      %868 = vmatpush1.bf16.msra.mxu0 0
      %869 = vmatprep.subr.bf16.mxu0 0
      %870 = vmatpush1.bf16.msra.mxu0 0
      %871 = vmatprep.subr.bf16.mxu0 0
      %872 = vmatpush1.bf16.msra.mxu0 0
      %873 = vmatprep.subr.bf16.mxu0 0
      %874 = vmatpush1.bf16.msra.mxu0 0
      %875 = vmatprep.subr.bf16.mxu0 0
      %876 = vmatpush1.bf16.msra.mxu0 0
      %877 = vmatprep.subr.bf16.mxu0 0
      %878 = vmatpush1.bf16.msra.mxu0 0
      %879 = vmatprep.subr.bf16.mxu0 0
      %880 = vmatpush1.bf16.msra.mxu0 0
      %881 = vmatprep.subr.bf16.mxu0 0
      %882 = vmatpush1.bf16.msra.mxu0 0
      %883 = vmatprep.subr.bf16.mxu0 0
      %884 = vmatpush1.bf16.msra.mxu0 0
      %885 = vmatprep.subr.bf16.mxu0 0
      %886 = vmatpush1.bf16.msra.mxu0 0
      %887 = vmatprep.subr.bf16.mxu0 0
      %888 = vmatpush1.bf16.msra.mxu0 0
      %889 = vmatprep.subr.bf16.mxu0 0
      %890 = vmatpush1.bf16.msra.mxu0 0
      %891 = vmatprep.subr.bf16.mxu0 0
      %892 = vmatpush1.bf16.msra.mxu0 0
      %893 = vmatprep.subr.bf16.mxu0 0
      %894 = vmatpush1.bf16.msra.mxu0 0
      %895 = vmatprep.mubr.bf16.mxu0 0
      %896 = vmatmul.mubr.bf16.gmra.mrb[0].mxu0 %v858
      %v897 = vpop.f32.mrb[0].mxu0
      %v898 = vadd.f32 0.0, %v897
      %v899 = vpop.f32.mrb[0].mxu0
      %v900 = vpop.f32.mrb[0].mxu0
      %v901 = vpop.f32.mrb[0].mxu0
      %902 = vdwg.mxu0
      %903 = vrot.lane.b32.xlu0 %v571, 104
      %v904 = vpop.permute.xlu0 %903
      %v906 = vrot.slane %v573, 4
      %v908 = vsel %vm575, %v904, 0
      %v911 = vsel %vm579, %v906, 0
      %913 = vmatprep.subr.bf16.mxu0 0
      %914 = vmatpush1.bf16.msra.mxu0 %v911
      %915 = vmatprep.subr.bf16.mxu0 0
      %916 = vmatpush1.bf16.msra.mxu0 0
      %917 = vmatprep.subr.bf16.mxu0 0
      %918 = vmatpush1.bf16.msra.mxu0 0
      %919 = vmatprep.subr.bf16.mxu0 0
      %920 = vmatpush1.bf16.msra.mxu0 0
      %921 = vmatprep.subr.bf16.mxu0 0
      %922 = vmatpush1.bf16.msra.mxu0 0
      %923 = vmatprep.subr.bf16.mxu0 0
      %924 = vmatpush1.bf16.msra.mxu0 0
      %925 = vmatprep.subr.bf16.mxu0 0
      %926 = vmatpush1.bf16.msra.mxu0 0
      %927 = vmatprep.subr.bf16.mxu0 0
      %928 = vmatpush1.bf16.msra.mxu0 0
      %929 = vmatprep.subr.bf16.mxu0 0
      %930 = vmatpush1.bf16.msra.mxu0 0
      %931 = vmatprep.subr.bf16.mxu0 0
      %932 = vmatpush1.bf16.msra.mxu0 0
      %933 = vmatprep.subr.bf16.mxu0 0
      %934 = vmatpush1.bf16.msra.mxu0 0
      %935 = vmatprep.subr.bf16.mxu0 0
      %936 = vmatpush1.bf16.msra.mxu0 0
      %937 = vmatprep.subr.bf16.mxu0 0
      %938 = vmatpush1.bf16.msra.mxu0 0
      %939 = vmatprep.subr.bf16.mxu0 0
      %940 = vmatpush1.bf16.msra.mxu0 0
      %941 = vmatprep.subr.bf16.mxu0 0
      %942 = vmatpush1.bf16.msra.mxu0 0
      %943 = vmatprep.subr.bf16.mxu0 0
      %944 = vmatpush1.bf16.msra.mxu0 0
      %945 = vmatprep.mubr.bf16.mxu0 0
      %946 = vmatmul.mubr.bf16.gmra.mrb[0].mxu0 %v908
      %v947 = vpop.f32.mrb[0].mxu0
      %v948 = vadd.f32 0.0, %v947
      %v949 = vpop.f32.mrb[0].mxu0
      %v950 = vpop.f32.mrb[0].mxu0
      %v951 = vpop.f32.mrb[0].mxu0
      %952 = vdwg.mxu0
      %v953 = vsel %vm575, %v948, -inf
      %954 = vmax.xlane.f32.xlu0 %v953
      %v955 = vpop.xlane.xlu0 %954
      %v956 = vsub.f32 %v948, %v955
      %v957 = vmul.f32 %v956, 1.442695
      %v958 = vpow.pop %v957
      %v959 = vsel %vm575, %v958, 0.0
      %960 = vadd.xlane.f32.xlu0 %v959
      %v961 = vpop.xlane.xlu0 %960
      %v962 = vrcp.pop %v961
      %v963 = vmul.f32 %v958, %v962
      %v964 = vpack.c.bf16 %v963, %v963
      %965 = vrot.lane.b32.xlu0 %v574, 72
      %v966 = vpop.permute.xlu0 %965
      %v968 = vsel %vm575, %v964, 0
      %v971 = vsel %vm579, %v966, 0
      %973 = vmatprep.subr.bf16.mxu0 0
      %974 = vmatpush1.bf16.msra.mxu0 %v971
      %975 = vmatprep.subr.bf16.mxu0 0
      %976 = vmatpush1.bf16.msra.mxu0 0
      %977 = vmatprep.subr.bf16.mxu0 0
      %978 = vmatpush1.bf16.msra.mxu0 0
      %979 = vmatprep.subr.bf16.mxu0 0
      %980 = vmatpush1.bf16.msra.mxu0 0
      %981 = vmatprep.subr.bf16.mxu0 0
      %982 = vmatpush1.bf16.msra.mxu0 0
      %983 = vmatprep.subr.bf16.mxu0 0
      %984 = vmatpush1.bf16.msra.mxu0 0
      %985 = vmatprep.subr.bf16.mxu0 0
      %986 = vmatpush1.bf16.msra.mxu0 0
      %987 = vmatprep.subr.bf16.mxu0 0
      %988 = vmatpush1.bf16.msra.mxu0 0
      %989 = vmatprep.subr.bf16.mxu0 0
      %990 = vmatpush1.bf16.msra.mxu0 0
      %991 = vmatprep.subr.bf16.mxu0 0
      %992 = vmatpush1.bf16.msra.mxu0 0
      %993 = vmatprep.subr.bf16.mxu0 0
      %994 = vmatpush1.bf16.msra.mxu0 0
      %995 = vmatprep.subr.bf16.mxu0 0
      %996 = vmatpush1.bf16.msra.mxu0 0
      %997 = vmatprep.subr.bf16.mxu0 0
      %998 = vmatpush1.bf16.msra.mxu0 0
      %999 = vmatprep.subr.bf16.mxu0 0
      %1000 = vmatpush1.bf16.msra.mxu0 0
      %1001 = vmatprep.subr.bf16.mxu0 0
      %1002 = vmatpush1.bf16.msra.mxu0 0
      %1003 = vmatprep.subr.bf16.mxu0 0
      %1004 = vmatpush1.bf16.msra.mxu0 0
      %1005 = vmatprep.mubr.bf16.mxu0 0
      %1006 = vmatmul.mubr.bf16.gmra.mrb[0].mxu0 %v968
      %v1007 = vpop.f32.mrb[0].mxu0
      %v1008 = vadd.f32 0.0, %v1007
      %v1009 = vpop.f32.mrb[0].mxu0
      %v1010 = vpop.f32.mrb[0].mxu0
      %v1011 = vpop.f32.mrb[0].mxu0
      %1012 = vdwg.mxu0
      %1014 = vrot.lane.b32.xlu0 %v790, 8
      %v1015 = vpop.permute.xlu0 %1014
      %1018 = vrot.lane.b32.xlu0 %v898, 16
      %v1019 = vpop.permute.xlu0 %1018
      %1022 = vrot.lane.b32.xlu0 %v1008, 24
      %v1023 = vpop.permute.xlu0 %1022
      %v1025 = vsel %vm575, %v679, %v1015
      %vm1026 = vcmask 130048
      %v1027 = vsel %vm1026, %v1025, %v1019
      %vm1028 = vcmask 195584
      %v1029 = vsel %vm1028, %v1027, %v1023
      %v1030 = vpack.c.bf16 %v1029, %v1029
      %v1031 = vld [vmem:[%s6] sm:$0xf]
      %v1032 = vld [vmem:[%s6 + $0x4] sm:$0xf]
      %v1033 = vld [vmem:[%s6 + $0x8] sm:$0xf]
      %v1034 = vld [vmem:[%s6 + $0xc] sm:$0xf]
      %v1035 = vld [vmem:[%s7] sm:$0x1]
      %v1037 = vlaneseq
      %v1038 = vshrl.u32 %v1037, 7
      %v1039 = vsub.s32 0, %v1038
      %v1040 = vrot.slane %v1035, %v1039
      %v1046 = vunpack.c.l.b16 %v1031
      %v1047 = vunpack.c.l.b16 %v1032
      %v1048 = vunpack.c.l.b16 %v1033
      %v1049 = vunpack.c.l.b16 %v1034
      %v1050 = vpack.c.b16 %v1047, %v1046
      %v1051 = vpack.c.b16 %v1049, %v1048
      %v1055 = vsel %vm429, %v1030, 0
      %1057 = vmatprep.subr.bf16.mxu0 0
      %1058 = vmatpush1.bf16.msra.mxu0 %v1050
      %1059 = vmatprep.subr.bf16.mxu0 0
      %1060 = vmatpush1.bf16.msra.mxu0 %v1051
      %1061 = vmatprep.subr.bf16.mxu0 0
      %1062 = vmatpush1.bf16.msra.mxu0 0
      %1063 = vmatprep.subr.bf16.mxu0 0
      %1064 = vmatpush1.bf16.msra.mxu0 0
      %1065 = vmatprep.subr.bf16.mxu0 0
      %1066 = vmatpush1.bf16.msra.mxu0 0
      %1067 = vmatprep.subr.bf16.mxu0 0
      %1068 = vmatpush1.bf16.msra.mxu0 0
      %1069 = vmatprep.subr.bf16.mxu0 0
      %1070 = vmatpush1.bf16.msra.mxu0 0
      %1071 = vmatprep.subr.bf16.mxu0 0
      %1072 = vmatpush1.bf16.msra.mxu0 0
      %1073 = vmatprep.subr.bf16.mxu0 0
      %1074 = vmatpush1.bf16.msra.mxu0 0
      %1075 = vmatprep.subr.bf16.mxu0 0
      %1076 = vmatpush1.bf16.msra.mxu0 0
      %1077 = vmatprep.subr.bf16.mxu0 0
      %1078 = vmatpush1.bf16.msra.mxu0 0
      %1079 = vmatprep.subr.bf16.mxu0 0
      %1080 = vmatpush1.bf16.msra.mxu0 0
      %1081 = vmatprep.subr.bf16.mxu0 0
      %1082 = vmatpush1.bf16.msra.mxu0 0
      %1083 = vmatprep.subr.bf16.mxu0 0
      %1084 = vmatpush1.bf16.msra.mxu0 0
      %1085 = vmatprep.subr.bf16.mxu0 0
      %1086 = vmatpush1.bf16.msra.mxu0 0
      %1087 = vmatprep.subr.bf16.mxu0 0
      %1088 = vmatpush1.bf16.msra.mxu0 0
      %1089 = vmatprep.mubr.bf16.mxu0 0
      %1090 = vmatmul.mubr.bf16.gmra.mrb[0].mxu0 %v1055
      %v1091 = vpop.f32.mrb[0].mxu0
      %v1092 = vadd.f32 %v1040, %v1091
      %v1093 = vpop.f32.mrb[0].mxu0
      %v1094 = vpop.f32.mrb[0].mxu0
      %v1095 = vpop.f32.mrb[0].mxu0
      %1096 = vdwg.mxu0
      %v1097 = vunpack.c.l.bf16 %v404
      %v1098 = vadd.f32 %v1097, %v1092
      %v1099 = vld [vmem:[%s8] sm:$0x1]
      %v1100 = vld [vmem:[%s9] sm:$0x1]
      %v1101 = vsel %vm429, %v1098, 0.0
      %1102 = vadd.xlane.f32.xlu0 %v1101
      %v1103 = vpop.xlane.xlu0 %1102
      %v1104 = vrcp.pop 32.0
      %v1105 = vmul.f32 %v1103, %v1104
      %v1106 = vsub.f32 %v1098, %v1105
      %v1107 = vmul.f32 %v1106, %v1106
      %v1108 = vsel %vm429, %v1107, 0.0
      %1109 = vadd.xlane.f32.xlu0 %v1108
      %v1110 = vpop.xlane.xlu0 %1109
      %v1111 = vmul.f32 %v1110, %v1104
      %v1112 = vadd.f32 %v1111, 1e-05
      %v1113 = vrsqrt.pop %v1112
      %v1114 = vmul.f32 %v1106, %v1113
      %v1116 = vlaneseq
      %v1117 = vshrl.u32 %v1116, 7
      %v1118 = vsub.s32 0, %v1117
      %v1119 = vrot.slane %v1099, %v1118
      %v1121 = vmul.f32 %v1114, %v1119
      %v1123 = vlaneseq
      %v1124 = vshrl.u32 %v1123, 7
      %v1125 = vsub.s32 0, %v1124
      %v1126 = vrot.slane %v1100, %v1125
      %v1128 = vadd.f32 %v1121, %v1126
      %v1129 = vpack.c.bf16 %v1128, %v1128
      %vm1130 = vcmask 257024
      %1131 = vst.msk [vmem:[%s402] sm:$0xf] %vm1130, %v1129
      %p1132 = scmp.lt.s32.totalorder %s25, 1
      %s1133 = scalar_select %p1132, %s25, 1
      %p1134 = scmp.lt.s32.totalorder %s26, 0
      %s1135 = scalar_select %p1134, %s26, 0
      %s1136 = sadd.s32 %s1135, %s1133
      %s1137 = smul.addr %s1136, 4
      %s1138 = scalar_lea.vmem %s10, %s1137
      // Predicated region
      $region61: #{forward.15} parent=59 // pred_check
        %p1139 = pneg %p275
      $region62: #{forward.15} parent=59 // pred_check_branch
        %1141 = sbr.rel (%p1139) target = $region64
      $region63: #{forward.15} parent=59 // pred_region
        _
      $region64: #{forward.15} parent=59 // pred_fallthru
        _
    $region60: #{forward.15} parent=5 // pred_fallthru
      _
    %p1142 = scmp.le.s32.totalorder 2, %s16
    // Predicated region
    $region65: #{forward.15} parent=5 // pred_check
      %p1143 = pneg %p1142
    $region66: #{forward.15} parent=5 // pred_check_branch
      %1145 = sbr.rel (%p1143) target = $region68
    $region67: #{forward.15} parent=5 // pred_region
      %s1146 = ssub.s32 %s16, 2
      // Predicated region
      $region69: #{forward.15} parent=67 // pred_check
        %p1147 = pneg %p281
      $region70: #{forward.15} parent=67 // pred_check_branch
        %1149 = sbr.rel (%p1147) target = $region72
      $region71: #{forward.15} parent=67 // pred_region
        %p1150 = scmp.lt.s32.totalorder %s27, 1
        %s1151 = scalar_select %p1150, %s27, 1
        %p1152 = scmp.lt.s32.totalorder %s28, 0
        %s1153 = scalar_select %p1152, %s28, 0
        %s1154 = sadd.s32 %s1153, %s1151
        %s1155 = smul.addr %s1154, 4
        %s1156 = scalar_lea.vmem %s10, %s1155
      $region72: #{forward.15} parent=67 // pred_fallthru
        _
    $region68: #{forward.15} parent=5 // pred_fallthru
      _
  $region6: #{forward.15} parent=0 // loop_footer
    %s20 = sadd.s32 1, %s16
  $region7: #{forward.15} parent=0 // loop_footer_branch
    %15 = sbr.rel target = $region3
  $region8: #{forward.15} parent=0 // loop_exit
    _

// kernel: forward.11
$region0: #{forward.11}
  #allocation0 [shape = 'u32[]', space=smem, size = 0x4, offset = 0x4, fixed_abs, tag = 'smem constant byte address 0x4 - core index']
  #allocation1 [shape = 'u32[144,128]{1,0:T(1,128)}', space=vmem, size = 0x12000, scoped, tag = 'internal scratch']
  %s0 = inlined_call_operand.vmem [shape: bf16[2,8,32], index: 0, kind: input, shape index: {}, may-alias: {0,1}]
  %s1 = inlined_call_operand.vmem [shape: bf16[2,8,32], index: 1, kind: input, shape index: {}, may-alias: {0,1}]
  %s2 = inlined_call_operand.vmem [shape: f32[2,1,8], index: 2, kind: input, shape index: {}]
  %s3 = inlined_call_operand.vmem [shape: bf16[32,32], index: 3, kind: input, shape index: {}]
  %s4 = inlined_call_operand.vmem [shape: f32[1,32], index: 4, kind: input, shape index: {}]
  %s5 = inlined_call_operand.vmem [shape: bf16[32,64], index: 5, kind: input, shape index: {}]
  %s6 = inlined_call_operand.vmem [shape: f32[1,64], index: 6, kind: input, shape index: {}]
  %s7 = inlined_call_operand.vmem [shape: bf16[32,32], index: 7, kind: input, shape index: {}]
  %s8 = inlined_call_operand.vmem [shape: f32[1,32], index: 8, kind: input, shape index: {}]
  %s9 = inlined_call_operand.vmem [shape: f32[1,32], index: 9, kind: input, shape index: {}]
  %s10 = inlined_call_operand.vmem [shape: f32[1,32], index: 10, kind: input, shape index: {}]
  %s11 = inlined_call_operand.vmem [shape: bf16[2,8,32], index: 11, kind: output, shape index: {}]
  %s12 = sld [smem:[#allocation0]]
  $region77: #{forward.11} parent=0
    _
  %s14 = ssub.s32 1, %s12
  %s15 = scalar_select 0, %s14, %s12
  loop: start=0, step=1, limit=4
  $region2: #{forward.11} parent=0 // loop_pre_header
    _
  $region3: #{forward.11} parent=0 // loop_header
    %s17 = sphi 0, %s21
    %p18 = scmp.ge.s32.totalorder %s17, 4
    %s24 = sphi 0, %s36
    %s25 = sphi 0, %s32
    %s26 = sphi 0, %s24
    %s27 = sphi 0, %s25
    %s28 = sphi 0, %s26
    %s29 = sphi 0, %s27
    %s41 = sphi 0, %s43
    %s44 = sphi 0, %s41
    %s45 = sphi 0, %s44
    %s61 = sphi 0, %s45
    %s67 = sphi 0, %s69
    %s70 = sphi 0, %s67
    %s71 = sphi 0, %s70
    %s87 = sphi 0, %s71
    %s93 = sphi 0, %s95
    %s96 = sphi 0, %s93
    %s97 = sphi 0, %s96
    %s113 = sphi 0, %s97
    %s117 = sphi 0, %s117
    %s119 = sphi 0, %s117
    %s120 = sphi 0, %s119
    %s134 = sphi 0, %s120
    %s138 = sphi 0, %s138
    %s140 = sphi 0, %s138
    %s141 = sphi 0, %s140
    %s155 = sphi 0, %s141
    %s159 = sphi 0, %s159
    %s161 = sphi 0, %s159
    %s162 = sphi 0, %s161
    %s176 = sphi 0, %s162
    %s180 = sphi 0, %s180
    %s182 = sphi 0, %s180
    %s183 = sphi 0, %s182
    %s197 = sphi 0, %s183
    %s201 = sphi 0, %s201
    %s203 = sphi 0, %s201
    %s204 = sphi 0, %s203
    %s218 = sphi 0, %s204
    %s222 = sphi 0, %s222
    %s224 = sphi 0, %s222
    %s225 = sphi 0, %s224
    %s239 = sphi 0, %s225
    %s243 = sphi 0, %s243
    %s245 = sphi 0, %s243
    %s246 = sphi 0, %s245
    %s260 = sphi 0, %s246
    %s264 = sphi 0, %s264
    %s266 = sphi 0, %s264
    %s267 = sphi 0, %s266
    %s281 = sphi 0, %s267
    %s289 = sphi 0, %s291
    %s292 = sphi 0, %s289
    %s293 = sphi 0, %s292
    %s309 = sphi 0, %s293
  $region4: #{forward.11} parent=0 // loop_header_branch
    %20 = sbr.rel (%p18) target = $region8
  $region5: #{forward.11} parent=0 // loop_body
    %s22 = ssub.s32 %s17, 1
    %s23 = ssub.s32 %s17, 2
    %s30 = sadd.s32 1, %s25
    %p31 = scmp.ge.s32.totalorder %s30, 1
    %s32 = scalar_select %p31, 0, %s30
    %s33 = sadd.s32 1, %s24
    %s34 = scalar_select %p31, %s33, %s24
    %p35 = scmp.ge.s32.totalorder %s34, 2
    %s36 = scalar_select %p35, 0, %s34
    %s37 = ssub.s32 %s24, %s36
    %s38 = ssub.s32 %s25, %s32
    %s39 = sor.u32 %s37, %s38
    %p40 = scmp.eq.s32.totalorder %s39, 0
    %s42 = sadd.s32 %s41, 1
    %s43 = scalar_select %p40, %s41, %s42
    %p46 = pneg %p40
    %p47 = scmp.eq.s32.totalorder %s17, 1
    %p48 = por %p46, %p47
    %p49 = scmp.ne.s32.totalorder %s41, %s44
    %p50 = scmp.eq.s32.totalorder %s17, 0
    %p51 = por %p49, %p50
    %p52 = scmp.ne.s32.totalorder %s41, %s44
    %p53 = scmp.eq.s32.totalorder %s22, 1
    %p54 = por %p52, %p53
    %p55 = scmp.ne.s32.totalorder %s44, %s45
    %p56 = scmp.eq.s32.totalorder %s22, 0
    %p57 = por %p55, %p56
    %p58 = scmp.ne.s32.totalorder %s44, %s45
    %p59 = scmp.eq.s32.totalorder %s23, 1
    %p60 = por %p58, %p59
    %p62 = scmp.ne.s32.totalorder %s45, %s61
    %p63 = scmp.eq.s32.totalorder %s23, 0
    %p64 = por %p62, %p63
    %s65 = ssub.s32 %s24, %s36
    %p66 = scmp.eq.s32.totalorder %s65, 0
    %s68 = sadd.s32 %s67, 1
    %s69 = scalar_select %p66, %s67, %s68
    %p72 = pneg %p66
    %p73 = scmp.eq.s32.totalorder %s17, 1
    %p74 = por %p72, %p73
    %p75 = scmp.ne.s32.totalorder %s67, %s70
    %p76 = scmp.eq.s32.totalorder %s17, 0
    %p77 = por %p75, %p76
    %p78 = scmp.ne.s32.totalorder %s67, %s70
    %p79 = scmp.eq.s32.totalorder %s22, 1
    %p80 = por %p78, %p79
    %p81 = scmp.ne.s32.totalorder %s70, %s71
    %p82 = scmp.eq.s32.totalorder %s22, 0
    %p83 = por %p81, %p82
    %p84 = scmp.ne.s32.totalorder %s70, %s71
    %p85 = scmp.eq.s32.totalorder %s23, 1
    %p86 = por %p84, %p85
    %p88 = scmp.ne.s32.totalorder %s71, %s87
    %p89 = scmp.eq.s32.totalorder %s23, 0
    %p90 = por %p88, %p89
    %s91 = ssub.s32 %s24, %s36
    %p92 = scmp.eq.s32.totalorder %s91, 0
    %s94 = sadd.s32 %s93, 1
    %s95 = scalar_select %p92, %s93, %s94
    %p98 = pneg %p92
    %p99 = scmp.eq.s32.totalorder %s17, 1
    %p100 = por %p98, %p99
    %p101 = scmp.ne.s32.totalorder %s93, %s96
    %p102 = scmp.eq.s32.totalorder %s17, 0
    %p103 = por %p101, %p102
    %p104 = scmp.ne.s32.totalorder %s93, %s96
    %p105 = scmp.eq.s32.totalorder %s22, 1
    %p106 = por %p104, %p105
    %p107 = scmp.ne.s32.totalorder %s96, %s97
    %p108 = scmp.eq.s32.totalorder %s22, 0
    %p109 = por %p107, %p108
    %p110 = scmp.ne.s32.totalorder %s96, %s97
    %p111 = scmp.eq.s32.totalorder %s23, 1
    %p112 = por %p110, %p111
    %p114 = scmp.ne.s32.totalorder %s97, %s113
    %p115 = scmp.eq.s32.totalorder %s23, 0
    %p116 = por %p114, %p115
    %s118 = sadd.s32 %s117, 1
    %p121 = scmp.eq.s32.totalorder %s17, 1
    %p122 = scmp.ne.s32.totalorder %s117, %s119
    %p123 = scmp.eq.s32.totalorder %s17, 0
    %p124 = por %p122, %p123
    %p125 = scmp.ne.s32.totalorder %s117, %s119
    %p126 = scmp.eq.s32.totalorder %s22, 1
    %p127 = por %p125, %p126
    %p128 = scmp.ne.s32.totalorder %s119, %s120
    %p129 = scmp.eq.s32.totalorder %s22, 0
    %p130 = por %p128, %p129
    %p131 = scmp.ne.s32.totalorder %s119, %s120
    %p132 = scmp.eq.s32.totalorder %s23, 1
    %p133 = por %p131, %p132
    %p135 = scmp.ne.s32.totalorder %s120, %s134
    %p136 = scmp.eq.s32.totalorder %s23, 0
    %p137 = por %p135, %p136
    %s139 = sadd.s32 %s138, 1
    %p142 = scmp.eq.s32.totalorder %s17, 1
    %p143 = scmp.ne.s32.totalorder %s138, %s140
    %p144 = scmp.eq.s32.totalorder %s17, 0
    %p145 = por %p143, %p144
    %p146 = scmp.ne.s32.totalorder %s138, %s140
    %p147 = scmp.eq.s32.totalorder %s22, 1
    %p148 = por %p146, %p147
    %p149 = scmp.ne.s32.totalorder %s140, %s141
    %p150 = scmp.eq.s32.totalorder %s22, 0
    %p151 = por %p149, %p150
    %p152 = scmp.ne.s32.totalorder %s140, %s141
    %p153 = scmp.eq.s32.totalorder %s23, 1
    %p154 = por %p152, %p153
    %p156 = scmp.ne.s32.totalorder %s141, %s155
    %p157 = scmp.eq.s32.totalorder %s23, 0
    %p158 = por %p156, %p157
    %s160 = sadd.s32 %s159, 1
    %p163 = scmp.eq.s32.totalorder %s17, 1
    %p164 = scmp.ne.s32.totalorder %s159, %s161
    %p165 = scmp.eq.s32.totalorder %s17, 0
    %p166 = por %p164, %p165
    %p167 = scmp.ne.s32.totalorder %s159, %s161
    %p168 = scmp.eq.s32.totalorder %s22, 1
    %p169 = por %p167, %p168
    %p170 = scmp.ne.s32.totalorder %s161, %s162
    %p171 = scmp.eq.s32.totalorder %s22, 0
    %p172 = por %p170, %p171
    %p173 = scmp.ne.s32.totalorder %s161, %s162
    %p174 = scmp.eq.s32.totalorder %s23, 1
    %p175 = por %p173, %p174
    %p177 = scmp.ne.s32.totalorder %s162, %s176
    %p178 = scmp.eq.s32.totalorder %s23, 0
    %p179 = por %p177, %p178
    %s181 = sadd.s32 %s180, 1
    %p184 = scmp.eq.s32.totalorder %s17, 1
    %p185 = scmp.ne.s32.totalorder %s180, %s182
    %p186 = scmp.eq.s32.totalorder %s17, 0
    %p187 = por %p185, %p186
    %p188 = scmp.ne.s32.totalorder %s180, %s182
    %p189 = scmp.eq.s32.totalorder %s22, 1
    %p190 = por %p188, %p189
    %p191 = scmp.ne.s32.totalorder %s182, %s183
    %p192 = scmp.eq.s32.totalorder %s22, 0
    %p193 = por %p191, %p192
    %p194 = scmp.ne.s32.totalorder %s182, %s183
    %p195 = scmp.eq.s32.totalorder %s23, 1
    %p196 = por %p194, %p195
    %p198 = scmp.ne.s32.totalorder %s183, %s197
    %p199 = scmp.eq.s32.totalorder %s23, 0
    %p200 = por %p198, %p199
    %s202 = sadd.s32 %s201, 1
    %p205 = scmp.eq.s32.totalorder %s17, 1
    %p206 = scmp.ne.s32.totalorder %s201, %s203
    %p207 = scmp.eq.s32.totalorder %s17, 0
    %p208 = por %p206, %p207
    %p209 = scmp.ne.s32.totalorder %s201, %s203
    %p210 = scmp.eq.s32.totalorder %s22, 1
    %p211 = por %p209, %p210
    %p212 = scmp.ne.s32.totalorder %s203, %s204
    %p213 = scmp.eq.s32.totalorder %s22, 0
    %p214 = por %p212, %p213
    %p215 = scmp.ne.s32.totalorder %s203, %s204
    %p216 = scmp.eq.s32.totalorder %s23, 1
    %p217 = por %p215, %p216
    %p219 = scmp.ne.s32.totalorder %s204, %s218
    %p220 = scmp.eq.s32.totalorder %s23, 0
    %p221 = por %p219, %p220
    %s223 = sadd.s32 %s222, 1
    %p226 = scmp.eq.s32.totalorder %s17, 1
    %p227 = scmp.ne.s32.totalorder %s222, %s224
    %p228 = scmp.eq.s32.totalorder %s17, 0
    %p229 = por %p227, %p228
    %p230 = scmp.ne.s32.totalorder %s222, %s224
    %p231 = scmp.eq.s32.totalorder %s22, 1
    %p232 = por %p230, %p231
    %p233 = scmp.ne.s32.totalorder %s224, %s225
    %p234 = scmp.eq.s32.totalorder %s22, 0
    %p235 = por %p233, %p234
    %p236 = scmp.ne.s32.totalorder %s224, %s225
    %p237 = scmp.eq.s32.totalorder %s23, 1
    %p238 = por %p236, %p237
    %p240 = scmp.ne.s32.totalorder %s225, %s239
    %p241 = scmp.eq.s32.totalorder %s23, 0
    %p242 = por %p240, %p241
    %s244 = sadd.s32 %s243, 1
    %p247 = scmp.eq.s32.totalorder %s17, 1
    %p248 = scmp.ne.s32.totalorder %s243, %s245
    %p249 = scmp.eq.s32.totalorder %s17, 0
    %p250 = por %p248, %p249
    %p251 = scmp.ne.s32.totalorder %s243, %s245
    %p252 = scmp.eq.s32.totalorder %s22, 1
    %p253 = por %p251, %p252
    %p254 = scmp.ne.s32.totalorder %s245, %s246
    %p255 = scmp.eq.s32.totalorder %s22, 0
    %p256 = por %p254, %p255
    %p257 = scmp.ne.s32.totalorder %s245, %s246
    %p258 = scmp.eq.s32.totalorder %s23, 1
    %p259 = por %p257, %p258
    %p261 = scmp.ne.s32.totalorder %s246, %s260
    %p262 = scmp.eq.s32.totalorder %s23, 0
    %p263 = por %p261, %p262
    %s265 = sadd.s32 %s264, 1
    %p268 = scmp.eq.s32.totalorder %s17, 1
    %p269 = scmp.ne.s32.totalorder %s264, %s266
    %p270 = scmp.eq.s32.totalorder %s17, 0
    %p271 = por %p269, %p270
    %p272 = scmp.ne.s32.totalorder %s264, %s266
    %p273 = scmp.eq.s32.totalorder %s22, 1
    %p274 = por %p272, %p273
    %p275 = scmp.ne.s32.totalorder %s266, %s267
    %p276 = scmp.eq.s32.totalorder %s22, 0
    %p277 = por %p275, %p276
    %p278 = scmp.ne.s32.totalorder %s266, %s267
    %p279 = scmp.eq.s32.totalorder %s23, 1
    %p280 = por %p278, %p279
    %p282 = scmp.ne.s32.totalorder %s267, %s281
    %p283 = scmp.eq.s32.totalorder %s23, 0
    %p284 = por %p282, %p283
    %s285 = ssub.s32 %s24, %s36
    %s286 = ssub.s32 %s25, %s32
    %s287 = sor.u32 %s285, %s286
    %p288 = scmp.eq.s32.totalorder %s287, 0
    %s290 = sadd.s32 %s289, 1
    %s291 = scalar_select %p288, %s289, %s290
    %p294 = pneg %p288
    %p295 = scmp.eq.s32.totalorder %s17, 1
    %p296 = por %p294, %p295
    %p297 = scmp.ne.s32.totalorder %s289, %s292
    %p298 = scmp.eq.s32.totalorder %s17, 0
    %p299 = por %p297, %p298
    %p300 = scmp.ne.s32.totalorder %s289, %s292
    %p301 = scmp.eq.s32.totalorder %s22, 1
    %p302 = por %p300, %p301
    %p303 = scmp.ne.s32.totalorder %s292, %s293
    %p304 = scmp.eq.s32.totalorder %s22, 0
    %p305 = por %p303, %p304
    %p306 = scmp.ne.s32.totalorder %s292, %s293
    %p307 = scmp.eq.s32.totalorder %s23, 1
    %p308 = por %p306, %p307
    %p310 = scmp.ne.s32.totalorder %s293, %s309
    %p311 = scmp.eq.s32.totalorder %s23, 0
    %p312 = por %p310, %p311
    %p313 = scmp.le.s32.totalorder 1, %s17
    %p314 = scmp.lt.s32.totalorder %s17, 3
    %p315 = pnand %p313, %p314
    %p316 = pneg %p315
    // Predicated region
    $region9: #{forward.11} parent=5 // pred_check
      _
    $region10: #{forward.11} parent=5 // pred_check_branch
      %318 = sbr.rel (%p315) target = $region12
    $region11: #{forward.11} parent=5 // pred_region
      %s319 = ssub.s32 %s17, 1
      // Predicated region
      $region13: #{forward.11} parent=11 // pred_check
        %p320 = pneg %p130
      $region14: #{forward.11} parent=11 // pred_check_branch
        %322 = sbr.rel (%p320) target = $region16
      $region15: #{forward.11} parent=11 // pred_region
        _
      $region16: #{forward.11} parent=11 // pred_fallthru
        _
      // Predicated region
      $region17: #{forward.11} parent=11 // pred_check
        %p323 = pneg %p151
      $region18: #{forward.11} parent=11 // pred_check_branch
        %325 = sbr.rel (%p323) target = $region20
      $region19: #{forward.11} parent=11 // pred_region
        _
      $region20: #{forward.11} parent=11 // pred_fallthru
        _
      // Predicated region
      $region21: #{forward.11} parent=11 // pred_check
        %p326 = pneg %p172
      $region22: #{forward.11} parent=11 // pred_check_branch
        %328 = sbr.rel (%p326) target = $region24
      $region23: #{forward.11} parent=11 // pred_region
        _
      $region24: #{forward.11} parent=11 // pred_fallthru
        _
      // Predicated region
      $region25: #{forward.11} parent=11 // pred_check
        %p329 = pneg %p193
      $region26: #{forward.11} parent=11 // pred_check_branch
        %331 = sbr.rel (%p329) target = $region28
      $region27: #{forward.11} parent=11 // pred_region
        _
      $region28: #{forward.11} parent=11 // pred_fallthru
        _
      // Predicated region
      $region29: #{forward.11} parent=11 // pred_check
        %p332 = pneg %p214
      $region30: #{forward.11} parent=11 // pred_check_branch
        %334 = sbr.rel (%p332) target = $region32
      $region31: #{forward.11} parent=11 // pred_region
        _
      $region32: #{forward.11} parent=11 // pred_fallthru
        _
      // Predicated region
      $region33: #{forward.11} parent=11 // pred_check
        %p335 = pneg %p235
      $region34: #{forward.11} parent=11 // pred_check_branch
        %337 = sbr.rel (%p335) target = $region36
      $region35: #{forward.11} parent=11 // pred_region
        _
      $region36: #{forward.11} parent=11 // pred_fallthru
        _
      // Predicated region
      $region37: #{forward.11} parent=11 // pred_check
        %p338 = pneg %p256
      $region38: #{forward.11} parent=11 // pred_check_branch
        %340 = sbr.rel (%p338) target = $region40
      $region39: #{forward.11} parent=11 // pred_region
        _
      $region40: #{forward.11} parent=11 // pred_fallthru
        _
      // Predicated region
      $region41: #{forward.11} parent=11 // pred_check
        %p341 = pneg %p277
      $region42: #{forward.11} parent=11 // pred_check_branch
        %343 = sbr.rel (%p341) target = $region44
      $region43: #{forward.11} parent=11 // pred_region
        _
      $region44: #{forward.11} parent=11 // pred_fallthru
        _
    $region12: #{forward.11} parent=5 // pred_fallthru
      _
    %p344 = scmp.lt.s32.totalorder %s17, 2
    // Predicated region
    $region45: #{forward.11} parent=5 // pred_check
      %p345 = pneg %p344
    $region46: #{forward.11} parent=5 // pred_check_branch
      %347 = sbr.rel (%p345) target = $region48
    $region47: #{forward.11} parent=5 // pred_region
      // Predicated region
      $region49: #{forward.11} parent=47 // pred_check
        %p348 = pneg %p51
      $region50: #{forward.11} parent=47 // pred_check_branch
        %350 = sbr.rel (%p348) target = $region52
      $region51: #{forward.11} parent=47 // pred_region
        %p351 = scmp.lt.s32.totalorder %s24, 1
        %s352 = scalar_select %p351, %s24, 1
        %p353 = scmp.lt.s32.totalorder %s25, 0
        %s354 = scalar_select %p353, %s25, 0
        %s355 = sadd.s32 %s354, %s352
        %s356 = smul.addr %s355, 4
        %s357 = scalar_lea.vmem %s0, %s356
      $region52: #{forward.11} parent=47 // pred_fallthru
        _
      // Predicated region
      $region53: #{forward.11} parent=47 // pred_check
        %p358 = pneg %p77
      $region54: #{forward.11} parent=47 // pred_check_branch
        %360 = sbr.rel (%p358) target = $region56
      $region55: #{forward.11} parent=47 // pred_region
        %p361 = scmp.lt.s32.totalorder %s24, 1
        %s362 = scalar_select %p361, %s24, 1
        %s363 = smul.addr %s362, 4
        %s364 = scalar_lea.vmem %s1, %s363
      $region56: #{forward.11} parent=47 // pred_fallthru
        _
      // Predicated region
      $region57: #{forward.11} parent=47 // pred_check
        %p365 = pneg %p103
      $region58: #{forward.11} parent=47 // pred_check_branch
        %367 = sbr.rel (%p365) target = $region60
      $region59: #{forward.11} parent=47 // pred_region
        %p368 = scmp.lt.s32.totalorder %s24, 1
        %s369 = scalar_select %p368, %s24, 1
        %s370 = scalar_lea.vmem %s2, %s369
      $region60: #{forward.11} parent=47 // pred_fallthru
        _
    $region48: #{forward.11} parent=5 // pred_fallthru
      _
    %p371 = scmp.le.s32.totalorder 1, %s17
    %p372 = scmp.lt.s32.totalorder %s17, 3
    %p373 = pnand %p371, %p372
    %p374 = pneg %p373
    // Predicated region
    $region61: #{forward.11} parent=5 // pred_check
      _
    $region62: #{forward.11} parent=5 // pred_check_branch
      %376 = sbr.rel (%p373) target = $region64
    $region63: #{forward.11} parent=5 // pred_region
      %s377 = ssub.s32 %s17, 1
      %p378 = scmp.lt.s32.totalorder %s26, 1
      %s379 = scalar_select %p378, %s26, 1
      %p380 = scmp.lt.s32.totalorder %s27, 0
      %s381 = scalar_select %p380, %s27, 0
      %s382 = sadd.s32 %s381, %s379
      %s383 = smul.addr %s382, 4
      %s384 = scalar_lea.vmem %s0, %s383
      %p385 = pneg %p57
      %p386 = pneg %p54
      %p387 = scmp.lt.s32.totalorder %s26, 1
      %s388 = scalar_select %p387, %s26, 1
      %s389 = smul.addr %s388, 4
      %s390 = scalar_lea.vmem %s1, %s389
      %p391 = pneg %p83
      %p392 = pneg %p80
      %p393 = scmp.lt.s32.totalorder %s26, 1
      %s394 = scalar_select %p393, %s26, 1
      %s395 = scalar_lea.vmem %s2, %s394
      %p396 = pneg %p109
      %p397 = pneg %p106
      %p398 = pneg %p130
      %p399 = pneg %p127
      %p400 = pneg %p151
      %p401 = pneg %p148
      %p402 = pneg %p172
      %p403 = pneg %p169
      %p404 = pneg %p193
      %p405 = pneg %p190
      %p406 = pneg %p214
      %p407 = pneg %p211
      %p408 = pneg %p235
      %p409 = pneg %p232
      %p410 = pneg %p256
      %p411 = pneg %p253
      %p412 = pneg %p277
      %p413 = pneg %p274
      %p414 = pneg %p305
      %p415 = pneg %p302
      %p416 = scmp.lt.s32.totalorder %s26, 1
      %s417 = scalar_select %p416, %s26, 1
      %p418 = scmp.lt.s32.totalorder %s27, 0
      %s419 = scalar_select %p418, %s27, 0
      %s420 = sadd.s32 %s419, %s417
      %s421 = smul.addr %s420, 4
      %s422 = scalar_lea.vmem %s11, %s421
      %p423 = scmp.lt.s32.totalorder %s26, 1
      %s424 = scalar_select %p423, %s26, 1
      %p425 = scmp.lt.s32.totalorder %s27, 0
      %s426 = scalar_select %p425, %s27, 0
      %s427 = sadd.s32 %s426, %s424
      %s428 = smul.addr %s427, 4
      %s429 = scalar_lea.vmem %s0, %s428
      %p430 = scmp.lt.s32.totalorder %s26, 1
      %s431 = scalar_select %p430, %s26, 1
      %s432 = smul.addr %s431, 4
      %s433 = scalar_lea.vmem %s1, %s432
      %p434 = scmp.lt.s32.totalorder %s26, 1
      %s435 = scalar_select %p434, %s26, 1
      %s436 = scalar_lea.vmem %s2, %s435
      %p437 = scmp.lt.s32.totalorder %s26, 1
      %s438 = scalar_select %p437, %s26, 1
      %p439 = scmp.lt.s32.totalorder %s27, 0
      %s440 = scalar_select %p439, %s27, 0
      %s441 = sadd.s32 %s440, %s438
      %s442 = smul.addr %s441, 4
      %s443 = scalar_lea.vmem %s11, %s442
      %v445 = vld [vmem:[%s429] sm:$0xf]
      %v446 = vld [vmem:[%s433] sm:$0xf]
      %v447 = vld [vmem:[%s3] sm:$0xf]
      %v448 = vld [vmem:[%s3 + $0x4] sm:$0xf]
      %v449 = vld [vmem:[%s3 + $0x8] sm:$0xf]
      %v450 = vld [vmem:[%s3 + $0xc] sm:$0xf]
      %v451 = vld [vmem:[%s4] sm:$0x1]
      %v453 = vlaneseq
      %v454 = vshrl.u32 %v453, 7
      %v455 = vsub.s32 0, %v454
      %v456 = vrot.slane %v451, %v455
      %v462 = vunpack.c.l.b16 %v447
      %v463 = vunpack.c.l.b16 %v448
      %v464 = vunpack.c.l.b16 %v449
      %v465 = vunpack.c.l.b16 %v450
      %v466 = vpack.c.b16 %v463, %v462
      %v467 = vpack.c.b16 %v465, %v464
      %vm470 = vcmask 261120
      %v472 = vsel %vm470, %v445, 0
      %474 = vmatprep.subr.bf16.mxu0 0
      %475 = vmatpush1.bf16.msra.mxu0 %v466
      %476 = vmatprep.subr.bf16.mxu0 0
      %477 = vmatpush1.bf16.msra.mxu0 %v467
      %478 = vmatprep.subr.bf16.mxu0 0
      %479 = vmatpush1.bf16.msra.mxu0 0
      %480 = vmatprep.subr.bf16.mxu0 0
      %481 = vmatpush1.bf16.msra.mxu0 0
      %482 = vmatprep.subr.bf16.mxu0 0
      %483 = vmatpush1.bf16.msra.mxu0 0
      %484 = vmatprep.subr.bf16.mxu0 0
      %485 = vmatpush1.bf16.msra.mxu0 0
      %486 = vmatprep.subr.bf16.mxu0 0
      %487 = vmatpush1.bf16.msra.mxu0 0
      %488 = vmatprep.subr.bf16.mxu0 0
      %489 = vmatpush1.bf16.msra.mxu0 0
      %490 = vmatprep.subr.bf16.mxu0 0
      %491 = vmatpush1.bf16.msra.mxu0 0
      %492 = vmatprep.subr.bf16.mxu0 0
      %493 = vmatpush1.bf16.msra.mxu0 0
      %494 = vmatprep.subr.bf16.mxu0 0
      %495 = vmatpush1.bf16.msra.mxu0 0
      %496 = vmatprep.subr.bf16.mxu0 0
      %497 = vmatpush1.bf16.msra.mxu0 0
      %498 = vmatprep.subr.bf16.mxu0 0
      %499 = vmatpush1.bf16.msra.mxu0 0
      %500 = vmatprep.subr.bf16.mxu0 0
      %501 = vmatpush1.bf16.msra.mxu0 0
      %502 = vmatprep.subr.bf16.mxu0 0
      %503 = vmatpush1.bf16.msra.mxu0 0
      %504 = vmatprep.subr.bf16.mxu0 0
      %505 = vmatpush1.bf16.msra.mxu0 0
      %506 = vmatprep.mubr.bf16.mxu0 0
      %507 = vmatmul.mubr.bf16.gmra.mrb[0].mxu0 %v472
      %v508 = vpop.f32.mrb[0].mxu0
      %v509 = vadd.f32 %v456, %v508
      %v510 = vpop.f32.mrb[0].mxu0
      %v511 = vpop.f32.mrb[0].mxu0
      %v512 = vpop.f32.mrb[0].mxu0
      %513 = vdwg.mxu0
      %v514 = vld [vmem:[%s5] sm:$0xf]
      %v515 = vld [vmem:[%s5 + $0x4] sm:$0xf]
      %v516 = vld [vmem:[%s5 + $0x8] sm:$0xf]
      %v517 = vld [vmem:[%s5 + $0xc] sm:$0xf]
      %v518 = vld [vmem:[%s6] sm:$0x1]
      %v520 = vlaneseq
      %v521 = vshrl.u32 %v520, 7
      %v522 = vsub.s32 0, %v521
      %v523 = vrot.slane %v518, %v522
      %v529 = vunpack.c.l.b16 %v514
      %v530 = vunpack.c.l.b16 %v515
      %v531 = vunpack.c.l.b16 %v516
      %v532 = vunpack.c.l.b16 %v517
      %v533 = vpack.c.b16 %v530, %v529
      %v534 = vpack.c.b16 %v532, %v531
      %v538 = vsel %vm470, %v446, 0
      %540 = vmatprep.subr.bf16.mxu0 0
      %541 = vmatpush1.bf16.msra.mxu0 %v533
      %542 = vmatprep.subr.bf16.mxu0 0
      %543 = vmatpush1.bf16.msra.mxu0 %v534
      %544 = vmatprep.subr.bf16.mxu0 0
      %545 = vmatpush1.bf16.msra.mxu0 0
      %546 = vmatprep.subr.bf16.mxu0 0
      %547 = vmatpush1.bf16.msra.mxu0 0
      %548 = vmatprep.subr.bf16.mxu0 0
      %549 = vmatpush1.bf16.msra.mxu0 0
      %550 = vmatprep.subr.bf16.mxu0 0
      %551 = vmatpush1.bf16.msra.mxu0 0
      %552 = vmatprep.subr.bf16.mxu0 0
      %553 = vmatpush1.bf16.msra.mxu0 0
      %554 = vmatprep.subr.bf16.mxu0 0
      %555 = vmatpush1.bf16.msra.mxu0 0
      %556 = vmatprep.subr.bf16.mxu0 0
      %557 = vmatpush1.bf16.msra.mxu0 0
      %558 = vmatprep.subr.bf16.mxu0 0
      %559 = vmatpush1.bf16.msra.mxu0 0
      %560 = vmatprep.subr.bf16.mxu0 0
      %561 = vmatpush1.bf16.msra.mxu0 0
      %562 = vmatprep.subr.bf16.mxu0 0
      %563 = vmatpush1.bf16.msra.mxu0 0
      %564 = vmatprep.subr.bf16.mxu0 0
      %565 = vmatpush1.bf16.msra.mxu0 0
      %566 = vmatprep.subr.bf16.mxu0 0
      %567 = vmatpush1.bf16.msra.mxu0 0
      %568 = vmatprep.subr.bf16.mxu0 0
      %569 = vmatpush1.bf16.msra.mxu0 0
      %570 = vmatprep.subr.bf16.mxu0 0
      %571 = vmatpush1.bf16.msra.mxu0 0
      %572 = vmatprep.mubr.bf16.mxu0 0
      %573 = vmatmul.mubr.bf16.gmra.mrb[0].mxu0 %v538
      %v574 = vpop.f32.mrb[0].mxu0
      %v575 = vadd.f32 %v523, %v574
      %v576 = vpop.f32.mrb[0].mxu0
      %v577 = vpop.f32.mrb[0].mxu0
      %v578 = vpop.f32.mrb[0].mxu0
      %579 = vdwg.mxu0
      %580 = vxpose.xlu0.b32.start [1/16] %v575, 128
      %581 = vxpose.xlu0.b32.cont [2/16] 0.0, 128
      %582 = vxpose.xlu0.b32.cont [3/16] 0.0, 128
      %583 = vxpose.xlu0.b32.cont [4/16] 0.0, 128
      %584 = vxpose.xlu0.b32.cont [5/16] 0.0, 128
      %585 = vxpose.xlu0.b32.cont [6/16] 0.0, 128
      %586 = vxpose.xlu0.b32.cont [7/16] 0.0, 128
      %587 = vxpose.xlu0.b32.cont [8/16] 0.0, 128
      %588 = vxpose.xlu0.b32.cont [9/16] 0.0, 128
      %589 = vxpose.xlu0.b32.cont [10/16] 0.0, 128
      %590 = vxpose.xlu0.b32.cont [11/16] 0.0, 128
      %591 = vxpose.xlu0.b32.cont [12/16] 0.0, 128
      %592 = vxpose.xlu0.b32.cont [13/16] 0.0, 128
      %593 = vxpose.xlu0.b32.cont [14/16] 0.0, 128
      %594 = vxpose.xlu0.b32.cont [15/16] 0.0, 128
      %595 = vxpose.xlu0.b32.end [16/16] 0.0, 128
      %v596 = vpop.trf.xlu0
      %v597 = vpop.trf.xlu0
      %v598 = vpop.trf.xlu0
      %v599 = vpop.trf.xlu0
      %v600 = vpop.trf.xlu0
      %v601 = vpop.trf.xlu0
      %v602 = vpop.trf.xlu0
      %v603 = vpop.trf.xlu0
      %v604 = vpop.trf.xlu0
      %v605 = vpop.trf.xlu0
      %v606 = vpop.trf.xlu0
      %v607 = vpop.trf.xlu0
      %v608 = vpop.trf.xlu0
      %v609 = vpop.trf.xlu0
      %v610 = vpop.trf.xlu0
      %v611 = vpop.trf.xlu0
      %v612 = vpack.c.bf16 %v509, %v509
      %v613 = vpack.c.bf16 %v597, %v596
      %v614 = vpack.c.bf16 %v599, %v598
      %v615 = vpack.c.bf16 %v575, %v575
      %v616 = vld [vmem:[%s436] sm:$0x1]
      %v618 = vlaneseq
      %v619 = vshrl.u32 %v618, 7
      %v620 = vsub.s32 0, %v619
      %v621 = vrot.slane %v616, %v620
      %vm623 = vcmask 64512
      %v625 = vsel %vm623, %v612, 0
      %vm627 = vcmask 1043456
      %v629 = vsel %vm627, %v613, 0
      %631 = vmatprep.subr.bf16.mxu0 0
      %632 = vmatpush1.bf16.msra.mxu0 %v629
      %633 = vmatprep.subr.bf16.mxu0 0
      %634 = vmatpush1.bf16.msra.mxu0 0
      %635 = vmatprep.subr.bf16.mxu0 0
      %636 = vmatpush1.bf16.msra.mxu0 0
      %637 = vmatprep.subr.bf16.mxu0 0
      %638 = vmatpush1.bf16.msra.mxu0 0
      %639 = vmatprep.subr.bf16.mxu0 0
      %640 = vmatpush1.bf16.msra.mxu0 0
      %641 = vmatprep.subr.bf16.mxu0 0
      %642 = vmatpush1.bf16.msra.mxu0 0
      %643 = vmatprep.subr.bf16.mxu0 0
      %644 = vmatpush1.bf16.msra.mxu0 0
      %645 = vmatprep.subr.bf16.mxu0 0
      %646 = vmatpush1.bf16.msra.mxu0 0
      %647 = vmatprep.subr.bf16.mxu0 0
      %648 = vmatpush1.bf16.msra.mxu0 0
      %649 = vmatprep.subr.bf16.mxu0 0
      %650 = vmatpush1.bf16.msra.mxu0 0
      %651 = vmatprep.subr.bf16.mxu0 0
      %652 = vmatpush1.bf16.msra.mxu0 0
      %653 = vmatprep.subr.bf16.mxu0 0
      %654 = vmatpush1.bf16.msra.mxu0 0
      %655 = vmatprep.subr.bf16.mxu0 0
      %656 = vmatpush1.bf16.msra.mxu0 0
      %657 = vmatprep.subr.bf16.mxu0 0
      %658 = vmatpush1.bf16.msra.mxu0 0
      %659 = vmatprep.subr.bf16.mxu0 0
      %660 = vmatpush1.bf16.msra.mxu0 0
      %661 = vmatprep.subr.bf16.mxu0 0
      %662 = vmatpush1.bf16.msra.mxu0 0
      %663 = vmatprep.mubr.bf16.mxu0 0
      %664 = vmatmul.mubr.bf16.gmra.mrb[0].mxu0 %v625
      %v665 = vpop.f32.mrb[0].mxu0
      %v666 = vadd.f32 %v621, %v665
      %v667 = vpop.f32.mrb[0].mxu0
      %v668 = vpop.f32.mrb[0].mxu0
      %v669 = vpop.f32.mrb[0].mxu0
      %670 = vdwg.mxu0
      %v671 = vsel %vm623, %v666, -inf
      %672 = vmax.xlane.f32.xlu0 %v671
      %v673 = vpop.xlane.xlu0 %672
      %v674 = vsub.f32 %v666, %v673
      %v675 = vmul.f32 %v674, 1.442695
      %v676 = vpow.pop %v675
      %v677 = vsel %vm623, %v676, 0.0
      %678 = vadd.xlane.f32.xlu0 %v677
      %v679 = vpop.xlane.xlu0 %678
      %v680 = vrcp.pop %v679
      %v681 = vmul.f32 %v676, %v680
      %v682 = vpack.c.bf16 %v681, %v681
      %684 = vrot.lane.b32.xlu0 %v615, 96
      %v685 = vpop.permute.xlu0 %684
      %v687 = vsel %vm623, %v682, 0
      %v690 = vsel %vm627, %v685, 0
      %692 = vmatprep.subr.bf16.mxu0 0
      %693 = vmatpush1.bf16.msra.mxu0 %v690
      %694 = vmatprep.subr.bf16.mxu0 0
      %695 = vmatpush1.bf16.msra.mxu0 0
      %696 = vmatprep.subr.bf16.mxu0 0
      %697 = vmatpush1.bf16.msra.mxu0 0
      %698 = vmatprep.subr.bf16.mxu0 0
      %699 = vmatpush1.bf16.msra.mxu0 0
      %700 = vmatprep.subr.bf16.mxu0 0
      %701 = vmatpush1.bf16.msra.mxu0 0
      %702 = vmatprep.subr.bf16.mxu0 0
      %703 = vmatpush1.bf16.msra.mxu0 0
      %704 = vmatprep.subr.bf16.mxu0 0
      %705 = vmatpush1.bf16.msra.mxu0 0
      %706 = vmatprep.subr.bf16.mxu0 0
      %707 = vmatpush1.bf16.msra.mxu0 0
      %708 = vmatprep.subr.bf16.mxu0 0
      %709 = vmatpush1.bf16.msra.mxu0 0
      %710 = vmatprep.subr.bf16.mxu0 0
      %711 = vmatpush1.bf16.msra.mxu0 0
      %712 = vmatprep.subr.bf16.mxu0 0
      %713 = vmatpush1.bf16.msra.mxu0 0
      %714 = vmatprep.subr.bf16.mxu0 0
      %715 = vmatpush1.bf16.msra.mxu0 0
      %716 = vmatprep.subr.bf16.mxu0 0
      %717 = vmatpush1.bf16.msra.mxu0 0
      %718 = vmatprep.subr.bf16.mxu0 0
      %719 = vmatpush1.bf16.msra.mxu0 0
      %720 = vmatprep.subr.bf16.mxu0 0
      %721 = vmatpush1.bf16.msra.mxu0 0
      %722 = vmatprep.subr.bf16.mxu0 0
      %723 = vmatpush1.bf16.msra.mxu0 0
      %724 = vmatprep.mubr.bf16.mxu0 0
      %725 = vmatmul.mubr.bf16.gmra.mrb[0].mxu0 %v687
      %v726 = vpop.f32.mrb[0].mxu0
      %v727 = vadd.f32 0.0, %v726
      %v728 = vpop.f32.mrb[0].mxu0
      %v729 = vpop.f32.mrb[0].mxu0
      %v730 = vpop.f32.mrb[0].mxu0
      %731 = vdwg.mxu0
      %733 = vrot.lane.b32.xlu0 %v612, 120
      %v734 = vpop.permute.xlu0 %733
      %v736 = vrot.slane %v613, 4
      %v738 = vsel %vm623, %v734, 0
      %v741 = vsel %vm627, %v736, 0
      %743 = vmatprep.subr.bf16.mxu0 0
      %744 = vmatpush1.bf16.msra.mxu0 %v741
      %745 = vmatprep.subr.bf16.mxu0 0
      %746 = vmatpush1.bf16.msra.mxu0 0
      %747 = vmatprep.subr.bf16.mxu0 0
      %748 = vmatpush1.bf16.msra.mxu0 0
      %749 = vmatprep.subr.bf16.mxu0 0
      %750 = vmatpush1.bf16.msra.mxu0 0
      %751 = vmatprep.subr.bf16.mxu0 0
      %752 = vmatpush1.bf16.msra.mxu0 0
      %753 = vmatprep.subr.bf16.mxu0 0
      %754 = vmatpush1.bf16.msra.mxu0 0
      %755 = vmatprep.subr.bf16.mxu0 0
      %756 = vmatpush1.bf16.msra.mxu0 0
      %757 = vmatprep.subr.bf16.mxu0 0
      %758 = vmatpush1.bf16.msra.mxu0 0
      %759 = vmatprep.subr.bf16.mxu0 0
      %760 = vmatpush1.bf16.msra.mxu0 0
      %761 = vmatprep.subr.bf16.mxu0 0
      %762 = vmatpush1.bf16.msra.mxu0 0
      %763 = vmatprep.subr.bf16.mxu0 0
      %764 = vmatpush1.bf16.msra.mxu0 0
      %765 = vmatprep.subr.bf16.mxu0 0
      %766 = vmatpush1.bf16.msra.mxu0 0
      %767 = vmatprep.subr.bf16.mxu0 0
      %768 = vmatpush1.bf16.msra.mxu0 0
      %769 = vmatprep.subr.bf16.mxu0 0
      %770 = vmatpush1.bf16.msra.mxu0 0
      %771 = vmatprep.subr.bf16.mxu0 0
      %772 = vmatpush1.bf16.msra.mxu0 0
      %773 = vmatprep.subr.bf16.mxu0 0
      %774 = vmatpush1.bf16.msra.mxu0 0
      %775 = vmatprep.mubr.bf16.mxu0 0
      %776 = vmatmul.mubr.bf16.gmra.mrb[0].mxu0 %v738
      %v777 = vpop.f32.mrb[0].mxu0
      %v778 = vadd.f32 %v621, %v777
      %v779 = vpop.f32.mrb[0].mxu0
      %v780 = vpop.f32.mrb[0].mxu0
      %v781 = vpop.f32.mrb[0].mxu0
      %782 = vdwg.mxu0
      %v783 = vsel %vm623, %v778, -inf
      %784 = vmax.xlane.f32.xlu0 %v783
      %v785 = vpop.xlane.xlu0 %784
      %v786 = vsub.f32 %v778, %v785
      %v787 = vmul.f32 %v786, 1.442695
      %v788 = vpow.pop %v787
      %v789 = vsel %vm623, %v788, 0.0
      %790 = vadd.xlane.f32.xlu0 %v789
      %v791 = vpop.xlane.xlu0 %790
      %v792 = vrcp.pop %v791
      %v793 = vmul.f32 %v788, %v792
      %v794 = vpack.c.bf16 %v793, %v793
      %795 = vrot.lane.b32.xlu0 %v615, 88
      %v796 = vpop.permute.xlu0 %795
      %v798 = vsel %vm623, %v794, 0
      %v801 = vsel %vm627, %v796, 0
      %803 = vmatprep.subr.bf16.mxu0 0
      %804 = vmatpush1.bf16.msra.mxu0 %v801
      %805 = vmatprep.subr.bf16.mxu0 0
      %806 = vmatpush1.bf16.msra.mxu0 0
      %807 = vmatprep.subr.bf16.mxu0 0
      %808 = vmatpush1.bf16.msra.mxu0 0
      %809 = vmatprep.subr.bf16.mxu0 0
      %810 = vmatpush1.bf16.msra.mxu0 0
      %811 = vmatprep.subr.bf16.mxu0 0
      %812 = vmatpush1.bf16.msra.mxu0 0
      %813 = vmatprep.subr.bf16.mxu0 0
      %814 = vmatpush1.bf16.msra.mxu0 0
      %815 = vmatprep.subr.bf16.mxu0 0
      %816 = vmatpush1.bf16.msra.mxu0 0
      %817 = vmatprep.subr.bf16.mxu0 0
      %818 = vmatpush1.bf16.msra.mxu0 0
      %819 = vmatprep.subr.bf16.mxu0 0
      %820 = vmatpush1.bf16.msra.mxu0 0
      %821 = vmatprep.subr.bf16.mxu0 0
      %822 = vmatpush1.bf16.msra.mxu0 0
      %823 = vmatprep.subr.bf16.mxu0 0
      %824 = vmatpush1.bf16.msra.mxu0 0
      %825 = vmatprep.subr.bf16.mxu0 0
      %826 = vmatpush1.bf16.msra.mxu0 0
      %827 = vmatprep.subr.bf16.mxu0 0
      %828 = vmatpush1.bf16.msra.mxu0 0
      %829 = vmatprep.subr.bf16.mxu0 0
      %830 = vmatpush1.bf16.msra.mxu0 0
      %831 = vmatprep.subr.bf16.mxu0 0
      %832 = vmatpush1.bf16.msra.mxu0 0
      %833 = vmatprep.subr.bf16.mxu0 0
      %834 = vmatpush1.bf16.msra.mxu0 0
      %835 = vmatprep.mubr.bf16.mxu0 0
      %836 = vmatmul.mubr.bf16.gmra.mrb[0].mxu0 %v798
      %v837 = vpop.f32.mrb[0].mxu0
      %v838 = vadd.f32 0.0, %v837
      %v839 = vpop.f32.mrb[0].mxu0
      %v840 = vpop.f32.mrb[0].mxu0
      %v841 = vpop.f32.mrb[0].mxu0
      %842 = vdwg.mxu0
      %843 = vrot.lane.b32.xlu0 %v612, 112
      %v844 = vpop.permute.xlu0 %843
      %v846 = vsel %vm623, %v844, 0
      %v849 = vsel %vm627, %v614, 0
      %851 = vmatprep.subr.bf16.mxu0 0
      %852 = vmatpush1.bf16.msra.mxu0 %v849
      %853 = vmatprep.subr.bf16.mxu0 0
      %854 = vmatpush1.bf16.msra.mxu0 0
      %855 = vmatprep.subr.bf16.mxu0 0
      %856 = vmatpush1.bf16.msra.mxu0 0
      %857 = vmatprep.subr.bf16.mxu0 0
      %858 = vmatpush1.bf16.msra.mxu0 0
      %859 = vmatprep.subr.bf16.mxu0 0
      %860 = vmatpush1.bf16.msra.mxu0 0
      %861 = vmatprep.subr.bf16.mxu0 0
      %862 = vmatpush1.bf16.msra.mxu0 0
      %863 = vmatprep.subr.bf16.mxu0 0
      %864 = vmatpush1.bf16.msra.mxu0 0
      %865 = vmatprep.subr.bf16.mxu0 0
      %866 = vmatpush1.bf16.msra.mxu0 0
      %867 = vmatprep.subr.bf16.mxu0 0
      %868 = vmatpush1.bf16.msra.mxu0 0
      %869 = vmatprep.subr.bf16.mxu0 0
      %870 = vmatpush1.bf16.msra.mxu0 0
      %871 = vmatprep.subr.bf16.mxu0 0
      %872 = vmatpush1.bf16.msra.mxu0 0
      %873 = vmatprep.subr.bf16.mxu0 0
      %874 = vmatpush1.bf16.msra.mxu0 0
      %875 = vmatprep.subr.bf16.mxu0 0
      %876 = vmatpush1.bf16.msra.mxu0 0
      %877 = vmatprep.subr.bf16.mxu0 0
      %878 = vmatpush1.bf16.msra.mxu0 0
      %879 = vmatprep.subr.bf16.mxu0 0
      %880 = vmatpush1.bf16.msra.mxu0 0
      %881 = vmatprep.subr.bf16.mxu0 0
      %882 = vmatpush1.bf16.msra.mxu0 0
      %883 = vmatprep.mubr.bf16.mxu0 0
      %884 = vmatmul.mubr.bf16.gmra.mrb[0].mxu0 %v846
      %v885 = vpop.f32.mrb[0].mxu0
      %v886 = vadd.f32 %v621, %v885
      %v887 = vpop.f32.mrb[0].mxu0
      %v888 = vpop.f32.mrb[0].mxu0
      %v889 = vpop.f32.mrb[0].mxu0
      %890 = vdwg.mxu0
      %v891 = vsel %vm623, %v886, -inf
      %892 = vmax.xlane.f32.xlu0 %v891
      %v893 = vpop.xlane.xlu0 %892
      %v894 = vsub.f32 %v886, %v893
      %v895 = vmul.f32 %v894, 1.442695
      %v896 = vpow.pop %v895
      %v897 = vsel %vm623, %v896, 0.0
      %898 = vadd.xlane.f32.xlu0 %v897
      %v899 = vpop.xlane.xlu0 %898
      %v900 = vrcp.pop %v899
      %v901 = vmul.f32 %v896, %v900
      %v902 = vpack.c.bf16 %v901, %v901
      %903 = vrot.lane.b32.xlu0 %v615, 80
      %v904 = vpop.permute.xlu0 %903
      %v906 = vsel %vm623, %v902, 0
      %v909 = vsel %vm627, %v904, 0
      %911 = vmatprep.subr.bf16.mxu0 0
      %912 = vmatpush1.bf16.msra.mxu0 %v909
      %913 = vmatprep.subr.bf16.mxu0 0
      %914 = vmatpush1.bf16.msra.mxu0 0
      %915 = vmatprep.subr.bf16.mxu0 0
      %916 = vmatpush1.bf16.msra.mxu0 0
      %917 = vmatprep.subr.bf16.mxu0 0
      %918 = vmatpush1.bf16.msra.mxu0 0
      %919 = vmatprep.subr.bf16.mxu0 0
      %920 = vmatpush1.bf16.msra.mxu0 0
      %921 = vmatprep.subr.bf16.mxu0 0
      %922 = vmatpush1.bf16.msra.mxu0 0
      %923 = vmatprep.subr.bf16.mxu0 0
      %924 = vmatpush1.bf16.msra.mxu0 0
      %925 = vmatprep.subr.bf16.mxu0 0
      %926 = vmatpush1.bf16.msra.mxu0 0
      %927 = vmatprep.subr.bf16.mxu0 0
      %928 = vmatpush1.bf16.msra.mxu0 0
      %929 = vmatprep.subr.bf16.mxu0 0
      %930 = vmatpush1.bf16.msra.mxu0 0
      %931 = vmatprep.subr.bf16.mxu0 0
      %932 = vmatpush1.bf16.msra.mxu0 0
      %933 = vmatprep.subr.bf16.mxu0 0
      %934 = vmatpush1.bf16.msra.mxu0 0
      %935 = vmatprep.subr.bf16.mxu0 0
      %936 = vmatpush1.bf16.msra.mxu0 0
      %937 = vmatprep.subr.bf16.mxu0 0
      %938 = vmatpush1.bf16.msra.mxu0 0
      %939 = vmatprep.subr.bf16.mxu0 0
      %940 = vmatpush1.bf16.msra.mxu0 0
      %941 = vmatprep.subr.bf16.mxu0 0
      %942 = vmatpush1.bf16.msra.mxu0 0
      %943 = vmatprep.mubr.bf16.mxu0 0
      %944 = vmatmul.mubr.bf16.gmra.mrb[0].mxu0 %v906
      %v945 = vpop.f32.mrb[0].mxu0
      %v946 = vadd.f32 0.0, %v945
      %v947 = vpop.f32.mrb[0].mxu0
      %v948 = vpop.f32.mrb[0].mxu0
      %v949 = vpop.f32.mrb[0].mxu0
      %950 = vdwg.mxu0
      %951 = vrot.lane.b32.xlu0 %v612, 104
      %v952 = vpop.permute.xlu0 %951
      %v954 = vrot.slane %v614, 4
      %v956 = vsel %vm623, %v952, 0
      %v959 = vsel %vm627, %v954, 0
      %961 = vmatprep.subr.bf16.mxu0 0
      %962 = vmatpush1.bf16.msra.mxu0 %v959
      %963 = vmatprep.subr.bf16.mxu0 0
      %964 = vmatpush1.bf16.msra.mxu0 0
      %965 = vmatprep.subr.bf16.mxu0 0
      %966 = vmatpush1.bf16.msra.mxu0 0
      %967 = vmatprep.subr.bf16.mxu0 0
      %968 = vmatpush1.bf16.msra.mxu0 0
      %969 = vmatprep.subr.bf16.mxu0 0
      %970 = vmatpush1.bf16.msra.mxu0 0
      %971 = vmatprep.subr.bf16.mxu0 0
      %972 = vmatpush1.bf16.msra.mxu0 0
      %973 = vmatprep.subr.bf16.mxu0 0
      %974 = vmatpush1.bf16.msra.mxu0 0
      %975 = vmatprep.subr.bf16.mxu0 0
      %976 = vmatpush1.bf16.msra.mxu0 0
      %977 = vmatprep.subr.bf16.mxu0 0
      %978 = vmatpush1.bf16.msra.mxu0 0
      %979 = vmatprep.subr.bf16.mxu0 0
      %980 = vmatpush1.bf16.msra.mxu0 0
      %981 = vmatprep.subr.bf16.mxu0 0
      %982 = vmatpush1.bf16.msra.mxu0 0
      %983 = vmatprep.subr.bf16.mxu0 0
      %984 = vmatpush1.bf16.msra.mxu0 0
      %985 = vmatprep.subr.bf16.mxu0 0
      %986 = vmatpush1.bf16.msra.mxu0 0
      %987 = vmatprep.subr.bf16.mxu0 0
      %988 = vmatpush1.bf16.msra.mxu0 0
      %989 = vmatprep.subr.bf16.mxu0 0
      %990 = vmatpush1.bf16.msra.mxu0 0
      %991 = vmatprep.subr.bf16.mxu0 0
      %992 = vmatpush1.bf16.msra.mxu0 0
      %993 = vmatprep.mubr.bf16.mxu0 0
      %994 = vmatmul.mubr.bf16.gmra.mrb[0].mxu0 %v956
      %v995 = vpop.f32.mrb[0].mxu0
      %v996 = vadd.f32 %v621, %v995
      %v997 = vpop.f32.mrb[0].mxu0
      %v998 = vpop.f32.mrb[0].mxu0
      %v999 = vpop.f32.mrb[0].mxu0
      %1000 = vdwg.mxu0
      %v1001 = vsel %vm623, %v996, -inf
      %1002 = vmax.xlane.f32.xlu0 %v1001
      %v1003 = vpop.xlane.xlu0 %1002
      %v1004 = vsub.f32 %v996, %v1003
      %v1005 = vmul.f32 %v1004, 1.442695
      %v1006 = vpow.pop %v1005
      %v1007 = vsel %vm623, %v1006, 0.0
      %1008 = vadd.xlane.f32.xlu0 %v1007
      %v1009 = vpop.xlane.xlu0 %1008
      %v1010 = vrcp.pop %v1009
      %v1011 = vmul.f32 %v1006, %v1010
      %v1012 = vpack.c.bf16 %v1011, %v1011
      %1013 = vrot.lane.b32.xlu0 %v615, 72
      %v1014 = vpop.permute.xlu0 %1013
      %v1016 = vsel %vm623, %v1012, 0
      %v1019 = vsel %vm627, %v1014, 0
      %1021 = vmatprep.subr.bf16.mxu0 0
      %1022 = vmatpush1.bf16.msra.mxu0 %v1019
      %1023 = vmatprep.subr.bf16.mxu0 0
      %1024 = vmatpush1.bf16.msra.mxu0 0
      %1025 = vmatprep.subr.bf16.mxu0 0
      %1026 = vmatpush1.bf16.msra.mxu0 0
      %1027 = vmatprep.subr.bf16.mxu0 0
      %1028 = vmatpush1.bf16.msra.mxu0 0
      %1029 = vmatprep.subr.bf16.mxu0 0
      %1030 = vmatpush1.bf16.msra.mxu0 0
      %1031 = vmatprep.subr.bf16.mxu0 0
      %1032 = vmatpush1.bf16.msra.mxu0 0
      %1033 = vmatprep.subr.bf16.mxu0 0
      %1034 = vmatpush1.bf16.msra.mxu0 0
      %1035 = vmatprep.subr.bf16.mxu0 0
      %1036 = vmatpush1.bf16.msra.mxu0 0
      %1037 = vmatprep.subr.bf16.mxu0 0
      %1038 = vmatpush1.bf16.msra.mxu0 0
      %1039 = vmatprep.subr.bf16.mxu0 0
      %1040 = vmatpush1.bf16.msra.mxu0 0
      %1041 = vmatprep.subr.bf16.mxu0 0
      %1042 = vmatpush1.bf16.msra.mxu0 0
      %1043 = vmatprep.subr.bf16.mxu0 0
      %1044 = vmatpush1.bf16.msra.mxu0 0
      %1045 = vmatprep.subr.bf16.mxu0 0
      %1046 = vmatpush1.bf16.msra.mxu0 0
      %1047 = vmatprep.subr.bf16.mxu0 0
      %1048 = vmatpush1.bf16.msra.mxu0 0
      %1049 = vmatprep.subr.bf16.mxu0 0
      %1050 = vmatpush1.bf16.msra.mxu0 0
      %1051 = vmatprep.subr.bf16.mxu0 0
      %1052 = vmatpush1.bf16.msra.mxu0 0
      %1053 = vmatprep.mubr.bf16.mxu0 0
      %1054 = vmatmul.mubr.bf16.gmra.mrb[0].mxu0 %v1016
      %v1055 = vpop.f32.mrb[0].mxu0
      %v1056 = vadd.f32 0.0, %v1055
      %v1057 = vpop.f32.mrb[0].mxu0
      %v1058 = vpop.f32.mrb[0].mxu0
      %v1059 = vpop.f32.mrb[0].mxu0
      %1060 = vdwg.mxu0
      %1062 = vrot.lane.b32.xlu0 %v838, 8
      %v1063 = vpop.permute.xlu0 %1062
      %1066 = vrot.lane.b32.xlu0 %v946, 16
      %v1067 = vpop.permute.xlu0 %1066
      %1070 = vrot.lane.b32.xlu0 %v1056, 24
      %v1071 = vpop.permute.xlu0 %1070
      %v1073 = vsel %vm623, %v727, %v1063
      %vm1074 = vcmask 130048
      %v1075 = vsel %vm1074, %v1073, %v1067
      %vm1076 = vcmask 195584
      %v1077 = vsel %vm1076, %v1075, %v1071
      %v1078 = vpack.c.bf16 %v1077, %v1077
      %v1079 = vld [vmem:[%s7] sm:$0xf]
      %v1080 = vld [vmem:[%s7 + $0x4] sm:$0xf]
      %v1081 = vld [vmem:[%s7 + $0x8] sm:$0xf]
      %v1082 = vld [vmem:[%s7 + $0xc] sm:$0xf]
      %v1083 = vld [vmem:[%s8] sm:$0x1]
      %v1085 = vlaneseq
      %v1086 = vshrl.u32 %v1085, 7
      %v1087 = vsub.s32 0, %v1086
      %v1088 = vrot.slane %v1083, %v1087
      %v1094 = vunpack.c.l.b16 %v1079
      %v1095 = vunpack.c.l.b16 %v1080
      %v1096 = vunpack.c.l.b16 %v1081
      %v1097 = vunpack.c.l.b16 %v1082
      %v1098 = vpack.c.b16 %v1095, %v1094
      %v1099 = vpack.c.b16 %v1097, %v1096
      %v1103 = vsel %vm470, %v1078, 0
      %1105 = vmatprep.subr.bf16.mxu0 0
      %1106 = vmatpush1.bf16.msra.mxu0 %v1098
      %1107 = vmatprep.subr.bf16.mxu0 0
      %1108 = vmatpush1.bf16.msra.mxu0 %v1099
      %1109 = vmatprep.subr.bf16.mxu0 0
      %1110 = vmatpush1.bf16.msra.mxu0 0
      %1111 = vmatprep.subr.bf16.mxu0 0
      %1112 = vmatpush1.bf16.msra.mxu0 0
      %1113 = vmatprep.subr.bf16.mxu0 0
      %1114 = vmatpush1.bf16.msra.mxu0 0
      %1115 = vmatprep.subr.bf16.mxu0 0
      %1116 = vmatpush1.bf16.msra.mxu0 0
      %1117 = vmatprep.subr.bf16.mxu0 0
      %1118 = vmatpush1.bf16.msra.mxu0 0
      %1119 = vmatprep.subr.bf16.mxu0 0
      %1120 = vmatpush1.bf16.msra.mxu0 0
      %1121 = vmatprep.subr.bf16.mxu0 0
      %1122 = vmatpush1.bf16.msra.mxu0 0
      %1123 = vmatprep.subr.bf16.mxu0 0
      %1124 = vmatpush1.bf16.msra.mxu0 0
      %1125 = vmatprep.subr.bf16.mxu0 0
      %1126 = vmatpush1.bf16.msra.mxu0 0
      %1127 = vmatprep.subr.bf16.mxu0 0
      %1128 = vmatpush1.bf16.msra.mxu0 0
      %1129 = vmatprep.subr.bf16.mxu0 0
      %1130 = vmatpush1.bf16.msra.mxu0 0
      %1131 = vmatprep.subr.bf16.mxu0 0
      %1132 = vmatpush1.bf16.msra.mxu0 0
      %1133 = vmatprep.subr.bf16.mxu0 0
      %1134 = vmatpush1.bf16.msra.mxu0 0
      %1135 = vmatprep.subr.bf16.mxu0 0
      %1136 = vmatpush1.bf16.msra.mxu0 0
      %1137 = vmatprep.mubr.bf16.mxu0 0
      %1138 = vmatmul.mubr.bf16.gmra.mrb[0].mxu0 %v1103
      %v1139 = vpop.f32.mrb[0].mxu0
      %v1140 = vadd.f32 %v1088, %v1139
      %v1141 = vpop.f32.mrb[0].mxu0
      %v1142 = vpop.f32.mrb[0].mxu0
      %v1143 = vpop.f32.mrb[0].mxu0
      %1144 = vdwg.mxu0
      %v1145 = vunpack.c.l.bf16 %v445
      %v1146 = vadd.f32 %v1145, %v1140
      %v1147 = vld [vmem:[%s9] sm:$0x1]
      %v1148 = vld [vmem:[%s10] sm:$0x1]
      %v1149 = vsel %vm470, %v1146, 0.0
      %1150 = vadd.xlane.f32.xlu0 %v1149
      %v1151 = vpop.xlane.xlu0 %1150
      %v1152 = vrcp.pop 32.0
      %v1153 = vmul.f32 %v1151, %v1152
      %v1154 = vsub.f32 %v1146, %v1153
      %v1155 = vmul.f32 %v1154, %v1154
      %v1156 = vsel %vm470, %v1155, 0.0
      %1157 = vadd.xlane.f32.xlu0 %v1156
      %v1158 = vpop.xlane.xlu0 %1157
      %v1159 = vmul.f32 %v1158, %v1152
      %v1160 = vadd.f32 %v1159, 1e-05
      %v1161 = vrsqrt.pop %v1160
      %v1162 = vmul.f32 %v1154, %v1161
      %v1164 = vlaneseq
      %v1165 = vshrl.u32 %v1164, 7
      %v1166 = vsub.s32 0, %v1165
      %v1167 = vrot.slane %v1147, %v1166
      %v1169 = vmul.f32 %v1162, %v1167
      %v1171 = vlaneseq
      %v1172 = vshrl.u32 %v1171, 7
      %v1173 = vsub.s32 0, %v1172
      %v1174 = vrot.slane %v1148, %v1173
      %v1176 = vadd.f32 %v1169, %v1174
      %v1177 = vpack.c.bf16 %v1176, %v1176
      %vm1178 = vcmask 257024
      %1179 = vst.msk [vmem:[%s443] sm:$0xf] %vm1178, %v1177
      %p1180 = scmp.lt.s32.totalorder %s26, 1
      %s1181 = scalar_select %p1180, %s26, 1
      %p1182 = scmp.lt.s32.totalorder %s27, 0
      %s1183 = scalar_select %p1182, %s27, 0
      %s1184 = sadd.s32 %s1183, %s1181
      %s1185 = smul.addr %s1184, 4
      %s1186 = scalar_lea.vmem %s11, %s1185
      // Predicated region
      $region65: #{forward.11} parent=63 // pred_check
        %p1187 = pneg %p302
      $region66: #{forward.11} parent=63 // pred_check_branch
        %1189 = sbr.rel (%p1187) target = $region68
      $region67: #{forward.11} parent=63 // pred_region
        _
      $region68: #{forward.11} parent=63 // pred_fallthru
        _
    $region64: #{forward.11} parent=5 // pred_fallthru
      _
    %p1190 = scmp.le.s32.totalorder 2, %s17
    // Predicated region
    $region69: #{forward.11} parent=5 // pred_check
      %p1191 = pneg %p1190
    $region70: #{forward.11} parent=5 // pred_check_branch
      %1193 = sbr.rel (%p1191) target = $region72
    $region71: #{forward.11} parent=5 // pred_region
      %s1194 = ssub.s32 %s17, 2
      // Predicated region
      $region73: #{forward.11} parent=71 // pred_check
        %p1195 = pneg %p308
      $region74: #{forward.11} parent=71 // pred_check_branch
        %1197 = sbr.rel (%p1195) target = $region76
      $region75: #{forward.11} parent=71 // pred_region
        %p1198 = scmp.lt.s32.totalorder %s28, 1
        %s1199 = scalar_select %p1198, %s28, 1
        %p1200 = scmp.lt.s32.totalorder %s29, 0
        %s1201 = scalar_select %p1200, %s29, 0
        %s1202 = sadd.s32 %s1201, %s1199
        %s1203 = smul.addr %s1202, 4
        %s1204 = scalar_lea.vmem %s11, %s1203
      $region76: #{forward.11} parent=71 // pred_fallthru
        _
    $region72: #{forward.11} parent=5 // pred_fallthru
      _
  $region6: #{forward.11} parent=0 // loop_footer
    %s21 = sadd.s32 1, %s17
  $region7: #{forward.11} parent=0 // loop_footer_branch
    %16 = sbr.rel target = $region3
  $region8: #{forward.11} parent=0 // loop_exit
    _

// kernel: forward.21
$region0: #{forward.21}
  #allocation0 [shape = 'u32[]', space=smem, size = 0x4, offset = 0x4, fixed_abs, tag = 'smem constant byte address 0x4 - core index']
  #allocation1 [shape = 'u32[144,128]{1,0:T(1,128)}', space=vmem, size = 0x12000, scoped, tag = 'internal scratch']
  %s0 = inlined_call_operand.vmem [shape: bf16[16,32], index: 0, kind: input, shape index: {}]
  %s1 = inlined_call_operand.vmem [shape: f32[1,32], index: 1, kind: input, shape index: {}]
  %s2 = inlined_call_operand.vmem [shape: f32[1,32], index: 2, kind: input, shape index: {}]
  %s3 = inlined_call_operand.vmem [shape: bf16[32,64], index: 3, kind: input, shape index: {}]
  %s4 = inlined_call_operand.hbm [shape: f32[16,64], index: 4, kind: output, shape index: {}]
  %s5 = sld [smem:[#allocation0]]
  $region26: #{forward.21} parent=0
    _
  %s7 = ssub.s32 1, %s5
  %s8 = scalar_select 0, %s7, %s5
  $region1: #{forward.21} parent=0
    #allocation2 [shape = 'u8[8192]{0}', space=vmem, size = 0x2000, scoped, tag = 'output window, operand 0, single buffered']
    #allocation3 [shape = 's32[1]{0}', space=sflag, size = 0x4, scoped, tag = 'scoped memory for forward.21']
    %9 = vsyncpa [#allocation3], 0
    // Predicated region
    $region2: #{forward.21} parent=1 // pred_check
      _
    $region3: #{forward.21} parent=1 // pred_check_branch
      %11 = sbr.rel (0) target = $region5
    $region4: #{forward.21} parent=1 // pred_region
      _
    $region5: #{forward.21} parent=1 // pred_fallthru
      _
    // Predicated region
    $region6: #{forward.21} parent=1 // pred_check
      _
    $region7: #{forward.21} parent=1 // pred_check_branch
      %13 = sbr.rel (0) target = $region9
    $region8: #{forward.21} parent=1 // pred_region
      _
    $region9: #{forward.21} parent=1 // pred_fallthru
      _
    // Predicated region
    $region10: #{forward.21} parent=1 // pred_check
      _
    $region11: #{forward.21} parent=1 // pred_check_branch
      %15 = sbr.rel (0) target = $region13
    $region12: #{forward.21} parent=1 // pred_region
      _
    $region13: #{forward.21} parent=1 // pred_fallthru
      _
    // Predicated region
    $region14: #{forward.21} parent=1 // pred_check
      _
    $region15: #{forward.21} parent=1 // pred_check_branch
      %17 = sbr.rel (0) target = $region17
    $region16: #{forward.21} parent=1 // pred_region
      _
    $region17: #{forward.21} parent=1 // pred_fallthru
      _
    %v19 = vld [vmem:[%s0] sm:$0xf]
    %v20 = vld [vmem:[%s0 + $0x4] sm:$0xf]
    %v21 = vunpack.c.l.bf16 %v19
    %v22 = vunpack.c.l.bf16 %v20
    %v23 = vld [vmem:[%s1] sm:$0x1]
    %v24 = vld [vmem:[%s2] sm:$0x1]
    %vm25 = vcmask 261120
    %v26 = vsel %vm25, %v21, 0.0
    %27 = vadd.xlane.f32.xlu0 %v26
    %v28 = vpop.xlane.xlu0 %27
    %v29 = vsel %vm25, %v22, 0.0
    %30 = vadd.xlane.f32.xlu0 %v29
    %v31 = vpop.xlane.xlu0 %30
    %v32 = vrcp.pop 32.0
    %v33 = vmul.f32 %v28, %v32
    %v34 = vmul.f32 %v31, %v32
    %v35 = vsub.f32 %v21, %v33
    %v36 = vsub.f32 %v22, %v34
    %v37 = vmul.f32 %v35, %v35
    %v38 = vmul.f32 %v36, %v36
    %v39 = vsel %vm25, %v37, 0.0
    %40 = vadd.xlane.f32.xlu0 %v39
    %v41 = vpop.xlane.xlu0 %40
    %v42 = vsel %vm25, %v38, 0.0
    %43 = vadd.xlane.f32.xlu0 %v42
    %v44 = vpop.xlane.xlu0 %43
    %v45 = vmul.f32 %v41, %v32
    %v46 = vmul.f32 %v44, %v32
    %v47 = vadd.f32 %v45, 1e-05
    %v48 = vadd.f32 %v46, 1e-05
    %v49 = vrsqrt.pop %v47
    %v50 = vrsqrt.pop %v48
    %v51 = vmul.f32 %v35, %v49
    %v52 = vmul.f32 %v36, %v50
    %v54 = vlaneseq
    %v55 = vshrl.u32 %v54, 7
    %v56 = vsub.s32 0, %v55
    %v57 = vrot.slane %v23, %v56
    %v59 = vmul.f32 %v51, %v57
    %v60 = vmul.f32 %v52, %v57
    %v62 = vlaneseq
    %v63 = vshrl.u32 %v62, 7
    %v64 = vsub.s32 0, %v63
    %v65 = vrot.slane %v24, %v64
    %v67 = vadd.f32 %v59, %v65
    %v68 = vadd.f32 %v60, %v65
    %v69 = vpack.c.bf16 %v68, %v67
    %v70 = vld [vmem:[%s3] sm:$0xf]
    %v71 = vld [vmem:[%s3 + $0x4] sm:$0xf]
    %v72 = vld [vmem:[%s3 + $0x8] sm:$0xf]
    %v73 = vld [vmem:[%s3 + $0xc] sm:$0xf]
    %v78 = vunpack.c.l.b16 %v70
    %v79 = vunpack.c.l.b16 %v71
    %v80 = vunpack.c.l.b16 %v72
    %v81 = vunpack.c.l.b16 %v73
    %v82 = vpack.c.b16 %v79, %v78
    %v83 = vpack.c.b16 %v81, %v80
    %v87 = vsel %vm25, %v69, 0
    %89 = vmatprep.subr.bf16.mxu0 0
    %90 = vmatpush1.bf16.msra.mxu0 %v82
    %91 = vmatprep.subr.bf16.mxu0 0
    %92 = vmatpush1.bf16.msra.mxu0 %v83
    %93 = vmatprep.subr.bf16.mxu0 0
    %94 = vmatpush1.bf16.msra.mxu0 0
    %95 = vmatprep.subr.bf16.mxu0 0
    %96 = vmatpush1.bf16.msra.mxu0 0
    %97 = vmatprep.subr.bf16.mxu0 0
    %98 = vmatpush1.bf16.msra.mxu0 0
    %99 = vmatprep.subr.bf16.mxu0 0
    %100 = vmatpush1.bf16.msra.mxu0 0
    %101 = vmatprep.subr.bf16.mxu0 0
    %102 = vmatpush1.bf16.msra.mxu0 0
    %103 = vmatprep.subr.bf16.mxu0 0
    %104 = vmatpush1.bf16.msra.mxu0 0
    %105 = vmatprep.subr.bf16.mxu0 0
    %106 = vmatpush1.bf16.msra.mxu0 0
    %107 = vmatprep.subr.bf16.mxu0 0
    %108 = vmatpush1.bf16.msra.mxu0 0
    %109 = vmatprep.subr.bf16.mxu0 0
    %110 = vmatpush1.bf16.msra.mxu0 0
    %111 = vmatprep.subr.bf16.mxu0 0
    %112 = vmatpush1.bf16.msra.mxu0 0
    %113 = vmatprep.subr.bf16.mxu0 0
    %114 = vmatpush1.bf16.msra.mxu0 0
    %115 = vmatprep.subr.bf16.mxu0 0
    %116 = vmatpush1.bf16.msra.mxu0 0
    %117 = vmatprep.subr.bf16.mxu0 0
    %118 = vmatpush1.bf16.msra.mxu0 0
    %119 = vmatprep.subr.bf16.mxu0 0
    %120 = vmatpush1.bf16.msra.mxu0 0
    %121 = vmatprep.mubr.bf16.mxu0 0
    %122 = vmatmul.mubr.bf16.gmra.mrb[0].mxu0 %v87
    %v123 = vpop.f32.mrb[0].mxu0
    %v124 = vadd.f32 0.0, %v123
    %v125 = vpop.f32.mrb[0].mxu0
    %v126 = vpop.f32.mrb[0].mxu0
    %v127 = vadd.f32 0.0, %v126
    %v128 = vpop.f32.mrb[0].mxu0
    %129 = vdwg.mxu0
    %vm130 = vcmask 523264
    %131 = vst.msk [vmem:[#allocation2] sm:$0xff] %vm130, %v124
    %132 = vst.msk [vmem:[#allocation2 + $0x8] sm:$0xff] %vm130, %v127
    // Predicated region
    $region18: #{forward.21} parent=1 // pred_check
      _
    $region19: #{forward.21} parent=1 // pred_check_branch
      %134 = sbr.rel (0) target = $region21
    $region20: #{forward.21} parent=1 // pred_region
      %s136 = ssub.s32 256, 256
      %137 = vsyncadd [#allocation3], %s136
      %s138 = sshll.u32 [#allocation2], 4
      %s139 = int_to_ptr.vmem [resolvable:$true] %s138
      %144 = dma.vmem_to_hbm [thread:$0]  %s139, 256, %s4, [#allocation3], 128, 128, 8
    $region21: #{forward.21} parent=1 // pred_fallthru
      _
    // Predicated region
    $region22: #{forward.21} parent=1 // pred_check
      _
    $region23: #{forward.21} parent=1 // pred_check_branch
      %146 = sbr.rel (0) target = $region25
    $region24: #{forward.21} parent=1 // pred_region
      %147 = dma.done [#allocation3], 256
    $region25: #{forward.21} parent=1 // pred_fallthru
      _
    %148 = vsyncpa [#allocation3], 1

</llo_original>
